<compile_context>
chip_gen: v7x
topology: tpu7x:2x2x1
jax: 0.10.0
libtpu: 0.0.40
codegen_flags: <defaults>
</compile_context>

<pallas_src>
import functools

import jax
import jax.numpy as jnp
from jax.experimental import pallas as pl
from jax.experimental.pallas import tpu as pltpu


def _round_up(x, m):
    return (x + m - 1) // m * m


def _lstm_chunk_kernel(lens_ref, x_ref, wih_ref, whh_ref, bias_ref,
                       out_ref, hn_ref, cn_ref,
                       h_scr, c_scr, gx_scr, ob_scr,
                       *, hidden_p, t_chunk, unroll):
    """One grid step = one (batch_tile, time_chunk).

    Time axis is sequential ("arbitrary"); h/c persist in VMEM scratch across
    the time chunks of one batch tile.  Per chunk:
      1. one MXU GEMM computes the whole chunk's input projection
         gates_x = x @ W_ih^T + b   (off the serial chain, into VMEM scratch),
      2. the serial fori_loop does only  gates = gates_x[s] + h @ W_hh^T  plus
         the element-wise gate math,
      3. the chunk's hidden states are written batch-major into the output
         block with Tc static strided stores (no post-kernel XLA transpose).
    """
    Hp = hidden_p
    Tc = t_chunk
    tb = pl.program_id(1)                         # time-chunk index (inner axis)

    @pl.when(tb == 0)
    def _():
        h_scr[...] = jnp.zeros_like(h_scr)
        c_scr[...] = jnp.zeros_like(c_scr)

    # ---- 1. chunk input projection: one big GEMM, not per-step --------------
    tc, bt, e = x_ref.shape
    x_blk = x_ref[...].astype(jnp.float32).reshape(tc * bt, e)
    gx = jnp.dot(x_blk, wih_ref[...], preferred_element_type=jnp.float32)
    gx_scr[...] = (gx + bias_ref[...]).reshape(tc, bt, 4 * Hp)

    whh = whh_ref[...]                            # (Hp, 4Hp) f32, resident
    lens_rel = lens_ref[...] - tb * Tc            # (Bt, 1) int32, hoisted

    # ---- 2. serial recurrence over the chunk ---------------------------------
    def step(s, carry):
        h, c = carry                              # f32 (Bt, Hp)
        gates = gx_scr[s] + jnp.dot(h, whh, preferred_element_type=jnp.float32)
        # Gate order repacked at weight-repack time to [i, f, o, g]: the three
        # sigmoid gates are one contiguous 3*Hp block -> single wide EUP call.
        sig = jax.nn.sigmoid(gates[:, :3 * Hp])
        i_g = sig[:, 0 * Hp:1 * Hp]
        f_g = sig[:, 1 * Hp:2 * Hp]
        o_g = sig[:, 2 * Hp:3 * Hp]
        g_g = jnp.tanh(gates[:, 3 * Hp:])

        c_new = f_g * c + i_g * g_g
        h_new = o_g * jnp.tanh(c_new)

        # valid[b] = (t < seq_lens[b]); past the end the state is frozen
        # (packed-seq semantics) and the padded output is zero.  One compare +
        # one broadcast per step, shared by all three selects.
        valid = jnp.broadcast_to(lens_rel > s, h.shape)
        ob_scr[s] = jnp.where(valid, h_new, 0.0)
        return jnp.where(valid, h_new, h), jnp.where(valid, c_new, c)

    h, c = jax.lax.fori_loop(0, Tc, step, (h_scr[...], c_scr[...]),
                             unroll=unroll)
    h_scr[...] = h
    c_scr[...] = c

    # ---- 3. batch-major writeback: Tc static strided stores, off the chain ---
    for s in range(Tc):
        out_ref[:, s, :] = ob_scr[s].astype(out_ref.dtype)

    # Frozen-state semantics => last-chunk state == per-length final state.
    @pl.when(tb == pl.num_programs(1) - 1)
    def _():
        hn_ref[...] = h.astype(hn_ref.dtype)
        cn_ref[...] = c.astype(cn_ref.dtype)


def dynamic_lstm(seq_input, seq_lens, w_ih, w_hh, b_ih, b_hh, *,
                 time_chunk=8, batch_tile=None,
                 stream_dtype=jnp.float32, out_dtype=jnp.float32):
    """DynamicRNN.forward (single-layer unidirectional LSTM, zero init state).

    seq_input: (B, T, E), seq_lens: (B,) int.
    w_ih: (4H, E), w_hh: (4H, H), b_ih/b_hh: (4H,)  -- PyTorch nn.LSTM layout.
    Returns (outputs (B, T, H), (h_n (B, H), c_n (B, H))).

    stream_dtype: storage dtype of the streamed x (HBM/VMEM traffic only);
    every matmul operand and all state/gate math is f32 inside the kernel.
    out_dtype:   storage dtype of the per-step outputs written to HBM.
    """
    B, T, E = seq_input.shape
    H = w_hh.shape[1]
    f32 = jnp.float32

    # ---- tile selection -------------------------------------------------------
    Hp = _round_up(H, 128)                        # lane-aligned hidden size
    if batch_tile is None:
        # A large-ish M keeps the MXU row dimension busy and the "parallel"
        # batch axis gives v7x megacore >=2 tiles to split once B > 128.
        Bt = min(_round_up(B, 8), 128)
    else:
        Bt = _round_up(batch_tile, 8)
    Bp = _round_up(B, Bt)

    Tc = max(1, min(time_chunk, T))
    if Tc < T:
        # Multi-chunk: the chunk axis is the sublane axis of the batch-major
        # output block, so it must be 8-aligned (single-chunk Tc==Tp is exempt).
        Tc = _round_up(Tc, 8)
    Tp = _round_up(T, Tc)
    nb, nt = Bp // Bt, Tp // Tc

    # Full unroll only while the h/c carries fit comfortably in the 64x4KiB
    # vreg file; otherwise partial unroll avoids spill-driven vld/vst pressure.
    unroll = Tc if (2 * Bt * Hp * 4) <= (96 * 1024) else 2

    # ---- parameter repack -----------------------------------------------------
    # PyTorch gate order is [i, f, g, o]; repack to [i, f, o, g] so the sigmoid
    # gates are contiguous.  Each gate is zero-padded to Hp so every gate slice
    # is 128-lane aligned and padded hidden lanes stay exactly zero over time.
    perm = jnp.array([0, 1, 3, 2])
    w_ih4 = jnp.asarray(w_ih, f32).reshape(4, H, E)[perm]
    w_hh4 = jnp.asarray(w_hh, f32).reshape(4, H, H)[perm]
    bias4 = (jnp.asarray(b_ih, f32) + jnp.asarray(b_hh, f32)).reshape(4, H)[perm]

    wih_p = jnp.pad(w_ih4, ((0, 0), (0, Hp - H), (0, 0)))             # (4,Hp,E)
    wih_p = jnp.transpose(wih_p, (2, 0, 1)).reshape(E, 4 * Hp)        # (E,4Hp)
    whh_p = jnp.pad(w_hh4, ((0, 0), (0, Hp - H), (0, Hp - H)))        # (4,Hp,Hp)
    whh_p = jnp.transpose(whh_p, (2, 0, 1)).reshape(Hp, 4 * Hp)       # (Hp,4Hp)
    bias_p = jnp.pad(bias4, ((0, 0), (0, Hp - H))).reshape(1, 4 * Hp)

    # ---- activations: stream x time-major; the input projection is fused into
    #      the kernel so no (T, B, 4Hp) gates_x intermediate ever hits HBM. ----
    x_tm = jnp.transpose(jnp.asarray(seq_input, f32), (1, 0, 2))      # (T,B,E)
    x_tm = jnp.pad(x_tm, ((0, Tp - T), (0, Bp - B), (0, 0))).astype(stream_dtype)
    lens = jnp.pad(jnp.asarray(seq_lens, jnp.int32), (0, Bp - B)).reshape(Bp, 1)

    # ---- VMEM budget (double-buffered streams, single-buffered residents) ----
    sbytes = jnp.dtype(stream_dtype).itemsize
    obytes = jnp.dtype(out_dtype).itemsize
    vmem_est = (
        2 * Tc * Bt * E * sbytes                         # x blocks
        + E * 4 * Hp * 4 + Hp * 4 * Hp * 4 + 4 * Hp * 4  # W_ih, W_hh, bias
        + 2 * Bt * Tc * Hp * obytes                      # output blocks
        + 2 * 2 * Bt * Hp * 4                            # h_n / c_n blocks
        + 2 * Bt * Hp * 4                                # h / c scratch
        + Tc * Bt * 4 * Hp * 4                           # gates_x scratch
        + Tc * Bt * Hp * 4                               # chunk-output scratch
    )
    vmem_limit = int(min(max(vmem_est * 5 // 4 + (2 << 20), 16 << 20), 64 << 20))

    kernel = functools.partial(_lstm_chunk_kernel, hidden_p=Hp, t_chunk=Tc,
                               unroll=unroll)

    out_bm, h_n, c_n = pl.pallas_call(
        kernel,
        out_shape=(
            jax.ShapeDtypeStruct((Bp, Tp, Hp), out_dtype),
            jax.ShapeDtypeStruct((Bp, Hp), f32),
            jax.ShapeDtypeStruct((Bp, Hp), f32),
        ),
        grid_spec=pltpu.PrefetchScalarGridSpec(
            num_scalar_prefetch=0,
            grid=(nb, nt),
            in_specs=[
                pl.BlockSpec((Bt, 1), lambda b, t: (b, 0)),               # seq_lens
                pl.BlockSpec((Tc, Bt, E), lambda b, t: (t, b, 0)),        # x (T-major)
                # Resident operands: constant index_map -> single-buffered so
                # the second pipeline buffer's VMEM is not wasted.
                pl.BlockSpec((E, 4 * Hp), lambda b, t: (0, 0),
                             pipeline_mode=pl.Buffered(1)),               # W_ih^T
                pl.BlockSpec((Hp, 4 * Hp), lambda b, t: (0, 0),
                             pipeline_mode=pl.Buffered(1)),               # W_hh^T
                pl.BlockSpec((1, 4 * Hp), lambda b, t: (0, 0),
                             pipeline_mode=pl.Buffered(1)),               # bias
            ],
            out_specs=[
                pl.BlockSpec((Bt, Tc, Hp), lambda b, t: (b, t, 0)),       # outputs
                pl.BlockSpec((Bt, Hp), lambda b, t: (b, 0)),              # h_n
                pl.BlockSpec((Bt, Hp), lambda b, t: (b, 0)),              # c_n
            ],
            scratch_shapes=[
                pltpu.VMEM((Bt, Hp), f32),                # h carry (per tile)
                pltpu.VMEM((Bt, Hp), f32),                # c carry
                pltpu.VMEM((Tc, Bt, 4 * Hp), f32),        # chunk gates_x
                pltpu.VMEM((Tc, Bt, Hp), f32),            # chunk outputs (T-major)
            ],
        ),
        compiler_params=pltpu.CompilerParams(
            # Time is inherently sequential; batch tiles are independent so the
            # leading grid axis can be megacore-sharded (v7x needs nb >= 2).
            dimension_semantics=("parallel", "arbitrary"),
            vmem_limit_bytes=vmem_limit,
        ),
    )(lens, x_tm, wih_p, whh_p, bias_p)

    outputs = out_bm[:B, :T, :H].astype(f32)
    return outputs, (h_n[:B, :H], c_n[:B, :H])


def _reference(seq_input, seq_lens, w_ih, w_hh, b_ih, b_hh):
    """Pure-JAX f32 reference with the same packed-sequence semantics."""
    B, T, E = seq_input.shape
    H = w_hh.shape[1]
    bias = b_ih + b_hh

    def step(carry, xt_and_t):
        h, c = carry
        x_t, t = xt_and_t
        gates = x_t @ w_ih.T + h @ w_hh.T + bias
        i = jax.nn.sigmoid(gates[:, 0 * H:1 * H])
        f = jax.nn.sigmoid(gates[:, 1 * H:2 * H])
        g = jnp.tanh(gates[:, 2 * H:3 * H])
        o = jax.nn.sigmoid(gates[:, 3 * H:4 * H])
        c_new = f * c + i * g
        h_new = o * jnp.tanh(c_new)
        valid = (seq_lens > t)[:, None]
        h2 = jnp.where(valid, h_new, h)
        c2 = jnp.where(valid, c_new, c)
        return (h2, c2), jnp.where(valid, h_new, 0.0)

    x_tm = jnp.transpose(seq_input, (1, 0, 2))
    (h_n, c_n), outs = jax.lax.scan(step, (jnp.zeros((B, H)), jnp.zeros((B, H))),
                                    (x_tm, jnp.arange(T)))
    return jnp.transpose(outs, (1, 0, 2)), (h_n, c_n)


if __name__ == "__main__":
    B, T, E, H = 8, 12, 32, 32

    key = jax.random.PRNGKey(0)
    k1, k2, k3, k4, k5, k6, k7, k8 = jax.random.split(key, 8)

    s = 1.0 / jnp.sqrt(jnp.float32(H))
    w_ih = jax.random.uniform(k1, (4 * H, E), jnp.float32, -s, s)
    w_hh = jax.random.uniform(k2, (4 * H, H), jnp.float32, -s, s)
    b_ih = jax.random.uniform(k3, (4 * H,), jnp.float32, -s, s)
    b_hh = jax.random.uniform(k4, (4 * H,), jnp.float32, -s, s)

    seq_input = jax.random.normal(k5, (B, T, E), jnp.float32)
    seq_lens = jax.random.randint(k6, (B,), 1, T + 1).astype(jnp.int32)

    ref_out, (ref_h, ref_c) = _reference(seq_input, seq_lens, w_ih, w_hh, b_ih, b_hh)

    # 1. Single time chunk (Tc == T), default batch tile.
    out1, (h1, c1) = dynamic_lstm(seq_input, seq_lens, w_ih, w_hh, b_ih, b_hh,
                                  time_chunk=T)
    jax.block_until_ready((out1, h1, c1))
    assert jnp.allclose(out1, ref_out, atol=2e-3, rtol=2e-3)
    assert jnp.allclose(h1, ref_h, atol=2e-3, rtol=2e-3)
    assert jnp.allclose(c1, ref_c, atol=2e-3, rtol=2e-3)

    # 2. Multiple time chunks with time padding (Tc=8, Tp=16 > T=12): exercises
    #    the cross-chunk h/c carry, pl.when(last) finalize and padded-step mask.
    out2, (h2, c2) = dynamic_lstm(seq_input, seq_lens, w_ih, w_hh, b_ih, b_hh,
                                  time_chunk=8)
    jax.block_until_ready((out2, h2, c2))
    assert jnp.allclose(out2, ref_out, atol=2e-3, rtol=2e-3)
    assert jnp.allclose(h2, ref_h, atol=2e-3, rtol=2e-3)
    assert jnp.allclose(c2, ref_c, atol=2e-3, rtol=2e-3)

    # 3. bf16 streamed activations (storage only; all dots / state math are f32
    #    inside the kernel, so no bf16 x bf16 dot is ever emitted).
    out3, (h3, c3) = dynamic_lstm(seq_input, seq_lens, w_ih, w_hh, b_ih, b_hh,
                                  time_chunk=8, stream_dtype=jnp.bfloat16)
    jax.block_until_ready((out3, h3, c3))
    assert jnp.allclose(out3, ref_out, atol=5e-2, rtol=5e-2)
    assert jnp.allclose(h3, ref_h, atol=5e-2, rtol=5e-2)
    assert jnp.allclose(c3, ref_c, atol=5e-2, rtol=5e-2)

    # 4. Multiple batch tiles x multiple time chunks (parallel batch grid axis).
    B2 = 16
    seq_input2 = jax.random.normal(k7, (B2, T, E), jnp.float32)
    seq_lens2 = jax.random.randint(k8, (B2,), 1, T + 1).astype(jnp.int32)
    ref_out2, (ref_h2, ref_c2) = _reference(seq_input2, seq_lens2,
                                            w_ih, w_hh, b_ih, b_hh)
    out4, (h4, c4) = dynamic_lstm(seq_input2, seq_lens2, w_ih, w_hh, b_ih, b_hh,
                                  time_chunk=8, batch_tile=8)
    jax.block_until_ready((out4, h4, c4))
    assert jnp.allclose(out4, ref_out2, atol=2e-3, rtol=2e-3)
    assert jnp.allclose(h4, ref_h2, atol=2e-3, rtol=2e-3)
    assert jnp.allclose(c4, ref_c2, atol=2e-3, rtol=2e-3)

    print("KERNEL_OK")
</pallas_src>

<mosaic_0001>
module attributes {stable_mosaic.version = 11 : i64} {
  func.func @_lstm_chunk_kernel(%arg0: i32, %arg1: i32, %arg2: memref<8x1xi32, #tpu.memory_space<vmem>>, %arg3: memref<12x8x32xf32, #tpu.memory_space<vmem>>, %arg4: memref<32x512xf32, #tpu.memory_space<vmem>>, %arg5: memref<128x512xf32, #tpu.memory_space<vmem>>, %arg6: memref<1x512xf32, #tpu.memory_space<vmem>>, %arg7: memref<8x12x128xf32, #tpu.memory_space<vmem>>, %arg8: memref<8x128xf32, #tpu.memory_space<vmem>>, %arg9: memref<8x128xf32, #tpu.memory_space<vmem>>, %arg10: memref<8x128xf32, #tpu.memory_space<vmem>>, %arg11: memref<8x128xf32, #tpu.memory_space<vmem>>, %arg12: memref<12x8x512xf32, #tpu.memory_space<vmem>>, %arg13: memref<12x8x128xf32, #tpu.memory_space<vmem>>) attributes {dimension_semantics = [#tpu.dimension_semantics<parallel>, #tpu.dimension_semantics<arbitrary>], iteration_bounds = array<i64: 1, 1>, scalar_prefetch = 0 : i64, scratch_operands = 4 : i64, tpu.core_type = #tpu.core_type<tc>, window_params = [{transform_indices = @transform_0, window_bounds = array<i64: 8, 1>}, {transform_indices = @transform_1, window_bounds = array<i64: 12, 8, 32>}, {pipeline_mode = #tpu.pipeline_mode<synchronous>, transform_indices = @transform_2, window_bounds = array<i64: 32, 512>}, {pipeline_mode = #tpu.pipeline_mode<synchronous>, transform_indices = @transform_3, window_bounds = array<i64: 128, 512>}, {pipeline_mode = #tpu.pipeline_mode<synchronous>, transform_indices = @transform_4, window_bounds = array<i64: 1, 512>}, {transform_indices = @transform_5, window_bounds = array<i64: 8, 12, 128>}, {transform_indices = @transform_6, window_bounds = array<i64: 8, 128>}, {transform_indices = @transform_7, window_bounds = array<i64: 8, 128>}]} {
    %c0_i32 = arith.constant 0 : i32
    %0 = arith.cmpi eq, %arg1, %c0_i32 : i32
    %1 = arith.extui %0 : i1 to i32
    %c0_i32_0 = arith.constant 0 : i32
    %2 = arith.cmpi ne, %1, %c0_i32_0 : i32
    scf.if %2 {
      %cst_171 = arith.constant 0.000000e+00 : f32
      %480 = vector.broadcast %cst_171 : f32 to vector<8x128xf32>
      %c0_172 = arith.constant 0 : index
      %c0_173 = arith.constant 0 : index
      %481 = vector.load %arg10[%c0_172, %c0_173] : memref<8x128xf32, #tpu.memory_space<vmem>>, vector<8x128xf32>
      tpu.vector_store %arg10[%c0_172, %c0_173], %480 {strides = array<i32>} : memref<8x128xf32, #tpu.memory_space<vmem>>, vector<8x128xf32>,
      %cst_174 = arith.constant 0.000000e+00 : f32
      %482 = vector.broadcast %cst_174 : f32 to vector<8x128xf32>
      %c0_175 = arith.constant 0 : index
      %c0_176 = arith.constant 0 : index
      %483 = vector.load %arg11[%c0_175, %c0_176] : memref<8x128xf32, #tpu.memory_space<vmem>>, vector<8x128xf32>
      tpu.vector_store %arg11[%c0_175, %c0_176], %482 {strides = array<i32>} : memref<8x128xf32, #tpu.memory_space<vmem>>, vector<8x128xf32>,
    } else {
    }
    %c0 = arith.constant 0 : index
    %c0_1 = arith.constant 0 : index
    %c0_2 = arith.constant 0 : index
    %3 = vector.load %arg3[%c0, %c0_1, %c0_2] : memref<12x8x32xf32, #tpu.memory_space<vmem>>, vector<12x8x32xf32>
    %4 = vector.shape_cast %3 : vector<12x8x32xf32> to vector<96x32xf32>
    %c0_3 = arith.constant 0 : index
    %c0_4 = arith.constant 0 : index
    %5 = vector.load %arg4[%c0_3, %c0_4] : memref<32x512xf32, #tpu.memory_space<vmem>>, vector<32x512xf32>
    %cst = arith.constant dense<0.000000e+00> : vector<96x512xf32>
    %6 = tpu.matmul %4, %5, %cst {dimension_numbers = #tpu.dot_dimension_numbers<[1], [0], [0], [1], [0, 0, 1, 1], [], []>} : vector<96x32xf32>, vector<32x512xf32>, vector<96x512xf32> -> vector<96x512xf32>
    %c0_5 = arith.constant 0 : index
    %c0_6 = arith.constant 0 : index
    %7 = vector.load %arg6[%c0_5, %c0_6] : memref<1x512xf32, #tpu.memory_space<vmem>>, vector<1x512xf32>
    %8 = vector.broadcast %7 : vector<1x512xf32> to vector<96x512xf32>
    %9 = arith.addf %6, %8 : vector<96x512xf32>
    %10 = vector.shape_cast %9 : vector<96x512xf32> to vector<12x8x512xf32>
    %c0_7 = arith.constant 0 : index
    %c0_8 = arith.constant 0 : index
    %c0_9 = arith.constant 0 : index
    %11 = vector.load %arg12[%c0_7, %c0_8, %c0_9] : memref<12x8x512xf32, #tpu.memory_space<vmem>>, vector<12x8x512xf32>
    tpu.vector_store %arg12[%c0_7, %c0_8, %c0_9], %10 {strides = array<i32>} : memref<12x8x512xf32, #tpu.memory_space<vmem>>, vector<12x8x512xf32>,
    %c0_10 = arith.constant 0 : index
    %c0_11 = arith.constant 0 : index
    %12 = vector.load %arg5[%c0_10, %c0_11] : memref<128x512xf32, #tpu.memory_space<vmem>>, vector<128x512xf32>
    %c0_12 = arith.constant 0 : index
    %c0_13 = arith.constant 0 : index
    %13 = vector.load %arg2[%c0_12, %c0_13] : memref<8x1xi32, #tpu.memory_space<vmem>>, vector<8x1xi32>
    %c12_i32 = arith.constant 12 : i32
    %14 = arith.muli %arg1, %c12_i32 : i32
    %15 = vector.broadcast %14 : i32 to vector<8x1xi32>
    %16 = arith.subi %13, %15 : vector<8x1xi32>
    %c0_14 = arith.constant 0 : index
    %c0_15 = arith.constant 0 : index
    %17 = vector.load %arg10[%c0_14, %c0_15] : memref<8x128xf32, #tpu.memory_space<vmem>>, vector<8x128xf32>
    %c0_16 = arith.constant 0 : index
    %c0_17 = arith.constant 0 : index
    %18 = vector.load %arg11[%c0_16, %c0_17] : memref<8x128xf32, #tpu.memory_space<vmem>>, vector<8x128xf32>
    %c0_i32_18 = arith.constant 0 : i32
    %19 = arith.index_cast %c0_i32_18 : i32 to index
    %c0_19 = arith.constant 0 : index
    %c0_20 = arith.constant 0 : index
    %20 = vector.load %arg12[%19, %c0_19, %c0_20] : memref<12x8x512xf32, #tpu.memory_space<vmem>>, vector<1x8x512xf32>
    %21 = vector.shape_cast %20 : vector<1x8x512xf32> to vector<8x512xf32>
    %cst_21 = arith.constant dense<0.000000e+00> : vector<8x512xf32>
    %22 = tpu.matmul %17, %12, %cst_21 {dimension_numbers = #tpu.dot_dimension_numbers<[1], [0], [0], [1], [0, 0, 1, 1], [], []>} : vector<8x128xf32>, vector<128x512xf32>, vector<8x512xf32> -> vector<8x512xf32>
    %23 = arith.addf %21, %22 : vector<8x512xf32>
    %24 = vector.extract_strided_slice %23 {offsets = [0, 0], sizes = [8, 384], strides = [1, 1]} : vector<8x512xf32> to vector<8x384xf32>
    %25 = arith.negf %24 : vector<8x384xf32>
    %26 = math.exp %25 : vector<8x384xf32>
    %cst_22 = arith.constant 1.000000e+00 : f32
    %27 = vector.broadcast %cst_22 : f32 to vector<8x384xf32>
    %28 = arith.addf %27, %26 : vector<8x384xf32>
    %29 = arith.divf %27, %28 : vector<8x384xf32>
    %30 = vector.extract_strided_slice %29 {offsets = [0, 0], sizes = [8, 128], strides = [1, 1]} : vector<8x384xf32> to vector<8x128xf32>
    %31 = vector.extract_strided_slice %29 {offsets = [0, 128], sizes = [8, 128], strides = [1, 1]} : vector<8x384xf32> to vector<8x128xf32>
    %32 = vector.extract_strided_slice %29 {offsets = [0, 256], sizes = [8, 128], strides = [1, 1]} : vector<8x384xf32> to vector<8x128xf32>
    %33 = vector.extract_strided_slice %23 {offsets = [0, 384], sizes = [8, 128], strides = [1, 1]} : vector<8x512xf32> to vector<8x128xf32>
    %34 = math.tanh %33 : vector<8x128xf32>
    %35 = arith.mulf %31, %18 : vector<8x128xf32>
    %36 = arith.mulf %30, %34 : vector<8x128xf32>
    %37 = arith.addf %35, %36 : vector<8x128xf32>
    %38 = math.tanh %37 : vector<8x128xf32>
    %39 = arith.mulf %32, %38 : vector<8x128xf32>
    %40 = vector.broadcast %c0_i32_18 : i32 to vector<8x1xi32>
    %41 = arith.cmpi sgt, %16, %40 : vector<8x1xi32>
    %42 = vector.shape_cast %41 : vector<8x1xi1> to vector<8x1xi1>
    %43 = vector.broadcast %42 : vector<8x1xi1> to vector<8x128xi1>
    %cst_23 = arith.constant 0.000000e+00 : f32
    %44 = vector.broadcast %cst_23 : f32 to vector<8x128xf32>
    %45 = arith.select %43, %39, %44 : vector<8x128xi1>, vector<8x128xf32>
    %46 = arith.index_cast %c0_i32_18 : i32 to index
    %c0_24 = arith.constant 0 : index
    %c0_25 = arith.constant 0 : index
    %47 = vector.load %arg13[%46, %c0_24, %c0_25] : memref<12x8x128xf32, #tpu.memory_space<vmem>>, vector<1x8x128xf32>
    %48 = vector.shape_cast %47 : vector<1x8x128xf32> to vector<8x128xf32>
    %49 = vector.shape_cast %45 : vector<8x128xf32> to vector<1x8x128xf32>
    tpu.vector_store %arg13[%46, %c0_24, %c0_25], %49 {strides = array<i32>} : memref<12x8x128xf32, #tpu.memory_space<vmem>>, vector<1x8x128xf32>,
    %50 = arith.select %43, %39, %17 : vector<8x128xi1>, vector<8x128xf32>
    %51 = arith.select %43, %37, %18 : vector<8x128xi1>, vector<8x128xf32>
    %c1_i32 = arith.constant 1 : i32
    %52 = arith.index_cast %c1_i32 : i32 to index
    %c0_26 = arith.constant 0 : index
    %c0_27 = arith.constant 0 : index
    %53 = vector.load %arg12[%52, %c0_26, %c0_27] : memref<12x8x512xf32, #tpu.memory_space<vmem>>, vector<1x8x512xf32>
    %54 = vector.shape_cast %53 : vector<1x8x512xf32> to vector<8x512xf32>
    %cst_28 = arith.constant dense<0.000000e+00> : vector<8x512xf32>
    %55 = tpu.matmul %50, %12, %cst_28 {dimension_numbers = #tpu.dot_dimension_numbers<[1], [0], [0], [1], [0, 0, 1, 1], [], []>} : vector<8x128xf32>, vector<128x512xf32>, vector<8x512xf32> -> vector<8x512xf32>
    %56 = arith.addf %54, %55 : vector<8x512xf32>
    %57 = vector.extract_strided_slice %56 {offsets = [0, 0], sizes = [8, 384], strides = [1, 1]} : vector<8x512xf32> to vector<8x384xf32>
    %58 = arith.negf %57 : vector<8x384xf32>
    %59 = math.exp %58 : vector<8x384xf32>
    %cst_29 = arith.constant 1.000000e+00 : f32
    %60 = vector.broadcast %cst_29 : f32 to vector<8x384xf32>
    %61 = arith.addf %60, %59 : vector<8x384xf32>
    %62 = arith.divf %60, %61 : vector<8x384xf32>
    %63 = vector.extract_strided_slice %62 {offsets = [0, 0], sizes = [8, 128], strides = [1, 1]} : vector<8x384xf32> to vector<8x128xf32>
    %64 = vector.extract_strided_slice %62 {offsets = [0, 128], sizes = [8, 128], strides = [1, 1]} : vector<8x384xf32> to vector<8x128xf32>
    %65 = vector.extract_strided_slice %62 {offsets = [0, 256], sizes = [8, 128], strides = [1, 1]} : vector<8x384xf32> to vector<8x128xf32>
    %66 = vector.extract_strided_slice %56 {offsets = [0, 384], sizes = [8, 128], strides = [1, 1]} : vector<8x512xf32> to vector<8x128xf32>
    %67 = math.tanh %66 : vector<8x128xf32>
    %68 = arith.mulf %64, %51 : vector<8x128xf32>
    %69 = arith.mulf %63, %67 : vector<8x128xf32>
    %70 = arith.addf %68, %69 : vector<8x128xf32>
    %71 = math.tanh %70 : vector<8x128xf32>
    %72 = arith.mulf %65, %71 : vector<8x128xf32>
    %73 = vector.broadcast %c1_i32 : i32 to vector<8x1xi32>
    %74 = arith.cmpi sgt, %16, %73 : vector<8x1xi32>
    %75 = vector.shape_cast %74 : vector<8x1xi1> to vector<8x1xi1>
    %76 = vector.broadcast %75 : vector<8x1xi1> to vector<8x128xi1>
    %cst_30 = arith.constant 0.000000e+00 : f32
    %77 = vector.broadcast %cst_30 : f32 to vector<8x128xf32>
    %78 = arith.select %76, %72, %77 : vector<8x128xi1>, vector<8x128xf32>
    %79 = arith.index_cast %c1_i32 : i32 to index
    %c0_31 = arith.constant 0 : index
    %c0_32 = arith.constant 0 : index
    %80 = vector.load %arg13[%79, %c0_31, %c0_32] : memref<12x8x128xf32, #tpu.memory_space<vmem>>, vector<1x8x128xf32>
    %81 = vector.shape_cast %80 : vector<1x8x128xf32> to vector<8x128xf32>
    %82 = vector.shape_cast %78 : vector<8x128xf32> to vector<1x8x128xf32>
    tpu.vector_store %arg13[%79, %c0_31, %c0_32], %82 {strides = array<i32>} : memref<12x8x128xf32, #tpu.memory_space<vmem>>, vector<1x8x128xf32>,
    %83 = arith.select %76, %72, %50 : vector<8x128xi1>, vector<8x128xf32>
    %84 = arith.select %76, %70, %51 : vector<8x128xi1>, vector<8x128xf32>
    %c2_i32 = arith.constant 2 : i32
    %85 = arith.index_cast %c2_i32 : i32 to index
    %c0_33 = arith.constant 0 : index
    %c0_34 = arith.constant 0 : index
    %86 = vector.load %arg12[%85, %c0_33, %c0_34] : memref<12x8x512xf32, #tpu.memory_space<vmem>>, vector<1x8x512xf32>
    %87 = vector.shape_cast %86 : vector<1x8x512xf32> to vector<8x512xf32>
    %cst_35 = arith.constant dense<0.000000e+00> : vector<8x512xf32>
    %88 = tpu.matmul %83, %12, %cst_35 {dimension_numbers = #tpu.dot_dimension_numbers<[1], [0], [0], [1], [0, 0, 1, 1], [], []>} : vector<8x128xf32>, vector<128x512xf32>, vector<8x512xf32> -> vector<8x512xf32>
    %89 = arith.addf %87, %88 : vector<8x512xf32>
    %90 = vector.extract_strided_slice %89 {offsets = [0, 0], sizes = [8, 384], strides = [1, 1]} : vector<8x512xf32> to vector<8x384xf32>
    %91 = arith.negf %90 : vector<8x384xf32>
    %92 = math.exp %91 : vector<8x384xf32>
    %cst_36 = arith.constant 1.000000e+00 : f32
    %93 = vector.broadcast %cst_36 : f32 to vector<8x384xf32>
    %94 = arith.addf %93, %92 : vector<8x384xf32>
    %95 = arith.divf %93, %94 : vector<8x384xf32>
    %96 = vector.extract_strided_slice %95 {offsets = [0, 0], sizes = [8, 128], strides = [1, 1]} : vector<8x384xf32> to vector<8x128xf32>
    %97 = vector.extract_strided_slice %95 {offsets = [0, 128], sizes = [8, 128], strides = [1, 1]} : vector<8x384xf32> to vector<8x128xf32>
    %98 = vector.extract_strided_slice %95 {offsets = [0, 256], sizes = [8, 128], strides = [1, 1]} : vector<8x384xf32> to vector<8x128xf32>
    %99 = vector.extract_strided_slice %89 {offsets = [0, 384], sizes = [8, 128], strides = [1, 1]} : vector<8x512xf32> to vector<8x128xf32>
    %100 = math.tanh %99 : vector<8x128xf32>
    %101 = arith.mulf %97, %84 : vector<8x128xf32>
    %102 = arith.mulf %96, %100 : vector<8x128xf32>
    %103 = arith.addf %101, %102 : vector<8x128xf32>
    %104 = math.tanh %103 : vector<8x128xf32>
    %105 = arith.mulf %98, %104 : vector<8x128xf32>
    %106 = vector.broadcast %c2_i32 : i32 to vector<8x1xi32>
    %107 = arith.cmpi sgt, %16, %106 : vector<8x1xi32>
    %108 = vector.shape_cast %107 : vector<8x1xi1> to vector<8x1xi1>
    %109 = vector.broadcast %108 : vector<8x1xi1> to vector<8x128xi1>
    %cst_37 = arith.constant 0.000000e+00 : f32
    %110 = vector.broadcast %cst_37 : f32 to vector<8x128xf32>
    %111 = arith.select %109, %105, %110 : vector<8x128xi1>, vector<8x128xf32>
    %112 = arith.index_cast %c2_i32 : i32 to index
    %c0_38 = arith.constant 0 : index
    %c0_39 = arith.constant 0 : index
    %113 = vector.load %arg13[%112, %c0_38, %c0_39] : memref<12x8x128xf32, #tpu.memory_space<vmem>>, vector<1x8x128xf32>
    %114 = vector.shape_cast %113 : vector<1x8x128xf32> to vector<8x128xf32>
    %115 = vector.shape_cast %111 : vector<8x128xf32> to vector<1x8x128xf32>
    tpu.vector_store %arg13[%112, %c0_38, %c0_39], %115 {strides = array<i32>} : memref<12x8x128xf32, #tpu.memory_space<vmem>>, vector<1x8x128xf32>,
    %116 = arith.select %109, %105, %83 : vector<8x128xi1>, vector<8x128xf32>
    %117 = arith.select %109, %103, %84 : vector<8x128xi1>, vector<8x128xf32>
    %c3_i32 = arith.constant 3 : i32
    %118 = arith.index_cast %c3_i32 : i32 to index
    %c0_40 = arith.constant 0 : index
    %c0_41 = arith.constant 0 : index
    %119 = vector.load %arg12[%118, %c0_40, %c0_41] : memref<12x8x512xf32, #tpu.memory_space<vmem>>, vector<1x8x512xf32>
    %120 = vector.shape_cast %119 : vector<1x8x512xf32> to vector<8x512xf32>
    %cst_42 = arith.constant dense<0.000000e+00> : vector<8x512xf32>
    %121 = tpu.matmul %116, %12, %cst_42 {dimension_numbers = #tpu.dot_dimension_numbers<[1], [0], [0], [1], [0, 0, 1, 1], [], []>} : vector<8x128xf32>, vector<128x512xf32>, vector<8x512xf32> -> vector<8x512xf32>
    %122 = arith.addf %120, %121 : vector<8x512xf32>
    %123 = vector.extract_strided_slice %122 {offsets = [0, 0], sizes = [8, 384], strides = [1, 1]} : vector<8x512xf32> to vector<8x384xf32>
    %124 = arith.negf %123 : vector<8x384xf32>
    %125 = math.exp %124 : vector<8x384xf32>
    %cst_43 = arith.constant 1.000000e+00 : f32
    %126 = vector.broadcast %cst_43 : f32 to vector<8x384xf32>
    %127 = arith.addf %126, %125 : vector<8x384xf32>
    %128 = arith.divf %126, %127 : vector<8x384xf32>
    %129 = vector.extract_strided_slice %128 {offsets = [0, 0], sizes = [8, 128], strides = [1, 1]} : vector<8x384xf32> to vector<8x128xf32>
    %130 = vector.extract_strided_slice %128 {offsets = [0, 128], sizes = [8, 128], strides = [1, 1]} : vector<8x384xf32> to vector<8x128xf32>
    %131 = vector.extract_strided_slice %128 {offsets = [0, 256], sizes = [8, 128], strides = [1, 1]} : vector<8x384xf32> to vector<8x128xf32>
    %132 = vector.extract_strided_slice %122 {offsets = [0, 384], sizes = [8, 128], strides = [1, 1]} : vector<8x512xf32> to vector<8x128xf32>
    %133 = math.tanh %132 : vector<8x128xf32>
    %134 = arith.mulf %130, %117 : vector<8x128xf32>
    %135 = arith.mulf %129, %133 : vector<8x128xf32>
    %136 = arith.addf %134, %135 : vector<8x128xf32>
    %137 = math.tanh %136 : vector<8x128xf32>
    %138 = arith.mulf %131, %137 : vector<8x128xf32>
    %139 = vector.broadcast %c3_i32 : i32 to vector<8x1xi32>
    %140 = arith.cmpi sgt, %16, %139 : vector<8x1xi32>
    %141 = vector.shape_cast %140 : vector<8x1xi1> to vector<8x1xi1>
    %142 = vector.broadcast %141 : vector<8x1xi1> to vector<8x128xi1>
    %cst_44 = arith.constant 0.000000e+00 : f32
    %143 = vector.broadcast %cst_44 : f32 to vector<8x128xf32>
    %144 = arith.select %142, %138, %143 : vector<8x128xi1>, vector<8x128xf32>
    %145 = arith.index_cast %c3_i32 : i32 to index
    %c0_45 = arith.constant 0 : index
    %c0_46 = arith.constant 0 : index
    %146 = vector.load %arg13[%145, %c0_45, %c0_46] : memref<12x8x128xf32, #tpu.memory_space<vmem>>, vector<1x8x128xf32>
    %147 = vector.shape_cast %146 : vector<1x8x128xf32> to vector<8x128xf32>
    %148 = vector.shape_cast %144 : vector<8x128xf32> to vector<1x8x128xf32>
    tpu.vector_store %arg13[%145, %c0_45, %c0_46], %148 {strides = array<i32>} : memref<12x8x128xf32, #tpu.memory_space<vmem>>, vector<1x8x128xf32>,
    %149 = arith.select %142, %138, %116 : vector<8x128xi1>, vector<8x128xf32>
    %150 = arith.select %142, %136, %117 : vector<8x128xi1>, vector<8x128xf32>
    %c4_i32 = arith.constant 4 : i32
    %151 = arith.index_cast %c4_i32 : i32 to index
    %c0_47 = arith.constant 0 : index
    %c0_48 = arith.constant 0 : index
    %152 = vector.load %arg12[%151, %c0_47, %c0_48] : memref<12x8x512xf32, #tpu.memory_space<vmem>>, vector<1x8x512xf32>
    %153 = vector.shape_cast %152 : vector<1x8x512xf32> to vector<8x512xf32>
    %cst_49 = arith.constant dense<0.000000e+00> : vector<8x512xf32>
    %154 = tpu.matmul %149, %12, %cst_49 {dimension_numbers = #tpu.dot_dimension_numbers<[1], [0], [0], [1], [0, 0, 1, 1], [], []>} : vector<8x128xf32>, vector<128x512xf32>, vector<8x512xf32> -> vector<8x512xf32>
    %155 = arith.addf %153, %154 : vector<8x512xf32>
    %156 = vector.extract_strided_slice %155 {offsets = [0, 0], sizes = [8, 384], strides = [1, 1]} : vector<8x512xf32> to vector<8x384xf32>
    %157 = arith.negf %156 : vector<8x384xf32>
    %158 = math.exp %157 : vector<8x384xf32>
    %cst_50 = arith.constant 1.000000e+00 : f32
    %159 = vector.broadcast %cst_50 : f32 to vector<8x384xf32>
    %160 = arith.addf %159, %158 : vector<8x384xf32>
    %161 = arith.divf %159, %160 : vector<8x384xf32>
    %162 = vector.extract_strided_slice %161 {offsets = [0, 0], sizes = [8, 128], strides = [1, 1]} : vector<8x384xf32> to vector<8x128xf32>
    %163 = vector.extract_strided_slice %161 {offsets = [0, 128], sizes = [8, 128], strides = [1, 1]} : vector<8x384xf32> to vector<8x128xf32>
    %164 = vector.extract_strided_slice %161 {offsets = [0, 256], sizes = [8, 128], strides = [1, 1]} : vector<8x384xf32> to vector<8x128xf32>
    %165 = vector.extract_strided_slice %155 {offsets = [0, 384], sizes = [8, 128], strides = [1, 1]} : vector<8x512xf32> to vector<8x128xf32>
    %166 = math.tanh %165 : vector<8x128xf32>
    %167 = arith.mulf %163, %150 : vector<8x128xf32>
    %168 = arith.mulf %162, %166 : vector<8x128xf32>
    %169 = arith.addf %167, %168 : vector<8x128xf32>
    %170 = math.tanh %169 : vector<8x128xf32>
    %171 = arith.mulf %164, %170 : vector<8x128xf32>
    %172 = vector.broadcast %c4_i32 : i32 to vector<8x1xi32>
    %173 = arith.cmpi sgt, %16, %172 : vector<8x1xi32>
    %174 = vector.shape_cast %173 : vector<8x1xi1> to vector<8x1xi1>
    %175 = vector.broadcast %174 : vector<8x1xi1> to vector<8x128xi1>
    %cst_51 = arith.constant 0.000000e+00 : f32
    %176 = vector.broadcast %cst_51 : f32 to vector<8x128xf32>
    %177 = arith.select %175, %171, %176 : vector<8x128xi1>, vector<8x128xf32>
    %178 = arith.index_cast %c4_i32 : i32 to index
    %c0_52 = arith.constant 0 : index
    %c0_53 = arith.constant 0 : index
    %179 = vector.load %arg13[%178, %c0_52, %c0_53] : memref<12x8x128xf32, #tpu.memory_space<vmem>>, vector<1x8x128xf32>
    %180 = vector.shape_cast %179 : vector<1x8x128xf32> to vector<8x128xf32>
    %181 = vector.shape_cast %177 : vector<8x128xf32> to vector<1x8x128xf32>
    tpu.vector_store %arg13[%178, %c0_52, %c0_53], %181 {strides = array<i32>} : memref<12x8x128xf32, #tpu.memory_space<vmem>>, vector<1x8x128xf32>,
    %182 = arith.select %175, %171, %149 : vector<8x128xi1>, vector<8x128xf32>
    %183 = arith.select %175, %169, %150 : vector<8x128xi1>, vector<8x128xf32>
    %c5_i32 = arith.constant 5 : i32
    %184 = arith.index_cast %c5_i32 : i32 to index
    %c0_54 = arith.constant 0 : index
    %c0_55 = arith.constant 0 : index
    %185 = vector.load %arg12[%184, %c0_54, %c0_55] : memref<12x8x512xf32, #tpu.memory_space<vmem>>, vector<1x8x512xf32>
    %186 = vector.shape_cast %185 : vector<1x8x512xf32> to vector<8x512xf32>
    %cst_56 = arith.constant dense<0.000000e+00> : vector<8x512xf32>
    %187 = tpu.matmul %182, %12, %cst_56 {dimension_numbers = #tpu.dot_dimension_numbers<[1], [0], [0], [1], [0, 0, 1, 1], [], []>} : vector<8x128xf32>, vector<128x512xf32>, vector<8x512xf32> -> vector<8x512xf32>
    %188 = arith.addf %186, %187 : vector<8x512xf32>
    %189 = vector.extract_strided_slice %188 {offsets = [0, 0], sizes = [8, 384], strides = [1, 1]} : vector<8x512xf32> to vector<8x384xf32>
    %190 = arith.negf %189 : vector<8x384xf32>
    %191 = math.exp %190 : vector<8x384xf32>
    %cst_57 = arith.constant 1.000000e+00 : f32
    %192 = vector.broadcast %cst_57 : f32 to vector<8x384xf32>
    %193 = arith.addf %192, %191 : vector<8x384xf32>
    %194 = arith.divf %192, %193 : vector<8x384xf32>
    %195 = vector.extract_strided_slice %194 {offsets = [0, 0], sizes = [8, 128], strides = [1, 1]} : vector<8x384xf32> to vector<8x128xf32>
    %196 = vector.extract_strided_slice %194 {offsets = [0, 128], sizes = [8, 128], strides = [1, 1]} : vector<8x384xf32> to vector<8x128xf32>
    %197 = vector.extract_strided_slice %194 {offsets = [0, 256], sizes = [8, 128], strides = [1, 1]} : vector<8x384xf32> to vector<8x128xf32>
    %198 = vector.extract_strided_slice %188 {offsets = [0, 384], sizes = [8, 128], strides = [1, 1]} : vector<8x512xf32> to vector<8x128xf32>
    %199 = math.tanh %198 : vector<8x128xf32>
    %200 = arith.mulf %196, %183 : vector<8x128xf32>
    %201 = arith.mulf %195, %199 : vector<8x128xf32>
    %202 = arith.addf %200, %201 : vector<8x128xf32>
    %203 = math.tanh %202 : vector<8x128xf32>
    %204 = arith.mulf %197, %203 : vector<8x128xf32>
    %205 = vector.broadcast %c5_i32 : i32 to vector<8x1xi32>
    %206 = arith.cmpi sgt, %16, %205 : vector<8x1xi32>
    %207 = vector.shape_cast %206 : vector<8x1xi1> to vector<8x1xi1>
    %208 = vector.broadcast %207 : vector<8x1xi1> to vector<8x128xi1>
    %cst_58 = arith.constant 0.000000e+00 : f32
    %209 = vector.broadcast %cst_58 : f32 to vector<8x128xf32>
    %210 = arith.select %208, %204, %209 : vector<8x128xi1>, vector<8x128xf32>
    %211 = arith.index_cast %c5_i32 : i32 to index
    %c0_59 = arith.constant 0 : index
    %c0_60 = arith.constant 0 : index
    %212 = vector.load %arg13[%211, %c0_59, %c0_60] : memref<12x8x128xf32, #tpu.memory_space<vmem>>, vector<1x8x128xf32>
    %213 = vector.shape_cast %212 : vector<1x8x128xf32> to vector<8x128xf32>
    %214 = vector.shape_cast %210 : vector<8x128xf32> to vector<1x8x128xf32>
    tpu.vector_store %arg13[%211, %c0_59, %c0_60], %214 {strides = array<i32>} : memref<12x8x128xf32, #tpu.memory_space<vmem>>, vector<1x8x128xf32>,
    %215 = arith.select %208, %204, %182 : vector<8x128xi1>, vector<8x128xf32>
    %216 = arith.select %208, %202, %183 : vector<8x128xi1>, vector<8x128xf32>
    %c6_i32 = arith.constant 6 : i32
    %217 = arith.index_cast %c6_i32 : i32 to index
    %c0_61 = arith.constant 0 : index
    %c0_62 = arith.constant 0 : index
    %218 = vector.load %arg12[%217, %c0_61, %c0_62] : memref<12x8x512xf32, #tpu.memory_space<vmem>>, vector<1x8x512xf32>
    %219 = vector.shape_cast %218 : vector<1x8x512xf32> to vector<8x512xf32>
    %cst_63 = arith.constant dense<0.000000e+00> : vector<8x512xf32>
    %220 = tpu.matmul %215, %12, %cst_63 {dimension_numbers = #tpu.dot_dimension_numbers<[1], [0], [0], [1], [0, 0, 1, 1], [], []>} : vector<8x128xf32>, vector<128x512xf32>, vector<8x512xf32> -> vector<8x512xf32>
    %221 = arith.addf %219, %220 : vector<8x512xf32>
    %222 = vector.extract_strided_slice %221 {offsets = [0, 0], sizes = [8, 384], strides = [1, 1]} : vector<8x512xf32> to vector<8x384xf32>
    %223 = arith.negf %222 : vector<8x384xf32>
    %224 = math.exp %223 : vector<8x384xf32>
    %cst_64 = arith.constant 1.000000e+00 : f32
    %225 = vector.broadcast %cst_64 : f32 to vector<8x384xf32>
    %226 = arith.addf %225, %224 : vector<8x384xf32>
    %227 = arith.divf %225, %226 : vector<8x384xf32>
    %228 = vector.extract_strided_slice %227 {offsets = [0, 0], sizes = [8, 128], strides = [1, 1]} : vector<8x384xf32> to vector<8x128xf32>
    %229 = vector.extract_strided_slice %227 {offsets = [0, 128], sizes = [8, 128], strides = [1, 1]} : vector<8x384xf32> to vector<8x128xf32>
    %230 = vector.extract_strided_slice %227 {offsets = [0, 256], sizes = [8, 128], strides = [1, 1]} : vector<8x384xf32> to vector<8x128xf32>
    %231 = vector.extract_strided_slice %221 {offsets = [0, 384], sizes = [8, 128], strides = [1, 1]} : vector<8x512xf32> to vector<8x128xf32>
    %232 = math.tanh %231 : vector<8x128xf32>
    %233 = arith.mulf %229, %216 : vector<8x128xf32>
    %234 = arith.mulf %228, %232 : vector<8x128xf32>
    %235 = arith.addf %233, %234 : vector<8x128xf32>
    %236 = math.tanh %235 : vector<8x128xf32>
    %237 = arith.mulf %230, %236 : vector<8x128xf32>
    %238 = vector.broadcast %c6_i32 : i32 to vector<8x1xi32>
    %239 = arith.cmpi sgt, %16, %238 : vector<8x1xi32>
    %240 = vector.shape_cast %239 : vector<8x1xi1> to vector<8x1xi1>
    %241 = vector.broadcast %240 : vector<8x1xi1> to vector<8x128xi1>
    %cst_65 = arith.constant 0.000000e+00 : f32
    %242 = vector.broadcast %cst_65 : f32 to vector<8x128xf32>
    %243 = arith.select %241, %237, %242 : vector<8x128xi1>, vector<8x128xf32>
    %244 = arith.index_cast %c6_i32 : i32 to index
    %c0_66 = arith.constant 0 : index
    %c0_67 = arith.constant 0 : index
    %245 = vector.load %arg13[%244, %c0_66, %c0_67] : memref<12x8x128xf32, #tpu.memory_space<vmem>>, vector<1x8x128xf32>
    %246 = vector.shape_cast %245 : vector<1x8x128xf32> to vector<8x128xf32>
    %247 = vector.shape_cast %243 : vector<8x128xf32> to vector<1x8x128xf32>
    tpu.vector_store %arg13[%244, %c0_66, %c0_67], %247 {strides = array<i32>} : memref<12x8x128xf32, #tpu.memory_space<vmem>>, vector<1x8x128xf32>,
    %248 = arith.select %241, %237, %215 : vector<8x128xi1>, vector<8x128xf32>
    %249 = arith.select %241, %235, %216 : vector<8x128xi1>, vector<8x128xf32>
    %c7_i32 = arith.constant 7 : i32
    %250 = arith.index_cast %c7_i32 : i32 to index
    %c0_68 = arith.constant 0 : index
    %c0_69 = arith.constant 0 : index
    %251 = vector.load %arg12[%250, %c0_68, %c0_69] : memref<12x8x512xf32, #tpu.memory_space<vmem>>, vector<1x8x512xf32>
    %252 = vector.shape_cast %251 : vector<1x8x512xf32> to vector<8x512xf32>
    %cst_70 = arith.constant dense<0.000000e+00> : vector<8x512xf32>
    %253 = tpu.matmul %248, %12, %cst_70 {dimension_numbers = #tpu.dot_dimension_numbers<[1], [0], [0], [1], [0, 0, 1, 1], [], []>} : vector<8x128xf32>, vector<128x512xf32>, vector<8x512xf32> -> vector<8x512xf32>
    %254 = arith.addf %252, %253 : vector<8x512xf32>
    %255 = vector.extract_strided_slice %254 {offsets = [0, 0], sizes = [8, 384], strides = [1, 1]} : vector<8x512xf32> to vector<8x384xf32>
    %256 = arith.negf %255 : vector<8x384xf32>
    %257 = math.exp %256 : vector<8x384xf32>
    %cst_71 = arith.constant 1.000000e+00 : f32
    %258 = vector.broadcast %cst_71 : f32 to vector<8x384xf32>
    %259 = arith.addf %258, %257 : vector<8x384xf32>
    %260 = arith.divf %258, %259 : vector<8x384xf32>
    %261 = vector.extract_strided_slice %260 {offsets = [0, 0], sizes = [8, 128], strides = [1, 1]} : vector<8x384xf32> to vector<8x128xf32>
    %262 = vector.extract_strided_slice %260 {offsets = [0, 128], sizes = [8, 128], strides = [1, 1]} : vector<8x384xf32> to vector<8x128xf32>
    %263 = vector.extract_strided_slice %260 {offsets = [0, 256], sizes = [8, 128], strides = [1, 1]} : vector<8x384xf32> to vector<8x128xf32>
    %264 = vector.extract_strided_slice %254 {offsets = [0, 384], sizes = [8, 128], strides = [1, 1]} : vector<8x512xf32> to vector<8x128xf32>
    %265 = math.tanh %264 : vector<8x128xf32>
    %266 = arith.mulf %262, %249 : vector<8x128xf32>
    %267 = arith.mulf %261, %265 : vector<8x128xf32>
    %268 = arith.addf %266, %267 : vector<8x128xf32>
    %269 = math.tanh %268 : vector<8x128xf32>
    %270 = arith.mulf %263, %269 : vector<8x128xf32>
    %271 = vector.broadcast %c7_i32 : i32 to vector<8x1xi32>
    %272 = arith.cmpi sgt, %16, %271 : vector<8x1xi32>
    %273 = vector.shape_cast %272 : vector<8x1xi1> to vector<8x1xi1>
    %274 = vector.broadcast %273 : vector<8x1xi1> to vector<8x128xi1>
    %cst_72 = arith.constant 0.000000e+00 : f32
    %275 = vector.broadcast %cst_72 : f32 to vector<8x128xf32>
    %276 = arith.select %274, %270, %275 : vector<8x128xi1>, vector<8x128xf32>
    %277 = arith.index_cast %c7_i32 : i32 to index
    %c0_73 = arith.constant 0 : index
    %c0_74 = arith.constant 0 : index
    %278 = vector.load %arg13[%277, %c0_73, %c0_74] : memref<12x8x128xf32, #tpu.memory_space<vmem>>, vector<1x8x128xf32>
    %279 = vector.shape_cast %278 : vector<1x8x128xf32> to vector<8x128xf32>
    %280 = vector.shape_cast %276 : vector<8x128xf32> to vector<1x8x128xf32>
    tpu.vector_store %arg13[%277, %c0_73, %c0_74], %280 {strides = array<i32>} : memref<12x8x128xf32, #tpu.memory_space<vmem>>, vector<1x8x128xf32>,
    %281 = arith.select %274, %270, %248 : vector<8x128xi1>, vector<8x128xf32>
    %282 = arith.select %274, %268, %249 : vector<8x128xi1>, vector<8x128xf32>
    %c8_i32 = arith.constant 8 : i32
    %283 = arith.index_cast %c8_i32 : i32 to index
    %c0_75 = arith.constant 0 : index
    %c0_76 = arith.constant 0 : index
    %284 = vector.load %arg12[%283, %c0_75, %c0_76] : memref<12x8x512xf32, #tpu.memory_space<vmem>>, vector<1x8x512xf32>
    %285 = vector.shape_cast %284 : vector<1x8x512xf32> to vector<8x512xf32>
    %cst_77 = arith.constant dense<0.000000e+00> : vector<8x512xf32>
    %286 = tpu.matmul %281, %12, %cst_77 {dimension_numbers = #tpu.dot_dimension_numbers<[1], [0], [0], [1], [0, 0, 1, 1], [], []>} : vector<8x128xf32>, vector<128x512xf32>, vector<8x512xf32> -> vector<8x512xf32>
    %287 = arith.addf %285, %286 : vector<8x512xf32>
    %288 = vector.extract_strided_slice %287 {offsets = [0, 0], sizes = [8, 384], strides = [1, 1]} : vector<8x512xf32> to vector<8x384xf32>
    %289 = arith.negf %288 : vector<8x384xf32>
    %290 = math.exp %289 : vector<8x384xf32>
    %cst_78 = arith.constant 1.000000e+00 : f32
    %291 = vector.broadcast %cst_78 : f32 to vector<8x384xf32>
    %292 = arith.addf %291, %290 : vector<8x384xf32>
    %293 = arith.divf %291, %292 : vector<8x384xf32>
    %294 = vector.extract_strided_slice %293 {offsets = [0, 0], sizes = [8, 128], strides = [1, 1]} : vector<8x384xf32> to vector<8x128xf32>
    %295 = vector.extract_strided_slice %293 {offsets = [0, 128], sizes = [8, 128], strides = [1, 1]} : vector<8x384xf32> to vector<8x128xf32>
    %296 = vector.extract_strided_slice %293 {offsets = [0, 256], sizes = [8, 128], strides = [1, 1]} : vector<8x384xf32> to vector<8x128xf32>
    %297 = vector.extract_strided_slice %287 {offsets = [0, 384], sizes = [8, 128], strides = [1, 1]} : vector<8x512xf32> to vector<8x128xf32>
    %298 = math.tanh %297 : vector<8x128xf32>
    %299 = arith.mulf %295, %282 : vector<8x128xf32>
    %300 = arith.mulf %294, %298 : vector<8x128xf32>
    %301 = arith.addf %299, %300 : vector<8x128xf32>
    %302 = math.tanh %301 : vector<8x128xf32>
    %303 = arith.mulf %296, %302 : vector<8x128xf32>
    %304 = vector.broadcast %c8_i32 : i32 to vector<8x1xi32>
    %305 = arith.cmpi sgt, %16, %304 : vector<8x1xi32>
    %306 = vector.shape_cast %305 : vector<8x1xi1> to vector<8x1xi1>
    %307 = vector.broadcast %306 : vector<8x1xi1> to vector<8x128xi1>
    %cst_79 = arith.constant 0.000000e+00 : f32
    %308 = vector.broadcast %cst_79 : f32 to vector<8x128xf32>
    %309 = arith.select %307, %303, %308 : vector<8x128xi1>, vector<8x128xf32>
    %310 = arith.index_cast %c8_i32 : i32 to index
    %c0_80 = arith.constant 0 : index
    %c0_81 = arith.constant 0 : index
    %311 = vector.load %arg13[%310, %c0_80, %c0_81] : memref<12x8x128xf32, #tpu.memory_space<vmem>>, vector<1x8x128xf32>
    %312 = vector.shape_cast %311 : vector<1x8x128xf32> to vector<8x128xf32>
    %313 = vector.shape_cast %309 : vector<8x128xf32> to vector<1x8x128xf32>
    tpu.vector_store %arg13[%310, %c0_80, %c0_81], %313 {strides = array<i32>} : memref<12x8x128xf32, #tpu.memory_space<vmem>>, vector<1x8x128xf32>,
    %314 = arith.select %307, %303, %281 : vector<8x128xi1>, vector<8x128xf32>
    %315 = arith.select %307, %301, %282 : vector<8x128xi1>, vector<8x128xf32>
    %c9_i32 = arith.constant 9 : i32
    %316 = arith.index_cast %c9_i32 : i32 to index
    %c0_82 = arith.constant 0 : index
    %c0_83 = arith.constant 0 : index
    %317 = vector.load %arg12[%316, %c0_82, %c0_83] : memref<12x8x512xf32, #tpu.memory_space<vmem>>, vector<1x8x512xf32>
    %318 = vector.shape_cast %317 : vector<1x8x512xf32> to vector<8x512xf32>
    %cst_84 = arith.constant dense<0.000000e+00> : vector<8x512xf32>
    %319 = tpu.matmul %314, %12, %cst_84 {dimension_numbers = #tpu.dot_dimension_numbers<[1], [0], [0], [1], [0, 0, 1, 1], [], []>} : vector<8x128xf32>, vector<128x512xf32>, vector<8x512xf32> -> vector<8x512xf32>
    %320 = arith.addf %318, %319 : vector<8x512xf32>
    %321 = vector.extract_strided_slice %320 {offsets = [0, 0], sizes = [8, 384], strides = [1, 1]} : vector<8x512xf32> to vector<8x384xf32>
    %322 = arith.negf %321 : vector<8x384xf32>
    %323 = math.exp %322 : vector<8x384xf32>
    %cst_85 = arith.constant 1.000000e+00 : f32
    %324 = vector.broadcast %cst_85 : f32 to vector<8x384xf32>
    %325 = arith.addf %324, %323 : vector<8x384xf32>
    %326 = arith.divf %324, %325 : vector<8x384xf32>
    %327 = vector.extract_strided_slice %326 {offsets = [0, 0], sizes = [8, 128], strides = [1, 1]} : vector<8x384xf32> to vector<8x128xf32>
    %328 = vector.extract_strided_slice %326 {offsets = [0, 128], sizes = [8, 128], strides = [1, 1]} : vector<8x384xf32> to vector<8x128xf32>
    %329 = vector.extract_strided_slice %326 {offsets = [0, 256], sizes = [8, 128], strides = [1, 1]} : vector<8x384xf32> to vector<8x128xf32>
    %330 = vector.extract_strided_slice %320 {offsets = [0, 384], sizes = [8, 128], strides = [1, 1]} : vector<8x512xf32> to vector<8x128xf32>
    %331 = math.tanh %330 : vector<8x128xf32>
    %332 = arith.mulf %328, %315 : vector<8x128xf32>
    %333 = arith.mulf %327, %331 : vector<8x128xf32>
    %334 = arith.addf %332, %333 : vector<8x128xf32>
    %335 = math.tanh %334 : vector<8x128xf32>
    %336 = arith.mulf %329, %335 : vector<8x128xf32>
    %337 = vector.broadcast %c9_i32 : i32 to vector<8x1xi32>
    %338 = arith.cmpi sgt, %16, %337 : vector<8x1xi32>
    %339 = vector.shape_cast %338 : vector<8x1xi1> to vector<8x1xi1>
    %340 = vector.broadcast %339 : vector<8x1xi1> to vector<8x128xi1>
    %cst_86 = arith.constant 0.000000e+00 : f32
    %341 = vector.broadcast %cst_86 : f32 to vector<8x128xf32>
    %342 = arith.select %340, %336, %341 : vector<8x128xi1>, vector<8x128xf32>
    %343 = arith.index_cast %c9_i32 : i32 to index
    %c0_87 = arith.constant 0 : index
    %c0_88 = arith.constant 0 : index
    %344 = vector.load %arg13[%343, %c0_87, %c0_88] : memref<12x8x128xf32, #tpu.memory_space<vmem>>, vector<1x8x128xf32>
    %345 = vector.shape_cast %344 : vector<1x8x128xf32> to vector<8x128xf32>
    %346 = vector.shape_cast %342 : vector<8x128xf32> to vector<1x8x128xf32>
    tpu.vector_store %arg13[%343, %c0_87, %c0_88], %346 {strides = array<i32>} : memref<12x8x128xf32, #tpu.memory_space<vmem>>, vector<1x8x128xf32>,
    %347 = arith.select %340, %336, %314 : vector<8x128xi1>, vector<8x128xf32>
    %348 = arith.select %340, %334, %315 : vector<8x128xi1>, vector<8x128xf32>
    %c10_i32 = arith.constant 10 : i32
    %349 = arith.index_cast %c10_i32 : i32 to index
    %c0_89 = arith.constant 0 : index
    %c0_90 = arith.constant 0 : index
    %350 = vector.load %arg12[%349, %c0_89, %c0_90] : memref<12x8x512xf32, #tpu.memory_space<vmem>>, vector<1x8x512xf32>
    %351 = vector.shape_cast %350 : vector<1x8x512xf32> to vector<8x512xf32>
    %cst_91 = arith.constant dense<0.000000e+00> : vector<8x512xf32>
    %352 = tpu.matmul %347, %12, %cst_91 {dimension_numbers = #tpu.dot_dimension_numbers<[1], [0], [0], [1], [0, 0, 1, 1], [], []>} : vector<8x128xf32>, vector<128x512xf32>, vector<8x512xf32> -> vector<8x512xf32>
    %353 = arith.addf %351, %352 : vector<8x512xf32>
    %354 = vector.extract_strided_slice %353 {offsets = [0, 0], sizes = [8, 384], strides = [1, 1]} : vector<8x512xf32> to vector<8x384xf32>
    %355 = arith.negf %354 : vector<8x384xf32>
    %356 = math.exp %355 : vector<8x384xf32>
    %cst_92 = arith.constant 1.000000e+00 : f32
    %357 = vector.broadcast %cst_92 : f32 to vector<8x384xf32>
    %358 = arith.addf %357, %356 : vector<8x384xf32>
    %359 = arith.divf %357, %358 : vector<8x384xf32>
    %360 = vector.extract_strided_slice %359 {offsets = [0, 0], sizes = [8, 128], strides = [1, 1]} : vector<8x384xf32> to vector<8x128xf32>
    %361 = vector.extract_strided_slice %359 {offsets = [0, 128], sizes = [8, 128], strides = [1, 1]} : vector<8x384xf32> to vector<8x128xf32>
    %362 = vector.extract_strided_slice %359 {offsets = [0, 256], sizes = [8, 128], strides = [1, 1]} : vector<8x384xf32> to vector<8x128xf32>
    %363 = vector.extract_strided_slice %353 {offsets = [0, 384], sizes = [8, 128], strides = [1, 1]} : vector<8x512xf32> to vector<8x128xf32>
    %364 = math.tanh %363 : vector<8x128xf32>
    %365 = arith.mulf %361, %348 : vector<8x128xf32>
    %366 = arith.mulf %360, %364 : vector<8x128xf32>
    %367 = arith.addf %365, %366 : vector<8x128xf32>
    %368 = math.tanh %367 : vector<8x128xf32>
    %369 = arith.mulf %362, %368 : vector<8x128xf32>
    %370 = vector.broadcast %c10_i32 : i32 to vector<8x1xi32>
    %371 = arith.cmpi sgt, %16, %370 : vector<8x1xi32>
    %372 = vector.shape_cast %371 : vector<8x1xi1> to vector<8x1xi1>
    %373 = vector.broadcast %372 : vector<8x1xi1> to vector<8x128xi1>
    %cst_93 = arith.constant 0.000000e+00 : f32
    %374 = vector.broadcast %cst_93 : f32 to vector<8x128xf32>
    %375 = arith.select %373, %369, %374 : vector<8x128xi1>, vector<8x128xf32>
    %376 = arith.index_cast %c10_i32 : i32 to index
    %c0_94 = arith.constant 0 : index
    %c0_95 = arith.constant 0 : index
    %377 = vector.load %arg13[%376, %c0_94, %c0_95] : memref<12x8x128xf32, #tpu.memory_space<vmem>>, vector<1x8x128xf32>
    %378 = vector.shape_cast %377 : vector<1x8x128xf32> to vector<8x128xf32>
    %379 = vector.shape_cast %375 : vector<8x128xf32> to vector<1x8x128xf32>
    tpu.vector_store %arg13[%376, %c0_94, %c0_95], %379 {strides = array<i32>} : memref<12x8x128xf32, #tpu.memory_space<vmem>>, vector<1x8x128xf32>,
    %380 = arith.select %373, %369, %347 : vector<8x128xi1>, vector<8x128xf32>
    %381 = arith.select %373, %367, %348 : vector<8x128xi1>, vector<8x128xf32>
    %c11_i32 = arith.constant 11 : i32
    %382 = arith.index_cast %c11_i32 : i32 to index
    %c0_96 = arith.constant 0 : index
    %c0_97 = arith.constant 0 : index
    %383 = vector.load %arg12[%382, %c0_96, %c0_97] : memref<12x8x512xf32, #tpu.memory_space<vmem>>, vector<1x8x512xf32>
    %384 = vector.shape_cast %383 : vector<1x8x512xf32> to vector<8x512xf32>
    %cst_98 = arith.constant dense<0.000000e+00> : vector<8x512xf32>
    %385 = tpu.matmul %380, %12, %cst_98 {dimension_numbers = #tpu.dot_dimension_numbers<[1], [0], [0], [1], [0, 0, 1, 1], [], []>} : vector<8x128xf32>, vector<128x512xf32>, vector<8x512xf32> -> vector<8x512xf32>
    %386 = arith.addf %384, %385 : vector<8x512xf32>
    %387 = vector.extract_strided_slice %386 {offsets = [0, 0], sizes = [8, 384], strides = [1, 1]} : vector<8x512xf32> to vector<8x384xf32>
    %388 = arith.negf %387 : vector<8x384xf32>
    %389 = math.exp %388 : vector<8x384xf32>
    %cst_99 = arith.constant 1.000000e+00 : f32
    %390 = vector.broadcast %cst_99 : f32 to vector<8x384xf32>
    %391 = arith.addf %390, %389 : vector<8x384xf32>
    %392 = arith.divf %390, %391 : vector<8x384xf32>
    %393 = vector.extract_strided_slice %392 {offsets = [0, 0], sizes = [8, 128], strides = [1, 1]} : vector<8x384xf32> to vector<8x128xf32>
    %394 = vector.extract_strided_slice %392 {offsets = [0, 128], sizes = [8, 128], strides = [1, 1]} : vector<8x384xf32> to vector<8x128xf32>
    %395 = vector.extract_strided_slice %392 {offsets = [0, 256], sizes = [8, 128], strides = [1, 1]} : vector<8x384xf32> to vector<8x128xf32>
    %396 = vector.extract_strided_slice %386 {offsets = [0, 384], sizes = [8, 128], strides = [1, 1]} : vector<8x512xf32> to vector<8x128xf32>
    %397 = math.tanh %396 : vector<8x128xf32>
    %398 = arith.mulf %394, %381 : vector<8x128xf32>
    %399 = arith.mulf %393, %397 : vector<8x128xf32>
    %400 = arith.addf %398, %399 : vector<8x128xf32>
    %401 = math.tanh %400 : vector<8x128xf32>
    %402 = arith.mulf %395, %401 : vector<8x128xf32>
    %403 = vector.broadcast %c11_i32 : i32 to vector<8x1xi32>
    %404 = arith.cmpi sgt, %16, %403 : vector<8x1xi32>
    %405 = vector.shape_cast %404 : vector<8x1xi1> to vector<8x1xi1>
    %406 = vector.broadcast %405 : vector<8x1xi1> to vector<8x128xi1>
    %cst_100 = arith.constant 0.000000e+00 : f32
    %407 = vector.broadcast %cst_100 : f32 to vector<8x128xf32>
    %408 = arith.select %406, %402, %407 : vector<8x128xi1>, vector<8x128xf32>
    %409 = arith.index_cast %c11_i32 : i32 to index
    %c0_101 = arith.constant 0 : index
    %c0_102 = arith.constant 0 : index
    %410 = vector.load %arg13[%409, %c0_101, %c0_102] : memref<12x8x128xf32, #tpu.memory_space<vmem>>, vector<1x8x128xf32>
    %411 = vector.shape_cast %410 : vector<1x8x128xf32> to vector<8x128xf32>
    %412 = vector.shape_cast %408 : vector<8x128xf32> to vector<1x8x128xf32>
    tpu.vector_store %arg13[%409, %c0_101, %c0_102], %412 {strides = array<i32>} : memref<12x8x128xf32, #tpu.memory_space<vmem>>, vector<1x8x128xf32>,
    %413 = arith.select %406, %402, %380 : vector<8x128xi1>, vector<8x128xf32>
    %414 = arith.select %406, %400, %381 : vector<8x128xi1>, vector<8x128xf32>
    %c12_i32_103 = arith.constant 12 : i32
    %c0_104 = arith.constant 0 : index
    %c0_105 = arith.constant 0 : index
    %415 = vector.load %arg10[%c0_104, %c0_105] : memref<8x128xf32, #tpu.memory_space<vmem>>, vector<8x128xf32>
    tpu.vector_store %arg10[%c0_104, %c0_105], %413 {strides = array<i32>} : memref<8x128xf32, #tpu.memory_space<vmem>>, vector<8x128xf32>,
    %c0_106 = arith.constant 0 : index
    %c0_107 = arith.constant 0 : index
    %416 = vector.load %arg11[%c0_106, %c0_107] : memref<8x128xf32, #tpu.memory_space<vmem>>, vector<8x128xf32>
    tpu.vector_store %arg11[%c0_106, %c0_107], %414 {strides = array<i32>} : memref<8x128xf32, #tpu.memory_space<vmem>>, vector<8x128xf32>,
    %c0_108 = arith.constant 0 : index
    %c0_109 = arith.constant 0 : index
    %c0_110 = arith.constant 0 : index
    %417 = vector.load %arg13[%c0_108, %c0_109, %c0_110] : memref<12x8x128xf32, #tpu.memory_space<vmem>>, vector<1x8x128xf32>
    %418 = vector.shape_cast %417 : vector<1x8x128xf32> to vector<8x128xf32>
    %c0_111 = arith.constant 0 : index
    %c0_112 = arith.constant 0 : index
    %c0_113 = arith.constant 0 : index
    %419 = vector.load %arg7[%c0_111, %c0_112, %c0_113] : memref<8x12x128xf32, #tpu.memory_space<vmem>>, vector<8x1x128xf32>
    %420 = vector.shape_cast %419 : vector<8x1x128xf32> to vector<8x128xf32>
    %421 = vector.shape_cast %418 : vector<8x128xf32> to vector<8x1x128xf32>
    tpu.vector_store %arg7[%c0_111, %c0_112, %c0_113], %421 {strides = array<i32>} : memref<8x12x128xf32, #tpu.memory_space<vmem>>, vector<8x1x128xf32>,
    %c1 = arith.constant 1 : index
    %c0_114 = arith.constant 0 : index
    %c0_115 = arith.constant 0 : index
    %422 = vector.load %arg13[%c1, %c0_114, %c0_115] : memref<12x8x128xf32, #tpu.memory_space<vmem>>, vector<1x8x128xf32>
    %423 = vector.shape_cast %422 : vector<1x8x128xf32> to vector<8x128xf32>
    %c0_116 = arith.constant 0 : index
    %c1_117 = arith.constant 1 : index
    %c0_118 = arith.constant 0 : index
    %424 = vector.load %arg7[%c0_116, %c1_117, %c0_118] : memref<8x12x128xf32, #tpu.memory_space<vmem>>, vector<8x1x128xf32>
    %425 = vector.shape_cast %424 : vector<8x1x128xf32> to vector<8x128xf32>
    %426 = vector.shape_cast %423 : vector<8x128xf32> to vector<8x1x128xf32>
    tpu.vector_store %arg7[%c0_116, %c1_117, %c0_118], %426 {strides = array<i32>} : memref<8x12x128xf32, #tpu.memory_space<vmem>>, vector<8x1x128xf32>,
    %c2 = arith.constant 2 : index
    %c0_119 = arith.constant 0 : index
    %c0_120 = arith.constant 0 : index
    %427 = vector.load %arg13[%c2, %c0_119, %c0_120] : memref<12x8x128xf32, #tpu.memory_space<vmem>>, vector<1x8x128xf32>
    %428 = vector.shape_cast %427 : vector<1x8x128xf32> to vector<8x128xf32>
    %c0_121 = arith.constant 0 : index
    %c2_122 = arith.constant 2 : index
    %c0_123 = arith.constant 0 : index
    %429 = vector.load %arg7[%c0_121, %c2_122, %c0_123] : memref<8x12x128xf32, #tpu.memory_space<vmem>>, vector<8x1x128xf32>
    %430 = vector.shape_cast %429 : vector<8x1x128xf32> to vector<8x128xf32>
    %431 = vector.shape_cast %428 : vector<8x128xf32> to vector<8x1x128xf32>
    tpu.vector_store %arg7[%c0_121, %c2_122, %c0_123], %431 {strides = array<i32>} : memref<8x12x128xf32, #tpu.memory_space<vmem>>, vector<8x1x128xf32>,
    %c3 = arith.constant 3 : index
    %c0_124 = arith.constant 0 : index
    %c0_125 = arith.constant 0 : index
    %432 = vector.load %arg13[%c3, %c0_124, %c0_125] : memref<12x8x128xf32, #tpu.memory_space<vmem>>, vector<1x8x128xf32>
    %433 = vector.shape_cast %432 : vector<1x8x128xf32> to vector<8x128xf32>
    %c0_126 = arith.constant 0 : index
    %c3_127 = arith.constant 3 : index
    %c0_128 = arith.constant 0 : index
    %434 = vector.load %arg7[%c0_126, %c3_127, %c0_128] : memref<8x12x128xf32, #tpu.memory_space<vmem>>, vector<8x1x128xf32>
    %435 = vector.shape_cast %434 : vector<8x1x128xf32> to vector<8x128xf32>
    %436 = vector.shape_cast %433 : vector<8x128xf32> to vector<8x1x128xf32>
    tpu.vector_store %arg7[%c0_126, %c3_127, %c0_128], %436 {strides = array<i32>} : memref<8x12x128xf32, #tpu.memory_space<vmem>>, vector<8x1x128xf32>,
    %c4 = arith.constant 4 : index
    %c0_129 = arith.constant 0 : index
    %c0_130 = arith.constant 0 : index
    %437 = vector.load %arg13[%c4, %c0_129, %c0_130] : memref<12x8x128xf32, #tpu.memory_space<vmem>>, vector<1x8x128xf32>
    %438 = vector.shape_cast %437 : vector<1x8x128xf32> to vector<8x128xf32>
    %c0_131 = arith.constant 0 : index
    %c4_132 = arith.constant 4 : index
    %c0_133 = arith.constant 0 : index
    %439 = vector.load %arg7[%c0_131, %c4_132, %c0_133] : memref<8x12x128xf32, #tpu.memory_space<vmem>>, vector<8x1x128xf32>
    %440 = vector.shape_cast %439 : vector<8x1x128xf32> to vector<8x128xf32>
    %441 = vector.shape_cast %438 : vector<8x128xf32> to vector<8x1x128xf32>
    tpu.vector_store %arg7[%c0_131, %c4_132, %c0_133], %441 {strides = array<i32>} : memref<8x12x128xf32, #tpu.memory_space<vmem>>, vector<8x1x128xf32>,
    %c5 = arith.constant 5 : index
    %c0_134 = arith.constant 0 : index
    %c0_135 = arith.constant 0 : index
    %442 = vector.load %arg13[%c5, %c0_134, %c0_135] : memref<12x8x128xf32, #tpu.memory_space<vmem>>, vector<1x8x128xf32>
    %443 = vector.shape_cast %442 : vector<1x8x128xf32> to vector<8x128xf32>
    %c0_136 = arith.constant 0 : index
    %c5_137 = arith.constant 5 : index
    %c0_138 = arith.constant 0 : index
    %444 = vector.load %arg7[%c0_136, %c5_137, %c0_138] : memref<8x12x128xf32, #tpu.memory_space<vmem>>, vector<8x1x128xf32>
    %445 = vector.shape_cast %444 : vector<8x1x128xf32> to vector<8x128xf32>
    %446 = vector.shape_cast %443 : vector<8x128xf32> to vector<8x1x128xf32>
    tpu.vector_store %arg7[%c0_136, %c5_137, %c0_138], %446 {strides = array<i32>} : memref<8x12x128xf32, #tpu.memory_space<vmem>>, vector<8x1x128xf32>,
    %c6 = arith.constant 6 : index
    %c0_139 = arith.constant 0 : index
    %c0_140 = arith.constant 0 : index
    %447 = vector.load %arg13[%c6, %c0_139, %c0_140] : memref<12x8x128xf32, #tpu.memory_space<vmem>>, vector<1x8x128xf32>
    %448 = vector.shape_cast %447 : vector<1x8x128xf32> to vector<8x128xf32>
    %c0_141 = arith.constant 0 : index
    %c6_142 = arith.constant 6 : index
    %c0_143 = arith.constant 0 : index
    %449 = vector.load %arg7[%c0_141, %c6_142, %c0_143] : memref<8x12x128xf32, #tpu.memory_space<vmem>>, vector<8x1x128xf32>
    %450 = vector.shape_cast %449 : vector<8x1x128xf32> to vector<8x128xf32>
    %451 = vector.shape_cast %448 : vector<8x128xf32> to vector<8x1x128xf32>
    tpu.vector_store %arg7[%c0_141, %c6_142, %c0_143], %451 {strides = array<i32>} : memref<8x12x128xf32, #tpu.memory_space<vmem>>, vector<8x1x128xf32>,
    %c7 = arith.constant 7 : index
    %c0_144 = arith.constant 0 : index
    %c0_145 = arith.constant 0 : index
    %452 = vector.load %arg13[%c7, %c0_144, %c0_145] : memref<12x8x128xf32, #tpu.memory_space<vmem>>, vector<1x8x128xf32>
    %453 = vector.shape_cast %452 : vector<1x8x128xf32> to vector<8x128xf32>
    %c0_146 = arith.constant 0 : index
    %c7_147 = arith.constant 7 : index
    %c0_148 = arith.constant 0 : index
    %454 = vector.load %arg7[%c0_146, %c7_147, %c0_148] : memref<8x12x128xf32, #tpu.memory_space<vmem>>, vector<8x1x128xf32>
    %455 = vector.shape_cast %454 : vector<8x1x128xf32> to vector<8x128xf32>
    %456 = vector.shape_cast %453 : vector<8x128xf32> to vector<8x1x128xf32>
    tpu.vector_store %arg7[%c0_146, %c7_147, %c0_148], %456 {strides = array<i32>} : memref<8x12x128xf32, #tpu.memory_space<vmem>>, vector<8x1x128xf32>,
    %c8 = arith.constant 8 : index
    %c0_149 = arith.constant 0 : index
    %c0_150 = arith.constant 0 : index
    %457 = vector.load %arg13[%c8, %c0_149, %c0_150] : memref<12x8x128xf32, #tpu.memory_space<vmem>>, vector<1x8x128xf32>
    %458 = vector.shape_cast %457 : vector<1x8x128xf32> to vector<8x128xf32>
    %c0_151 = arith.constant 0 : index
    %c8_152 = arith.constant 8 : index
    %c0_153 = arith.constant 0 : index
    %459 = vector.load %arg7[%c0_151, %c8_152, %c0_153] : memref<8x12x128xf32, #tpu.memory_space<vmem>>, vector<8x1x128xf32>
    %460 = vector.shape_cast %459 : vector<8x1x128xf32> to vector<8x128xf32>
    %461 = vector.shape_cast %458 : vector<8x128xf32> to vector<8x1x128xf32>
    tpu.vector_store %arg7[%c0_151, %c8_152, %c0_153], %461 {strides = array<i32>} : memref<8x12x128xf32, #tpu.memory_space<vmem>>, vector<8x1x128xf32>,
    %c9 = arith.constant 9 : index
    %c0_154 = arith.constant 0 : index
    %c0_155 = arith.constant 0 : index
    %462 = vector.load %arg13[%c9, %c0_154, %c0_155] : memref<12x8x128xf32, #tpu.memory_space<vmem>>, vector<1x8x128xf32>
    %463 = vector.shape_cast %462 : vector<1x8x128xf32> to vector<8x128xf32>
    %c0_156 = arith.constant 0 : index
    %c9_157 = arith.constant 9 : index
    %c0_158 = arith.constant 0 : index
    %464 = vector.load %arg7[%c0_156, %c9_157, %c0_158] : memref<8x12x128xf32, #tpu.memory_space<vmem>>, vector<8x1x128xf32>
    %465 = vector.shape_cast %464 : vector<8x1x128xf32> to vector<8x128xf32>
    %466 = vector.shape_cast %463 : vector<8x128xf32> to vector<8x1x128xf32>
    tpu.vector_store %arg7[%c0_156, %c9_157, %c0_158], %466 {strides = array<i32>} : memref<8x12x128xf32, #tpu.memory_space<vmem>>, vector<8x1x128xf32>,
    %c10 = arith.constant 10 : index
    %c0_159 = arith.constant 0 : index
    %c0_160 = arith.constant 0 : index
    %467 = vector.load %arg13[%c10, %c0_159, %c0_160] : memref<12x8x128xf32, #tpu.memory_space<vmem>>, vector<1x8x128xf32>
    %468 = vector.shape_cast %467 : vector<1x8x128xf32> to vector<8x128xf32>
    %c0_161 = arith.constant 0 : index
    %c10_162 = arith.constant 10 : index
    %c0_163 = arith.constant 0 : index
    %469 = vector.load %arg7[%c0_161, %c10_162, %c0_163] : memref<8x12x128xf32, #tpu.memory_space<vmem>>, vector<8x1x128xf32>
    %470 = vector.shape_cast %469 : vector<8x1x128xf32> to vector<8x128xf32>
    %471 = vector.shape_cast %468 : vector<8x128xf32> to vector<8x1x128xf32>
    tpu.vector_store %arg7[%c0_161, %c10_162, %c0_163], %471 {strides = array<i32>} : memref<8x12x128xf32, #tpu.memory_space<vmem>>, vector<8x1x128xf32>,
    %c11 = arith.constant 11 : index
    %c0_164 = arith.constant 0 : index
    %c0_165 = arith.constant 0 : index
    %472 = vector.load %arg13[%c11, %c0_164, %c0_165] : memref<12x8x128xf32, #tpu.memory_space<vmem>>, vector<1x8x128xf32>
    %473 = vector.shape_cast %472 : vector<1x8x128xf32> to vector<8x128xf32>
    %c0_166 = arith.constant 0 : index
    %c11_167 = arith.constant 11 : index
    %c0_168 = arith.constant 0 : index
    %474 = vector.load %arg7[%c0_166, %c11_167, %c0_168] : memref<8x12x128xf32, #tpu.memory_space<vmem>>, vector<8x1x128xf32>
    %475 = vector.shape_cast %474 : vector<8x1x128xf32> to vector<8x128xf32>
    %476 = vector.shape_cast %473 : vector<8x128xf32> to vector<8x1x128xf32>
    tpu.vector_store %arg7[%c0_166, %c11_167, %c0_168], %476 {strides = array<i32>} : memref<8x12x128xf32, #tpu.memory_space<vmem>>, vector<8x1x128xf32>,
    %c0_i32_169 = arith.constant 0 : i32
    %477 = arith.cmpi eq, %arg1, %c0_i32_169 : i32
    %478 = arith.extui %477 : i1 to i32
    %c0_i32_170 = arith.constant 0 : i32
    %479 = arith.cmpi ne, %478, %c0_i32_170 : i32
    scf.if %479 {
      %c0_171 = arith.constant 0 : index
      %c0_172 = arith.constant 0 : index
      %480 = vector.load %arg8[%c0_171, %c0_172] : memref<8x128xf32, #tpu.memory_space<vmem>>, vector<8x128xf32>
      tpu.vector_store %arg8[%c0_171, %c0_172], %413 {strides = array<i32>} : memref<8x128xf32, #tpu.memory_space<vmem>>, vector<8x128xf32>,
      %c0_173 = arith.constant 0 : index
      %c0_174 = arith.constant 0 : index
      %481 = vector.load %arg9[%c0_173, %c0_174] : memref<8x128xf32, #tpu.memory_space<vmem>>, vector<8x128xf32>
      tpu.vector_store %arg9[%c0_173, %c0_174], %414 {strides = array<i32>} : memref<8x128xf32, #tpu.memory_space<vmem>>, vector<8x128xf32>,
    } else {
    }
    return
  }
  func.func @transform_0(%arg0: i32, %arg1: i32) -> (i32, i32) {
    %c0_i32 = arith.constant 0 : i32
    %c0_i32_0 = arith.constant 0 : i32
    return %arg0, %c0_i32 : i32, i32
  }
  func.func @transform_1(%arg0: i32, %arg1: i32) -> (i32, i32, i32) {
    %c0_i32 = arith.constant 0 : i32
    %c0_i32_0 = arith.constant 0 : i32
    return %arg1, %arg0, %c0_i32 : i32, i32, i32
  }
  func.func @transform_2(%arg0: i32, %arg1: i32) -> (i32, i32) {
    %c0_i32 = arith.constant 0 : i32
    %c0_i32_0 = arith.constant 0 : i32
    %c0_i32_1 = arith.constant 0 : i32
    return %c0_i32, %c0_i32_0 : i32, i32
  }
  func.func @transform_3(%arg0: i32, %arg1: i32) -> (i32, i32) {
    %c0_i32 = arith.constant 0 : i32
    %c0_i32_0 = arith.constant 0 : i32
    %c0_i32_1 = arith.constant 0 : i32
    return %c0_i32, %c0_i32_0 : i32, i32
  }
  func.func @transform_4(%arg0: i32, %arg1: i32) -> (i32, i32) {
    %c0_i32 = arith.constant 0 : i32
    %c0_i32_0 = arith.constant 0 : i32
    %c0_i32_1 = arith.constant 0 : i32
    return %c0_i32, %c0_i32_0 : i32, i32
  }
  func.func @transform_5(%arg0: i32, %arg1: i32) -> (i32, i32, i32) {
    %c0_i32 = arith.constant 0 : i32
    %c0_i32_0 = arith.constant 0 : i32
    return %arg0, %arg1, %c0_i32 : i32, i32, i32
  }
  func.func @transform_6(%arg0: i32, %arg1: i32) -> (i32, i32) {
    %c0_i32 = arith.constant 0 : i32
    %c0_i32_0 = arith.constant 0 : i32
    return %arg0, %c0_i32 : i32, i32
  }
  func.func @transform_7(%arg0: i32, %arg1: i32) -> (i32, i32) {
    %c0_i32 = arith.constant 0 : i32
    %c0_i32_0 = arith.constant 0 : i32
    return %arg0, %c0_i32 : i32, i32
  }
}

</mosaic_0001>

<llo_original>
// kernel: tpu_custom_call.1
$region0: #{tpu_custom_call.1}
  #allocation0 [shape = 'u32[]', space=smem, size = 0x4, offset = 0x4, fixed_abs, tag = 'smem constant byte address 0x4 - core index']
  #allocation1 [shape = 'u32[144,128]{1,0:T(1,128)}', space=vmem, size = 0x12000, scoped, tag = 'internal scratch']
  #allocation2 [shape = 'f32[8,128]{1,0:T(8,128)}', space=vmem, size = 0x1000, scoped, tag = 'scratch operand']
  #allocation3 [shape = 'f32[8,128]{1,0:T(8,128)}', space=vmem, size = 0x1000, scoped, tag = 'scratch operand']
  #allocation4 [shape = 'f32[12,8,512]{2,1,0:T(8,128)}', space=vmem, size = 0x30000, scoped, tag = 'scratch operand']
  #allocation5 [shape = 'f32[12,8,128]{2,1,0:T(8,128)}', space=vmem, size = 0xc000, scoped, tag = 'scratch operand']
  %s0 = inlined_call_operand.vmem [shape: s32[8,1], index: 0, kind: input, shape index: {}]
  %s1 = inlined_call_operand.hbm [shape: f32[12,8,32], index: 1, kind: input, shape index: {}]
  %s2 = inlined_call_operand.hbm [shape: f32[32,512], index: 2, kind: input, shape index: {}]
  %s3 = inlined_call_operand.hbm [shape: f32[128,512], index: 3, kind: input, shape index: {}]
  %s4 = inlined_call_operand.vmem [shape: f32[1,512], index: 4, kind: input, shape index: {}]
  %s5 = inlined_call_operand.vmem [shape: f32[8,12,128], index: 5, kind: output, shape index: {0}]
  %s6 = inlined_call_operand.hbm [shape: f32[8,128], index: 6, kind: output, shape index: {1}]
  %s7 = inlined_call_operand.hbm [shape: f32[8,128], index: 7, kind: output, shape index: {2}]
  %8 = xla_tuple %s5, %s6, %s7
  %s9 = sld [smem:[#allocation0]]
  $region66: #{tpu_custom_call.1} parent=0
    _
  %s11 = ssub.s32 1, %s9
  %s12 = scalar_select 0, %s11, %s9
  $region1: #{tpu_custom_call.1} parent=0
    #allocation6 [shape = 'u8[49152]{0}', space=vmem, size = 0xc000, scoped, tag = 'input window, operand 1, single buffered']
    #allocation7 [shape = 's32[1]{0}', space=sflag, size = 0x4, scoped, tag = 'scoped memory for tpu_custom_call.1']
    #allocation8 [shape = 's32[1]{0}', space=sflag, size = 0x4, scoped, tag = 'scoped memory for tpu_custom_call.1']
    #allocation9 [shape = 'u8[65536]{0}', space=vmem, size = 0x10000, scoped, tag = 'input window, operand 2, single buffered']
    #allocation10 [shape = 's32[1]{0}', space=sflag, size = 0x4, scoped, tag = 'scoped memory for tpu_custom_call.1']
    #allocation11 [shape = 'u8[262144]{0}', space=vmem, size = 0x40000, scoped, tag = 'input window, operand 3, single buffered']
    #allocation12 [shape = 'u8[4096]{0}', space=vmem, size = 0x1000, scoped, tag = 'output window, operand 1, single buffered']
    #allocation13 [shape = 'u8[4096]{0}', space=vmem, size = 0x1000, scoped, tag = 'output window, operand 2, single buffered']
    #allocation14 [shape = 's32[1]{0}', space=sflag, size = 0x4, scoped, tag = 'scoped memory for tpu_custom_call.1']
    %13 = vsyncpa [#allocation7], 0
    %14 = vsyncpa [#allocation10], 0
    %15 = vsyncpa [#allocation8], 0
    %16 = vsyncpa [#allocation14], 0
    // Predicated region
    $region2: #{tpu_custom_call.1} parent=1 // pred_check
      _
    $region3: #{tpu_custom_call.1} parent=1 // pred_check_branch
      %18 = sbr.rel (0) target = $region5
    $region4: #{tpu_custom_call.1} parent=1 // pred_region
      _
    $region5: #{tpu_custom_call.1} parent=1 // pred_fallthru
      _
    // Predicated region
    $region6: #{tpu_custom_call.1} parent=1 // pred_check
      _
    $region7: #{tpu_custom_call.1} parent=1 // pred_check_branch
      %20 = sbr.rel (0) target = $region9
    $region8: #{tpu_custom_call.1} parent=1 // pred_region
      %s22 = ssub.s32 1536, 1536
      %23 = vsyncadd [#allocation7], %s22
      %s24 = sshll.u32 [#allocation6], 4
      %s25 = int_to_ptr.vmem [resolvable:$true] %s24
      %30 = dma.hbm_to_vmem [thread:$0]  %s1, 1536, %s25, [#allocation7], 128, 128, 8
    $region9: #{tpu_custom_call.1} parent=1 // pred_fallthru
      _
    // Predicated region
    $region10: #{tpu_custom_call.1} parent=1 // pred_check
      _
    $region11: #{tpu_custom_call.1} parent=1 // pred_check_branch
      %32 = sbr.rel (0) target = $region13
    $region12: #{tpu_custom_call.1} parent=1 // pred_region
      %s34 = ssub.s32 2048, 2048
      %35 = vsyncadd [#allocation10], %s34
      %s36 = sshll.u32 [#allocation9], 4
      %s37 = int_to_ptr.vmem [resolvable:$true] %s36
      %42 = dma.hbm_to_vmem [thread:$0]  %s2, 2048, %s37, [#allocation10], 512, 512, 32
    $region13: #{tpu_custom_call.1} parent=1 // pred_fallthru
      _
    // Predicated region
    $region14: #{tpu_custom_call.1} parent=1 // pred_check
      _
    $region15: #{tpu_custom_call.1} parent=1 // pred_check_branch
      %44 = sbr.rel (0) target = $region17
    $region16: #{tpu_custom_call.1} parent=1 // pred_region
      %s46 = ssub.s32 8192, 8192
      %47 = vsyncadd [#allocation10], %s46
      %s48 = sshll.u32 [#allocation11], 4
      %s49 = int_to_ptr.vmem [resolvable:$true] %s48
      %54 = dma.hbm_to_vmem [thread:$0]  %s3, 8192, %s49, [#allocation10], 512, 512, 32
    $region17: #{tpu_custom_call.1} parent=1 // pred_fallthru
      _
    // Predicated region
    $region18: #{tpu_custom_call.1} parent=1 // pred_check
      _
    $region19: #{tpu_custom_call.1} parent=1 // pred_check_branch
      %56 = sbr.rel (0) target = $region21
    $region20: #{tpu_custom_call.1} parent=1 // pred_region
      _
    $region21: #{tpu_custom_call.1} parent=1 // pred_fallthru
      _
    // Predicated region
    $region22: #{tpu_custom_call.1} parent=1 // pred_check
      _
    $region23: #{tpu_custom_call.1} parent=1 // pred_check_branch
      %58 = sbr.rel (0) target = $region25
    $region24: #{tpu_custom_call.1} parent=1 // pred_region
      %59 = dma.done [#allocation7], 1536
    $region25: #{tpu_custom_call.1} parent=1 // pred_fallthru
      _
    // Predicated region
    $region26: #{tpu_custom_call.1} parent=1 // pred_check
      _
    $region27: #{tpu_custom_call.1} parent=1 // pred_check_branch
      %61 = sbr.rel (0) target = $region29
    $region28: #{tpu_custom_call.1} parent=1 // pred_region
      %62 = dma.done [#allocation10], 2048
    $region29: #{tpu_custom_call.1} parent=1 // pred_fallthru
      _
    // Predicated region
    $region30: #{tpu_custom_call.1} parent=1 // pred_check
      _
    $region31: #{tpu_custom_call.1} parent=1 // pred_check_branch
      %64 = sbr.rel (0) target = $region33
    $region32: #{tpu_custom_call.1} parent=1 // pred_region
      %65 = dma.done [#allocation10], 8192
    $region33: #{tpu_custom_call.1} parent=1 // pred_fallthru
      _
    %p66 = scmp.eq.s32.totalorder 0, 0
    // Predicated region
    $region34: #{tpu_custom_call.1} parent=1 // pred_check
      %p67 = pneg %p66
    $region35: #{tpu_custom_call.1} parent=1 // pred_check_branch
      %69 = sbr.rel (%p67) target = $region37
    $region36: #{tpu_custom_call.1} parent=1 // pred_region
      %70 = vst [vmem:[#allocation2] sm:$0xff] 0.0
      %71 = vst [vmem:[#allocation3] sm:$0xff] 0.0
    $region37: #{tpu_custom_call.1} parent=1 // pred_fallthru
      _
    %v72 = vld [vmem:[#allocation6] sm:$0xff]
    %v73 = vld [vmem:[#allocation6 + $0x8] sm:$0xff]
    %v74 = vld [vmem:[#allocation6 + $0x10] sm:$0xff]
    %v75 = vld [vmem:[#allocation6 + $0x18] sm:$0xff]
    %v76 = vld [vmem:[#allocation6 + $0x20] sm:$0xff]
    %v77 = vld [vmem:[#allocation6 + $0x28] sm:$0xff]
    %v78 = vld [vmem:[#allocation6 + $0x30] sm:$0xff]
    %v79 = vld [vmem:[#allocation6 + $0x38] sm:$0xff]
    %v80 = vld [vmem:[#allocation6 + $0x40] sm:$0xff]
    %v81 = vld [vmem:[#allocation6 + $0x48] sm:$0xff]
    %v82 = vld [vmem:[#allocation6 + $0x50] sm:$0xff]
    %v83 = vld [vmem:[#allocation6 + $0x58] sm:$0xff]
    %v84 = vld [vmem:[#allocation9] sm:$0xff]
    %v85 = vld [vmem:[#allocation9 + $0x8] sm:$0xff]
    %v86 = vld [vmem:[#allocation9 + $0x10] sm:$0xff]
    %v87 = vld [vmem:[#allocation9 + $0x18] sm:$0xff]
    %v88 = vld [vmem:[#allocation9 + $0x20] sm:$0xff]
    %v89 = vld [vmem:[#allocation9 + $0x28] sm:$0xff]
    %v90 = vld [vmem:[#allocation9 + $0x30] sm:$0xff]
    %v91 = vld [vmem:[#allocation9 + $0x38] sm:$0xff]
    %v92 = vld [vmem:[#allocation9 + $0x40] sm:$0xff]
    %v93 = vld [vmem:[#allocation9 + $0x48] sm:$0xff]
    %v94 = vld [vmem:[#allocation9 + $0x50] sm:$0xff]
    %v95 = vld [vmem:[#allocation9 + $0x58] sm:$0xff]
    %v96 = vld [vmem:[#allocation9 + $0x60] sm:$0xff]
    %v97 = vld [vmem:[#allocation9 + $0x68] sm:$0xff]
    %v98 = vld [vmem:[#allocation9 + $0x70] sm:$0xff]
    %v99 = vld [vmem:[#allocation9 + $0x78] sm:$0xff]
    %v100 = vld [vmem:[%s4] sm:$0xf]
    %v102 = vlaneseq
    %v103 = vshrl.u32 %v102, 7
    %v104 = vsub.s32 0, %v103
    %v105 = vrot.slane %v100, %v104
    %v106 = vlaneseq
    %v107 = vshrl.u32 %v106, 7
    %v108 = vsub.s32 1, %v107
    %v109 = vrot.slane %v100, %v108
    %v110 = vlaneseq
    %v111 = vshrl.u32 %v110, 7
    %v112 = vsub.s32 2, %v111
    %v113 = vrot.slane %v100, %v112
    %v114 = vlaneseq
    %v115 = vshrl.u32 %v114, 7
    %v116 = vsub.s32 3, %v115
    %v117 = vrot.slane %v100, %v116
    %vm122 = vcmask 261120
    %v124 = vsel %vm122, %v72, 0
    %v127 = vsel %vm122, %v73, 0
    %v130 = vsel %vm122, %v74, 0
    %v133 = vsel %vm122, %v75, 0
    %v136 = vsel %vm122, %v76, 0
    %v139 = vsel %vm122, %v77, 0
    %v142 = vsel %vm122, %v78, 0
    %v145 = vsel %vm122, %v79, 0
    %v148 = vsel %vm122, %v80, 0
    %v151 = vsel %vm122, %v81, 0
    %v154 = vsel %vm122, %v82, 0
    %v157 = vsel %vm122, %v83, 0
    %159 = vmatprep.subr.mxu0 %v85
    %160 = vmatpush1.msra.mxu0 %v84
    %161 = vmatprep.subr.mxu0 %v89
    %162 = vmatpush1.msra.mxu0 %v88
    %163 = vmatprep.subr.mxu0 %v93
    %164 = vmatpush1.msra.mxu0 %v92
    %165 = vmatprep.subr.mxu0 %v97
    %166 = vmatpush1.msra.mxu0 %v96
    %167 = vmatprep.subr.mxu0 0.0
    %168 = vmatpush1.msra.mxu0 0.0
    %169 = vmatprep.subr.mxu0 0.0
    %170 = vmatpush1.msra.mxu0 0.0
    %171 = vmatprep.subr.mxu0 0.0
    %172 = vmatpush1.msra.mxu0 0.0
    %173 = vmatprep.subr.mxu0 0.0
    %174 = vmatpush1.msra.mxu0 0.0
    %175 = vmatprep.subr.mxu0 0.0
    %176 = vmatpush1.msra.mxu0 0.0
    %177 = vmatprep.subr.mxu0 0.0
    %178 = vmatpush1.msra.mxu0 0.0
    %179 = vmatprep.subr.mxu0 0.0
    %180 = vmatpush1.msra.mxu0 0.0
    %181 = vmatprep.subr.mxu0 0.0
    %182 = vmatpush1.msra.mxu0 0.0
    %183 = vmatprep.subr.mxu0 0.0
    %184 = vmatpush1.msra.mxu0 0.0
    %185 = vmatprep.subr.mxu0 0.0
    %186 = vmatpush1.msra.mxu0 0.0
    %187 = vmatprep.subr.mxu0 0.0
    %188 = vmatpush1.msra.mxu0 0.0
    %189 = vmatprep.subr.mxu0 0.0
    %190 = vmatpush1.msra.mxu0 0.0
    %191 = vmatprep.subr.mxu0 0.0
    %192 = vmatpush1.msra.mxu0 0.0
    %193 = vmatprep.subr.mxu0 0.0
    %194 = vmatpush1.msra.mxu0 0.0
    %195 = vmatprep.subr.mxu0 0.0
    %196 = vmatpush1.msra.mxu0 0.0
    %197 = vmatprep.subr.mxu0 0.0
    %198 = vmatpush1.msra.mxu0 0.0
    %199 = vmatprep.subr.mxu0 0.0
    %200 = vmatpush1.msra.mxu0 0.0
    %201 = vmatprep.subr.mxu0 0.0
    %202 = vmatpush1.msra.mxu0 0.0
    %203 = vmatprep.subr.mxu0 0.0
    %204 = vmatpush1.msra.mxu0 0.0
    %205 = vmatprep.subr.mxu0 0.0
    %206 = vmatpush1.msra.mxu0 0.0
    %207 = vmatprep.subr.mxu0 0.0
    %208 = vmatpush1.msra.mxu0 0.0
    %209 = vmatprep.subr.mxu0 0.0
    %210 = vmatpush1.msra.mxu0 0.0
    %211 = vmatprep.subr.mxu0 0.0
    %212 = vmatpush1.msra.mxu0 0.0
    %213 = vmatprep.subr.mxu0 0.0
    %214 = vmatpush1.msra.mxu0 0.0
    %215 = vmatprep.subr.mxu0 0.0
    %216 = vmatpush1.msra.mxu0 0.0
    %217 = vmatprep.subr.mxu0 0.0
    %218 = vmatpush1.msra.mxu0 0.0
    %219 = vmatprep.subr.mxu0 0.0
    %220 = vmatpush1.msra.mxu0 0.0
    %221 = vmatprep.subr.mxu0 0.0
    %222 = vmatpush1.msra.mxu0 0.0
    %223 = vmatprep.mubr.f32.mxu0 0.0
    %224 = vmatmul.mubr.f32.gmra.mrb[0].mxu0 %v124
    %v225 = vpop.f32.mrb[0].mxu0
    %v226 = vadd.f32 %v105, %v225
    %v227 = vpop.f32.mrb[0].mxu0
    %v228 = vadd.f32 %v109, %v227
    %229 = vmatprep.mubr.f32.mxu0 0.0
    %230 = vmatmul.mubr.f32.gmra.mrb[0].mxu0 %v127
    %v231 = vpop.f32.mrb[0].mxu0
    %v232 = vadd.f32 %v105, %v231
    %v233 = vpop.f32.mrb[0].mxu0
    %v234 = vadd.f32 %v109, %v233
    %235 = vmatprep.mubr.f32.mxu0 0.0
    %236 = vmatmul.mubr.f32.gmra.mrb[0].mxu0 %v130
    %v237 = vpop.f32.mrb[0].mxu0
    %v238 = vadd.f32 %v105, %v237
    %v239 = vpop.f32.mrb[0].mxu0
    %v240 = vadd.f32 %v109, %v239
    %241 = vmatprep.mubr.f32.mxu0 0.0
    %242 = vmatmul.mubr.f32.gmra.mrb[0].mxu0 %v133
    %v243 = vpop.f32.mrb[0].mxu0
    %v244 = vadd.f32 %v105, %v243
    %v245 = vpop.f32.mrb[0].mxu0
    %v246 = vadd.f32 %v109, %v245
    %247 = vmatprep.mubr.f32.mxu0 0.0
    %248 = vmatmul.mubr.f32.gmra.mrb[0].mxu0 %v136
    %v249 = vpop.f32.mrb[0].mxu0
    %v250 = vadd.f32 %v105, %v249
    %v251 = vpop.f32.mrb[0].mxu0
    %v252 = vadd.f32 %v109, %v251
    %253 = vmatprep.mubr.f32.mxu0 0.0
    %254 = vmatmul.mubr.f32.gmra.mrb[0].mxu0 %v139
    %v255 = vpop.f32.mrb[0].mxu0
    %v256 = vadd.f32 %v105, %v255
    %v257 = vpop.f32.mrb[0].mxu0
    %v258 = vadd.f32 %v109, %v257
    %259 = vmatprep.mubr.f32.mxu0 0.0
    %260 = vmatmul.mubr.f32.gmra.mrb[0].mxu0 %v142
    %v261 = vpop.f32.mrb[0].mxu0
    %v262 = vadd.f32 %v105, %v261
    %v263 = vpop.f32.mrb[0].mxu0
    %v264 = vadd.f32 %v109, %v263
    %265 = vmatprep.mubr.f32.mxu0 0.0
    %266 = vmatmul.mubr.f32.gmra.mrb[0].mxu0 %v145
    %v267 = vpop.f32.mrb[0].mxu0
    %v268 = vadd.f32 %v105, %v267
    %v269 = vpop.f32.mrb[0].mxu0
    %v270 = vadd.f32 %v109, %v269
    %271 = vmatprep.mubr.f32.mxu0 0.0
    %272 = vmatmul.mubr.f32.gmra.mrb[0].mxu0 %v148
    %v273 = vpop.f32.mrb[0].mxu0
    %v274 = vadd.f32 %v105, %v273
    %v275 = vpop.f32.mrb[0].mxu0
    %v276 = vadd.f32 %v109, %v275
    %277 = vmatprep.mubr.f32.mxu0 0.0
    %278 = vmatmul.mubr.f32.gmra.mrb[0].mxu0 %v151
    %v279 = vpop.f32.mrb[0].mxu0
    %v280 = vadd.f32 %v105, %v279
    %v281 = vpop.f32.mrb[0].mxu0
    %v282 = vadd.f32 %v109, %v281
    %283 = vmatprep.mubr.f32.mxu0 0.0
    %284 = vmatmul.mubr.f32.gmra.mrb[0].mxu0 %v154
    %v285 = vpop.f32.mrb[0].mxu0
    %v286 = vadd.f32 %v105, %v285
    %v287 = vpop.f32.mrb[0].mxu0
    %v288 = vadd.f32 %v109, %v287
    %289 = vmatprep.mubr.f32.mxu0 0.0
    %290 = vmatmul.mubr.f32.gmra.mrb[0].mxu0 %v157
    %v291 = vpop.f32.mrb[0].mxu0
    %v292 = vadd.f32 %v105, %v291
    %v293 = vpop.f32.mrb[0].mxu0
    %v294 = vadd.f32 %v109, %v293
    %295 = vdwg.mxu0
    %296 = vmatprep.subr.mxu0 %v87
    %297 = vmatpush1.msra.mxu0 %v86
    %298 = vmatprep.subr.mxu0 %v91
    %299 = vmatpush1.msra.mxu0 %v90
    %300 = vmatprep.subr.mxu0 %v95
    %301 = vmatpush1.msra.mxu0 %v94
    %302 = vmatprep.subr.mxu0 %v99
    %303 = vmatpush1.msra.mxu0 %v98
    %304 = vmatprep.subr.mxu0 0.0
    %305 = vmatpush1.msra.mxu0 0.0
    %306 = vmatprep.subr.mxu0 0.0
    %307 = vmatpush1.msra.mxu0 0.0
    %308 = vmatprep.subr.mxu0 0.0
    %309 = vmatpush1.msra.mxu0 0.0
    %310 = vmatprep.subr.mxu0 0.0
    %311 = vmatpush1.msra.mxu0 0.0
    %312 = vmatprep.subr.mxu0 0.0
    %313 = vmatpush1.msra.mxu0 0.0
    %314 = vmatprep.subr.mxu0 0.0
    %315 = vmatpush1.msra.mxu0 0.0
    %316 = vmatprep.subr.mxu0 0.0
    %317 = vmatpush1.msra.mxu0 0.0
    %318 = vmatprep.subr.mxu0 0.0
    %319 = vmatpush1.msra.mxu0 0.0
    %320 = vmatprep.subr.mxu0 0.0
    %321 = vmatpush1.msra.mxu0 0.0
    %322 = vmatprep.subr.mxu0 0.0
    %323 = vmatpush1.msra.mxu0 0.0
    %324 = vmatprep.subr.mxu0 0.0
    %325 = vmatpush1.msra.mxu0 0.0
    %326 = vmatprep.subr.mxu0 0.0
    %327 = vmatpush1.msra.mxu0 0.0
    %328 = vmatprep.subr.mxu0 0.0
    %329 = vmatpush1.msra.mxu0 0.0
    %330 = vmatprep.subr.mxu0 0.0
    %331 = vmatpush1.msra.mxu0 0.0
    %332 = vmatprep.subr.mxu0 0.0
    %333 = vmatpush1.msra.mxu0 0.0
    %334 = vmatprep.subr.mxu0 0.0
    %335 = vmatpush1.msra.mxu0 0.0
    %336 = vmatprep.subr.mxu0 0.0
    %337 = vmatpush1.msra.mxu0 0.0
    %338 = vmatprep.subr.mxu0 0.0
    %339 = vmatpush1.msra.mxu0 0.0
    %340 = vmatprep.subr.mxu0 0.0
    %341 = vmatpush1.msra.mxu0 0.0
    %342 = vmatprep.subr.mxu0 0.0
    %343 = vmatpush1.msra.mxu0 0.0
    %344 = vmatprep.subr.mxu0 0.0
    %345 = vmatpush1.msra.mxu0 0.0
    %346 = vmatprep.subr.mxu0 0.0
    %347 = vmatpush1.msra.mxu0 0.0
    %348 = vmatprep.subr.mxu0 0.0
    %349 = vmatpush1.msra.mxu0 0.0
    %350 = vmatprep.subr.mxu0 0.0
    %351 = vmatpush1.msra.mxu0 0.0
    %352 = vmatprep.subr.mxu0 0.0
    %353 = vmatpush1.msra.mxu0 0.0
    %354 = vmatprep.subr.mxu0 0.0
    %355 = vmatpush1.msra.mxu0 0.0
    %356 = vmatprep.subr.mxu0 0.0
    %357 = vmatpush1.msra.mxu0 0.0
    %358 = vmatprep.subr.mxu0 0.0
    %359 = vmatpush1.msra.mxu0 0.0
    %360 = vmatprep.mubr.f32.mxu0 0.0
    %361 = vmatmul.mubr.f32.gmra.mrb[0].mxu0 %v124
    %v362 = vpop.f32.mrb[0].mxu0
    %v363 = vadd.f32 %v113, %v362
    %v364 = vpop.f32.mrb[0].mxu0
    %v365 = vadd.f32 %v117, %v364
    %366 = vmatprep.mubr.f32.mxu0 0.0
    %367 = vmatmul.mubr.f32.gmra.mrb[0].mxu0 %v127
    %v368 = vpop.f32.mrb[0].mxu0
    %v369 = vadd.f32 %v113, %v368
    %v370 = vpop.f32.mrb[0].mxu0
    %v371 = vadd.f32 %v117, %v370
    %372 = vmatprep.mubr.f32.mxu0 0.0
    %373 = vmatmul.mubr.f32.gmra.mrb[0].mxu0 %v130
    %v374 = vpop.f32.mrb[0].mxu0
    %v375 = vadd.f32 %v113, %v374
    %v376 = vpop.f32.mrb[0].mxu0
    %v377 = vadd.f32 %v117, %v376
    %378 = vmatprep.mubr.f32.mxu0 0.0
    %379 = vmatmul.mubr.f32.gmra.mrb[0].mxu0 %v133
    %v380 = vpop.f32.mrb[0].mxu0
    %v381 = vadd.f32 %v113, %v380
    %v382 = vpop.f32.mrb[0].mxu0
    %v383 = vadd.f32 %v117, %v382
    %384 = vmatprep.mubr.f32.mxu0 0.0
    %385 = vmatmul.mubr.f32.gmra.mrb[0].mxu0 %v136
    %v386 = vpop.f32.mrb[0].mxu0
    %v387 = vadd.f32 %v113, %v386
    %v388 = vpop.f32.mrb[0].mxu0
    %v389 = vadd.f32 %v117, %v388
    %390 = vmatprep.mubr.f32.mxu0 0.0
    %391 = vmatmul.mubr.f32.gmra.mrb[0].mxu0 %v139
    %v392 = vpop.f32.mrb[0].mxu0
    %v393 = vadd.f32 %v113, %v392
    %v394 = vpop.f32.mrb[0].mxu0
    %v395 = vadd.f32 %v117, %v394
    %396 = vmatprep.mubr.f32.mxu0 0.0
    %397 = vmatmul.mubr.f32.gmra.mrb[0].mxu0 %v142
    %v398 = vpop.f32.mrb[0].mxu0
    %v399 = vadd.f32 %v113, %v398
    %v400 = vpop.f32.mrb[0].mxu0
    %v401 = vadd.f32 %v117, %v400
    %402 = vmatprep.mubr.f32.mxu0 0.0
    %403 = vmatmul.mubr.f32.gmra.mrb[0].mxu0 %v145
    %v404 = vpop.f32.mrb[0].mxu0
    %v405 = vadd.f32 %v113, %v404
    %v406 = vpop.f32.mrb[0].mxu0
    %v407 = vadd.f32 %v117, %v406
    %408 = vmatprep.mubr.f32.mxu0 0.0
    %409 = vmatmul.mubr.f32.gmra.mrb[0].mxu0 %v148
    %v410 = vpop.f32.mrb[0].mxu0
    %v411 = vadd.f32 %v113, %v410
    %v412 = vpop.f32.mrb[0].mxu0
    %v413 = vadd.f32 %v117, %v412
    %414 = vmatprep.mubr.f32.mxu0 0.0
    %415 = vmatmul.mubr.f32.gmra.mrb[0].mxu0 %v151
    %v416 = vpop.f32.mrb[0].mxu0
    %v417 = vadd.f32 %v113, %v416
    %v418 = vpop.f32.mrb[0].mxu0
    %v419 = vadd.f32 %v117, %v418
    %420 = vmatprep.mubr.f32.mxu0 0.0
    %421 = vmatmul.mubr.f32.gmra.mrb[0].mxu0 %v154
    %v422 = vpop.f32.mrb[0].mxu0
    %v423 = vadd.f32 %v113, %v422
    %v424 = vpop.f32.mrb[0].mxu0
    %v425 = vadd.f32 %v117, %v424
    %426 = vmatprep.mubr.f32.mxu0 0.0
    %427 = vmatmul.mubr.f32.gmra.mrb[0].mxu0 %v157
    %v428 = vpop.f32.mrb[0].mxu0
    %v429 = vadd.f32 %v113, %v428
    %v430 = vpop.f32.mrb[0].mxu0
    %v431 = vadd.f32 %v117, %v430
    %432 = vdwg.mxu0
    %433 = vst [vmem:[#allocation4] sm:$0xff] %v226
    %434 = vst [vmem:[#allocation4 + $0x8] sm:$0xff] %v228
    %435 = vst [vmem:[#allocation4 + $0x10] sm:$0xff] %v363
    %436 = vst [vmem:[#allocation4 + $0x18] sm:$0xff] %v365
    %437 = vst [vmem:[#allocation4 + $0x20] sm:$0xff] %v232
    %438 = vst [vmem:[#allocation4 + $0x28] sm:$0xff] %v234
    %439 = vst [vmem:[#allocation4 + $0x30] sm:$0xff] %v369
    %440 = vst [vmem:[#allocation4 + $0x38] sm:$0xff] %v371
    %441 = vst [vmem:[#allocation4 + $0x40] sm:$0xff] %v238
    %442 = vst [vmem:[#allocation4 + $0x48] sm:$0xff] %v240
    %443 = vst [vmem:[#allocation4 + $0x50] sm:$0xff] %v375
    %444 = vst [vmem:[#allocation4 + $0x58] sm:$0xff] %v377
    %445 = vst [vmem:[#allocation4 + $0x60] sm:$0xff] %v244
    %446 = vst [vmem:[#allocation4 + $0x68] sm:$0xff] %v246
    %447 = vst [vmem:[#allocation4 + $0x70] sm:$0xff] %v381
    %448 = vst [vmem:[#allocation4 + $0x78] sm:$0xff] %v383
    %449 = vst [vmem:[#allocation4 + $0x80] sm:$0xff] %v250
    %450 = vst [vmem:[#allocation4 + $0x88] sm:$0xff] %v252
    %451 = vst [vmem:[#allocation4 + $0x90] sm:$0xff] %v387
    %452 = vst [vmem:[#allocation4 + $0x98] sm:$0xff] %v389
    %453 = vst [vmem:[#allocation4 + $0xa0] sm:$0xff] %v256
    %454 = vst [vmem:[#allocation4 + $0xa8] sm:$0xff] %v258
    %455 = vst [vmem:[#allocation4 + $0xb0] sm:$0xff] %v393
    %456 = vst [vmem:[#allocation4 + $0xb8] sm:$0xff] %v395
    %457 = vst [vmem:[#allocation4 + $0xc0] sm:$0xff] %v262
    %458 = vst [vmem:[#allocation4 + $0xc8] sm:$0xff] %v264
    %459 = vst [vmem:[#allocation4 + $0xd0] sm:$0xff] %v399
    %460 = vst [vmem:[#allocation4 + $0xd8] sm:$0xff] %v401
    %461 = vst [vmem:[#allocation4 + $0xe0] sm:$0xff] %v268
    %462 = vst [vmem:[#allocation4 + $0xe8] sm:$0xff] %v270
    %463 = vst [vmem:[#allocation4 + $0xf0] sm:$0xff] %v405
    %464 = vst [vmem:[#allocation4 + $0xf8] sm:$0xff] %v407
    %465 = vst [vmem:[#allocation4 + $0x100] sm:$0xff] %v274
    %466 = vst [vmem:[#allocation4 + $0x108] sm:$0xff] %v276
    %467 = vst [vmem:[#allocation4 + $0x110] sm:$0xff] %v411
    %468 = vst [vmem:[#allocation4 + $0x118] sm:$0xff] %v413
    %469 = vst [vmem:[#allocation4 + $0x120] sm:$0xff] %v280
    %470 = vst [vmem:[#allocation4 + $0x128] sm:$0xff] %v282
    %471 = vst [vmem:[#allocation4 + $0x130] sm:$0xff] %v417
    %472 = vst [vmem:[#allocation4 + $0x138] sm:$0xff] %v419
    %473 = vst [vmem:[#allocation4 + $0x140] sm:$0xff] %v286
    %474 = vst [vmem:[#allocation4 + $0x148] sm:$0xff] %v288
    %475 = vst [vmem:[#allocation4 + $0x150] sm:$0xff] %v423
    %476 = vst [vmem:[#allocation4 + $0x158] sm:$0xff] %v425
    %477 = vst [vmem:[#allocation4 + $0x160] sm:$0xff] %v292
    %478 = vst [vmem:[#allocation4 + $0x168] sm:$0xff] %v294
    %479 = vst [vmem:[#allocation4 + $0x170] sm:$0xff] %v429
    %480 = vst [vmem:[#allocation4 + $0x178] sm:$0xff] %v431
    %v481 = vld [vmem:[#allocation11] sm:$0xff]
    %v482 = vld [vmem:[#allocation11 + $0x8] sm:$0xff]
    %v483 = vld [vmem:[#allocation11 + $0x10] sm:$0xff]
    %v484 = vld [vmem:[#allocation11 + $0x18] sm:$0xff]
    %v485 = vld [vmem:[#allocation11 + $0x20] sm:$0xff]
    %v486 = vld [vmem:[#allocation11 + $0x28] sm:$0xff]
    %v487 = vld [vmem:[#allocation11 + $0x30] sm:$0xff]
    %v488 = vld [vmem:[#allocation11 + $0x38] sm:$0xff]
    %v489 = vld [vmem:[#allocation11 + $0x40] sm:$0xff]
    %v490 = vld [vmem:[#allocation11 + $0x48] sm:$0xff]
    %v491 = vld [vmem:[#allocation11 + $0x50] sm:$0xff]
    %v492 = vld [vmem:[#allocation11 + $0x58] sm:$0xff]
    %v493 = vld [vmem:[#allocation11 + $0x60] sm:$0xff]
    %v494 = vld [vmem:[#allocation11 + $0x68] sm:$0xff]
    %v495 = vld [vmem:[#allocation11 + $0x70] sm:$0xff]
    %v496 = vld [vmem:[#allocation11 + $0x78] sm:$0xff]
    %v497 = vld [vmem:[#allocation11 + $0x80] sm:$0xff]
    %v498 = vld [vmem:[#allocation11 + $0x88] sm:$0xff]
    %v499 = vld [vmem:[#allocation11 + $0x90] sm:$0xff]
    %v500 = vld [vmem:[#allocation11 + $0x98] sm:$0xff]
    %v501 = vld [vmem:[#allocation11 + $0xa0] sm:$0xff]
    %v502 = vld [vmem:[#allocation11 + $0xa8] sm:$0xff]
    %v503 = vld [vmem:[#allocation11 + $0xb0] sm:$0xff]
    %v504 = vld [vmem:[#allocation11 + $0xb8] sm:$0xff]
    %v505 = vld [vmem:[#allocation11 + $0xc0] sm:$0xff]
    %v506 = vld [vmem:[#allocation11 + $0xc8] sm:$0xff]
    %v507 = vld [vmem:[#allocation11 + $0xd0] sm:$0xff]
    %v508 = vld [vmem:[#allocation11 + $0xd8] sm:$0xff]
    %v509 = vld [vmem:[#allocation11 + $0xe0] sm:$0xff]
    %v510 = vld [vmem:[#allocation11 + $0xe8] sm:$0xff]
    %v511 = vld [vmem:[#allocation11 + $0xf0] sm:$0xff]
    %v512 = vld [vmem:[#allocation11 + $0xf8] sm:$0xff]
    %v513 = vld [vmem:[#allocation11 + $0x100] sm:$0xff]
    %v514 = vld [vmem:[#allocation11 + $0x108] sm:$0xff]
    %v515 = vld [vmem:[#allocation11 + $0x110] sm:$0xff]
    %v516 = vld [vmem:[#allocation11 + $0x118] sm:$0xff]
    %v517 = vld [vmem:[#allocation11 + $0x120] sm:$0xff]
    %v518 = vld [vmem:[#allocation11 + $0x128] sm:$0xff]
    %v519 = vld [vmem:[#allocation11 + $0x130] sm:$0xff]
    %v520 = vld [vmem:[#allocation11 + $0x138] sm:$0xff]
    %v521 = vld [vmem:[#allocation11 + $0x140] sm:$0xff]
    %v522 = vld [vmem:[#allocation11 + $0x148] sm:$0xff]
    %v523 = vld [vmem:[#allocation11 + $0x150] sm:$0xff]
    %v524 = vld [vmem:[#allocation11 + $0x158] sm:$0xff]
    %v525 = vld [vmem:[#allocation11 + $0x160] sm:$0xff]
    %v526 = vld [vmem:[#allocation11 + $0x168] sm:$0xff]
    %v527 = vld [vmem:[#allocation11 + $0x170] sm:$0xff]
    %v528 = vld [vmem:[#allocation11 + $0x178] sm:$0xff]
    %v529 = vld [vmem:[#allocation11 + $0x180] sm:$0xff]
    %v530 = vld [vmem:[#allocation11 + $0x188] sm:$0xff]
    %v531 = vld [vmem:[#allocation11 + $0x190] sm:$0xff]
    %v532 = vld [vmem:[#allocation11 + $0x198] sm:$0xff]
    %v533 = vld [vmem:[#allocation11 + $0x1a0] sm:$0xff]
    %v534 = vld [vmem:[#allocation11 + $0x1a8] sm:$0xff]
    %v535 = vld [vmem:[#allocation11 + $0x1b0] sm:$0xff]
    %v536 = vld [vmem:[#allocation11 + $0x1b8] sm:$0xff]
    %v537 = vld [vmem:[#allocation11 + $0x1c0] sm:$0xff]
    %v538 = vld [vmem:[#allocation11 + $0x1c8] sm:$0xff]
    %v539 = vld [vmem:[#allocation11 + $0x1d0] sm:$0xff]
    %v540 = vld [vmem:[#allocation11 + $0x1d8] sm:$0xff]
    %v541 = vld [vmem:[#allocation11 + $0x1e0] sm:$0xff]
    %v542 = vld [vmem:[#allocation11 + $0x1e8] sm:$0xff]
    %v543 = vld [vmem:[#allocation11 + $0x1f0] sm:$0xff]
    %v544 = vld [vmem:[#allocation11 + $0x1f8] sm:$0xff]
    %v545 = vld [vmem:[%s0] sm:$0xff]
    %s546 = smul.u32 0, 12
    %v547 = vstv %s546
    %v548 = vsub.s32 %v545, %v547
    %v549 = vld [vmem:[#allocation2] sm:$0xff]
    %v550 = vld [vmem:[#allocation3] sm:$0xff]
    %v551 = vld [vmem:[#allocation4] sm:$0xff]
    %v552 = vld [vmem:[#allocation4 + $0x8] sm:$0xff]
    %v553 = vld [vmem:[#allocation4 + $0x10] sm:$0xff]
    %v554 = vld [vmem:[#allocation4 + $0x18] sm:$0xff]
    %555 = vmatprep.subr.mxu0 %v482
    %556 = vmatpush1.msra.mxu0 %v481
    %557 = vmatprep.subr.mxu0 %v486
    %558 = vmatpush1.msra.mxu0 %v485
    %559 = vmatprep.subr.mxu0 %v490
    %560 = vmatpush1.msra.mxu0 %v489
    %561 = vmatprep.subr.mxu0 %v494
    %562 = vmatpush1.msra.mxu0 %v493
    %563 = vmatprep.subr.mxu0 %v498
    %564 = vmatpush1.msra.mxu0 %v497
    %565 = vmatprep.subr.mxu0 %v502
    %566 = vmatpush1.msra.mxu0 %v501
    %567 = vmatprep.subr.mxu0 %v506
    %568 = vmatpush1.msra.mxu0 %v505
    %569 = vmatprep.subr.mxu0 %v510
    %570 = vmatpush1.msra.mxu0 %v509
    %571 = vmatprep.subr.mxu0 %v514
    %572 = vmatpush1.msra.mxu0 %v513
    %573 = vmatprep.subr.mxu0 %v518
    %574 = vmatpush1.msra.mxu0 %v517
    %575 = vmatprep.subr.mxu0 %v522
    %576 = vmatpush1.msra.mxu0 %v521
    %577 = vmatprep.subr.mxu0 %v526
    %578 = vmatpush1.msra.mxu0 %v525
    %579 = vmatprep.subr.mxu0 %v530
    %580 = vmatpush1.msra.mxu0 %v529
    %581 = vmatprep.subr.mxu0 %v534
    %582 = vmatpush1.msra.mxu0 %v533
    %583 = vmatprep.subr.mxu0 %v538
    %584 = vmatpush1.msra.mxu0 %v537
    %585 = vmatprep.subr.mxu0 %v542
    %586 = vmatpush1.msra.mxu0 %v541
    %587 = vmatprep.subr.mxu0 0.0
    %588 = vmatpush1.msra.mxu0 0.0
    %589 = vmatprep.subr.mxu0 0.0
    %590 = vmatpush1.msra.mxu0 0.0
    %591 = vmatprep.subr.mxu0 0.0
    %592 = vmatpush1.msra.mxu0 0.0
    %593 = vmatprep.subr.mxu0 0.0
    %594 = vmatpush1.msra.mxu0 0.0
    %595 = vmatprep.subr.mxu0 0.0
    %596 = vmatpush1.msra.mxu0 0.0
    %597 = vmatprep.subr.mxu0 0.0
    %598 = vmatpush1.msra.mxu0 0.0
    %599 = vmatprep.subr.mxu0 0.0
    %600 = vmatpush1.msra.mxu0 0.0
    %601 = vmatprep.subr.mxu0 0.0
    %602 = vmatpush1.msra.mxu0 0.0
    %603 = vmatprep.subr.mxu0 0.0
    %604 = vmatpush1.msra.mxu0 0.0
    %605 = vmatprep.subr.mxu0 0.0
    %606 = vmatpush1.msra.mxu0 0.0
    %607 = vmatprep.subr.mxu0 0.0
    %608 = vmatpush1.msra.mxu0 0.0
    %609 = vmatprep.subr.mxu0 0.0
    %610 = vmatpush1.msra.mxu0 0.0
    %611 = vmatprep.subr.mxu0 0.0
    %612 = vmatpush1.msra.mxu0 0.0
    %613 = vmatprep.subr.mxu0 0.0
    %614 = vmatpush1.msra.mxu0 0.0
    %615 = vmatprep.subr.mxu0 0.0
    %616 = vmatpush1.msra.mxu0 0.0
    %617 = vmatprep.subr.mxu0 0.0
    %618 = vmatpush1.msra.mxu0 0.0
    %619 = vmatprep.mubr.f32.mxu0 0.0
    %620 = vmatmul.mubr.f32.gmra.mrb[0].mxu0 %v549
    %v621 = vpop.f32.mrb[0].mxu0
    %v622 = vadd.f32 0.0, %v621
    %v623 = vpop.f32.mrb[0].mxu0
    %v624 = vadd.f32 0.0, %v623
    %625 = vdwg.mxu0
    %626 = vmatprep.subr.mxu0 %v484
    %627 = vmatpush1.msra.mxu0 %v483
    %628 = vmatprep.subr.mxu0 %v488
    %629 = vmatpush1.msra.mxu0 %v487
    %630 = vmatprep.subr.mxu0 %v492
    %631 = vmatpush1.msra.mxu0 %v491
    %632 = vmatprep.subr.mxu0 %v496
    %633 = vmatpush1.msra.mxu0 %v495
    %634 = vmatprep.subr.mxu0 %v500
    %635 = vmatpush1.msra.mxu0 %v499
    %636 = vmatprep.subr.mxu0 %v504
    %637 = vmatpush1.msra.mxu0 %v503
    %638 = vmatprep.subr.mxu0 %v508
    %639 = vmatpush1.msra.mxu0 %v507
    %640 = vmatprep.subr.mxu0 %v512
    %641 = vmatpush1.msra.mxu0 %v511
    %642 = vmatprep.subr.mxu0 %v516
    %643 = vmatpush1.msra.mxu0 %v515
    %644 = vmatprep.subr.mxu0 %v520
    %645 = vmatpush1.msra.mxu0 %v519
    %646 = vmatprep.subr.mxu0 %v524
    %647 = vmatpush1.msra.mxu0 %v523
    %648 = vmatprep.subr.mxu0 %v528
    %649 = vmatpush1.msra.mxu0 %v527
    %650 = vmatprep.subr.mxu0 %v532
    %651 = vmatpush1.msra.mxu0 %v531
    %652 = vmatprep.subr.mxu0 %v536
    %653 = vmatpush1.msra.mxu0 %v535
    %654 = vmatprep.subr.mxu0 %v540
    %655 = vmatpush1.msra.mxu0 %v539
    %656 = vmatprep.subr.mxu0 %v544
    %657 = vmatpush1.msra.mxu0 %v543
    %658 = vmatprep.subr.mxu0 0.0
    %659 = vmatpush1.msra.mxu0 0.0
    %660 = vmatprep.subr.mxu0 0.0
    %661 = vmatpush1.msra.mxu0 0.0
    %662 = vmatprep.subr.mxu0 0.0
    %663 = vmatpush1.msra.mxu0 0.0
    %664 = vmatprep.subr.mxu0 0.0
    %665 = vmatpush1.msra.mxu0 0.0
    %666 = vmatprep.subr.mxu0 0.0
    %667 = vmatpush1.msra.mxu0 0.0
    %668 = vmatprep.subr.mxu0 0.0
    %669 = vmatpush1.msra.mxu0 0.0
    %670 = vmatprep.subr.mxu0 0.0
    %671 = vmatpush1.msra.mxu0 0.0
    %672 = vmatprep.subr.mxu0 0.0
    %673 = vmatpush1.msra.mxu0 0.0
    %674 = vmatprep.subr.mxu0 0.0
    %675 = vmatpush1.msra.mxu0 0.0
    %676 = vmatprep.subr.mxu0 0.0
    %677 = vmatpush1.msra.mxu0 0.0
    %678 = vmatprep.subr.mxu0 0.0
    %679 = vmatpush1.msra.mxu0 0.0
    %680 = vmatprep.subr.mxu0 0.0
    %681 = vmatpush1.msra.mxu0 0.0
    %682 = vmatprep.subr.mxu0 0.0
    %683 = vmatpush1.msra.mxu0 0.0
    %684 = vmatprep.subr.mxu0 0.0
    %685 = vmatpush1.msra.mxu0 0.0
    %686 = vmatprep.subr.mxu0 0.0
    %687 = vmatpush1.msra.mxu0 0.0
    %688 = vmatprep.subr.mxu0 0.0
    %689 = vmatpush1.msra.mxu0 0.0
    %690 = vmatprep.mubr.f32.mxu0 0.0
    %691 = vmatmul.mubr.f32.gmra.mrb[0].mxu0 %v549
    %v692 = vpop.f32.mrb[0].mxu0
    %v693 = vadd.f32 0.0, %v692
    %v694 = vpop.f32.mrb[0].mxu0
    %v695 = vadd.f32 0.0, %v694
    %696 = vdwg.mxu0
    %v697 = vadd.f32 %v551, %v622
    %v698 = vadd.f32 %v552, %v624
    %v699 = vadd.f32 %v553, %v693
    %v700 = vadd.f32 %v554, %v695
    %v701 = vxor.u32 %v697, 2147483648
    %v702 = vxor.u32 %v698, 2147483648
    %v703 = vxor.u32 %v699, 2147483648
    %v704 = vmul.f32 %v701, 1.442695
    %v705 = vpow.pop %v704
    %v706 = vmul.f32 %v702, 1.442695
    %v707 = vpow.pop %v706
    %v708 = vmul.f32 %v703, 1.442695
    %v709 = vpow.pop %v708
    %v710 = vadd.f32 %v705, 1.0
    %v711 = vadd.f32 %v707, 1.0
    %v712 = vadd.f32 %v709, 1.0
    %v713 = vrcp.pop %v710
    %v714 = vmul.f32 1.0, %v713
    %v715 = vrcp.pop %v711
    %v716 = vmul.f32 1.0, %v715
    %v717 = vrcp.pop %v712
    %v718 = vmul.f32 1.0, %v717
    %v719 = vtanh.pop %v700
    %v720 = vmul.f32 %v716, %v550
    %v721 = vmul.f32 %v714, %v719
    %v722 = vadd.f32 %v720, %v721
    %v723 = vtanh.pop %v722
    %v724 = vmul.f32 %v718, %v723
    %vm725 = vcmp.gt.s32.totalorder %v548, 0
    %v726 = vsel %vm725, 1, 0
    %727 = vset.pattern.permute.xlu0 0
    %728 = vperm.xlu0 %727, %v726
    %v729 = vpop.permute.xlu0 %728
    %vm730 = vcmp.eq.s32.totalorder %v729, 1
    %v731 = vsel %vm730, %v724, 0.0
    %732 = vst [vmem:[#allocation5] sm:$0xff] %v731
    %v733 = vsel %vm730, %v724, %v549
    %v734 = vsel %vm730, %v722, %v550
    %s735 = scalar_lea.vmem [#allocation4], 32
    %v736 = vld [vmem:[%s735] sm:$0xff]
    %v737 = vld [vmem:[%s735 + $0x8] sm:$0xff]
    %v738 = vld [vmem:[%s735 + $0x10] sm:$0xff]
    %v739 = vld [vmem:[%s735 + $0x18] sm:$0xff]
    %740 = vmatprep.subr.mxu0 %v482
    %741 = vmatpush1.msra.mxu0 %v481
    %742 = vmatprep.subr.mxu0 %v486
    %743 = vmatpush1.msra.mxu0 %v485
    %744 = vmatprep.subr.mxu0 %v490
    %745 = vmatpush1.msra.mxu0 %v489
    %746 = vmatprep.subr.mxu0 %v494
    %747 = vmatpush1.msra.mxu0 %v493
    %748 = vmatprep.subr.mxu0 %v498
    %749 = vmatpush1.msra.mxu0 %v497
    %750 = vmatprep.subr.mxu0 %v502
    %751 = vmatpush1.msra.mxu0 %v501
    %752 = vmatprep.subr.mxu0 %v506
    %753 = vmatpush1.msra.mxu0 %v505
    %754 = vmatprep.subr.mxu0 %v510
    %755 = vmatpush1.msra.mxu0 %v509
    %756 = vmatprep.subr.mxu0 %v514
    %757 = vmatpush1.msra.mxu0 %v513
    %758 = vmatprep.subr.mxu0 %v518
    %759 = vmatpush1.msra.mxu0 %v517
    %760 = vmatprep.subr.mxu0 %v522
    %761 = vmatpush1.msra.mxu0 %v521
    %762 = vmatprep.subr.mxu0 %v526
    %763 = vmatpush1.msra.mxu0 %v525
    %764 = vmatprep.subr.mxu0 %v530
    %765 = vmatpush1.msra.mxu0 %v529
    %766 = vmatprep.subr.mxu0 %v534
    %767 = vmatpush1.msra.mxu0 %v533
    %768 = vmatprep.subr.mxu0 %v538
    %769 = vmatpush1.msra.mxu0 %v537
    %770 = vmatprep.subr.mxu0 %v542
    %771 = vmatpush1.msra.mxu0 %v541
    %772 = vmatprep.subr.mxu0 0.0
    %773 = vmatpush1.msra.mxu0 0.0
    %774 = vmatprep.subr.mxu0 0.0
    %775 = vmatpush1.msra.mxu0 0.0
    %776 = vmatprep.subr.mxu0 0.0
    %777 = vmatpush1.msra.mxu0 0.0
    %778 = vmatprep.subr.mxu0 0.0
    %779 = vmatpush1.msra.mxu0 0.0
    %780 = vmatprep.subr.mxu0 0.0
    %781 = vmatpush1.msra.mxu0 0.0
    %782 = vmatprep.subr.mxu0 0.0
    %783 = vmatpush1.msra.mxu0 0.0
    %784 = vmatprep.subr.mxu0 0.0
    %785 = vmatpush1.msra.mxu0 0.0
    %786 = vmatprep.subr.mxu0 0.0
    %787 = vmatpush1.msra.mxu0 0.0
    %788 = vmatprep.subr.mxu0 0.0
    %789 = vmatpush1.msra.mxu0 0.0
    %790 = vmatprep.subr.mxu0 0.0
    %791 = vmatpush1.msra.mxu0 0.0
    %792 = vmatprep.subr.mxu0 0.0
    %793 = vmatpush1.msra.mxu0 0.0
    %794 = vmatprep.subr.mxu0 0.0
    %795 = vmatpush1.msra.mxu0 0.0
    %796 = vmatprep.subr.mxu0 0.0
    %797 = vmatpush1.msra.mxu0 0.0
    %798 = vmatprep.subr.mxu0 0.0
    %799 = vmatpush1.msra.mxu0 0.0
    %800 = vmatprep.subr.mxu0 0.0
    %801 = vmatpush1.msra.mxu0 0.0
    %802 = vmatprep.subr.mxu0 0.0
    %803 = vmatpush1.msra.mxu0 0.0
    %804 = vmatprep.mubr.f32.mxu0 0.0
    %805 = vmatmul.mubr.f32.gmra.mrb[0].mxu0 %v733
    %v806 = vpop.f32.mrb[0].mxu0
    %v807 = vadd.f32 0.0, %v806
    %v808 = vpop.f32.mrb[0].mxu0
    %v809 = vadd.f32 0.0, %v808
    %810 = vdwg.mxu0
    %811 = vmatprep.subr.mxu0 %v484
    %812 = vmatpush1.msra.mxu0 %v483
    %813 = vmatprep.subr.mxu0 %v488
    %814 = vmatpush1.msra.mxu0 %v487
    %815 = vmatprep.subr.mxu0 %v492
    %816 = vmatpush1.msra.mxu0 %v491
    %817 = vmatprep.subr.mxu0 %v496
    %818 = vmatpush1.msra.mxu0 %v495
    %819 = vmatprep.subr.mxu0 %v500
    %820 = vmatpush1.msra.mxu0 %v499
    %821 = vmatprep.subr.mxu0 %v504
    %822 = vmatpush1.msra.mxu0 %v503
    %823 = vmatprep.subr.mxu0 %v508
    %824 = vmatpush1.msra.mxu0 %v507
    %825 = vmatprep.subr.mxu0 %v512
    %826 = vmatpush1.msra.mxu0 %v511
    %827 = vmatprep.subr.mxu0 %v516
    %828 = vmatpush1.msra.mxu0 %v515
    %829 = vmatprep.subr.mxu0 %v520
    %830 = vmatpush1.msra.mxu0 %v519
    %831 = vmatprep.subr.mxu0 %v524
    %832 = vmatpush1.msra.mxu0 %v523
    %833 = vmatprep.subr.mxu0 %v528
    %834 = vmatpush1.msra.mxu0 %v527
    %835 = vmatprep.subr.mxu0 %v532
    %836 = vmatpush1.msra.mxu0 %v531
    %837 = vmatprep.subr.mxu0 %v536
    %838 = vmatpush1.msra.mxu0 %v535
    %839 = vmatprep.subr.mxu0 %v540
    %840 = vmatpush1.msra.mxu0 %v539
    %841 = vmatprep.subr.mxu0 %v544
    %842 = vmatpush1.msra.mxu0 %v543
    %843 = vmatprep.subr.mxu0 0.0
    %844 = vmatpush1.msra.mxu0 0.0
    %845 = vmatprep.subr.mxu0 0.0
    %846 = vmatpush1.msra.mxu0 0.0
    %847 = vmatprep.subr.mxu0 0.0
    %848 = vmatpush1.msra.mxu0 0.0
    %849 = vmatprep.subr.mxu0 0.0
    %850 = vmatpush1.msra.mxu0 0.0
    %851 = vmatprep.subr.mxu0 0.0
    %852 = vmatpush1.msra.mxu0 0.0
    %853 = vmatprep.subr.mxu0 0.0
    %854 = vmatpush1.msra.mxu0 0.0
    %855 = vmatprep.subr.mxu0 0.0
    %856 = vmatpush1.msra.mxu0 0.0
    %857 = vmatprep.subr.mxu0 0.0
    %858 = vmatpush1.msra.mxu0 0.0
    %859 = vmatprep.subr.mxu0 0.0
    %860 = vmatpush1.msra.mxu0 0.0
    %861 = vmatprep.subr.mxu0 0.0
    %862 = vmatpush1.msra.mxu0 0.0
    %863 = vmatprep.subr.mxu0 0.0
    %864 = vmatpush1.msra.mxu0 0.0
    %865 = vmatprep.subr.mxu0 0.0
    %866 = vmatpush1.msra.mxu0 0.0
    %867 = vmatprep.subr.mxu0 0.0
    %868 = vmatpush1.msra.mxu0 0.0
    %869 = vmatprep.subr.mxu0 0.0
    %870 = vmatpush1.msra.mxu0 0.0
    %871 = vmatprep.subr.mxu0 0.0
    %872 = vmatpush1.msra.mxu0 0.0
    %873 = vmatprep.subr.mxu0 0.0
    %874 = vmatpush1.msra.mxu0 0.0
    %875 = vmatprep.mubr.f32.mxu0 0.0
    %876 = vmatmul.mubr.f32.gmra.mrb[0].mxu0 %v733
    %v877 = vpop.f32.mrb[0].mxu0
    %v878 = vadd.f32 0.0, %v877
    %v879 = vpop.f32.mrb[0].mxu0
    %v880 = vadd.f32 0.0, %v879
    %881 = vdwg.mxu0
    %v882 = vadd.f32 %v736, %v807
    %v883 = vadd.f32 %v737, %v809
    %v884 = vadd.f32 %v738, %v878
    %v885 = vadd.f32 %v739, %v880
    %v886 = vxor.u32 %v882, 2147483648
    %v887 = vxor.u32 %v883, 2147483648
    %v888 = vxor.u32 %v884, 2147483648
    %v889 = vmul.f32 %v886, 1.442695
    %v890 = vpow.pop %v889
    %v891 = vmul.f32 %v887, 1.442695
    %v892 = vpow.pop %v891
    %v893 = vmul.f32 %v888, 1.442695
    %v894 = vpow.pop %v893
    %v895 = vadd.f32 %v890, 1.0
    %v896 = vadd.f32 %v892, 1.0
    %v897 = vadd.f32 %v894, 1.0
    %v898 = vrcp.pop %v895
    %v899 = vmul.f32 1.0, %v898
    %v900 = vrcp.pop %v896
    %v901 = vmul.f32 1.0, %v900
    %v902 = vrcp.pop %v897
    %v903 = vmul.f32 1.0, %v902
    %v904 = vtanh.pop %v885
    %v905 = vmul.f32 %v901, %v734
    %v906 = vmul.f32 %v899, %v904
    %v907 = vadd.f32 %v905, %v906
    %v908 = vtanh.pop %v907
    %v909 = vmul.f32 %v903, %v908
    %vm910 = vcmp.gt.s32.totalorder %v548, 1
    %v911 = vsel %vm910, 1, 0
    %912 = vset.pattern.permute.xlu0 0
    %913 = vperm.xlu0 %912, %v911
    %v914 = vpop.permute.xlu0 %913
    %vm915 = vcmp.eq.s32.totalorder %v914, 1
    %v916 = vsel %vm915, %v909, 0.0
    %s917 = scalar_lea.vmem [#allocation5], 8
    %918 = vst [vmem:[%s917] sm:$0xff] %v916
    %v919 = vsel %vm915, %v909, %v733
    %v920 = vsel %vm915, %v907, %v734
    %s921 = scalar_lea.vmem [#allocation4], 64
    %v922 = vld [vmem:[%s921] sm:$0xff]
    %v923 = vld [vmem:[%s921 + $0x8] sm:$0xff]
    %v924 = vld [vmem:[%s921 + $0x10] sm:$0xff]
    %v925 = vld [vmem:[%s921 + $0x18] sm:$0xff]
    %926 = vmatprep.subr.mxu0 %v482
    %927 = vmatpush1.msra.mxu0 %v481
    %928 = vmatprep.subr.mxu0 %v486
    %929 = vmatpush1.msra.mxu0 %v485
    %930 = vmatprep.subr.mxu0 %v490
    %931 = vmatpush1.msra.mxu0 %v489
    %932 = vmatprep.subr.mxu0 %v494
    %933 = vmatpush1.msra.mxu0 %v493
    %934 = vmatprep.subr.mxu0 %v498
    %935 = vmatpush1.msra.mxu0 %v497
    %936 = vmatprep.subr.mxu0 %v502
    %937 = vmatpush1.msra.mxu0 %v501
    %938 = vmatprep.subr.mxu0 %v506
    %939 = vmatpush1.msra.mxu0 %v505
    %940 = vmatprep.subr.mxu0 %v510
    %941 = vmatpush1.msra.mxu0 %v509
    %942 = vmatprep.subr.mxu0 %v514
    %943 = vmatpush1.msra.mxu0 %v513
    %944 = vmatprep.subr.mxu0 %v518
    %945 = vmatpush1.msra.mxu0 %v517
    %946 = vmatprep.subr.mxu0 %v522
    %947 = vmatpush1.msra.mxu0 %v521
    %948 = vmatprep.subr.mxu0 %v526
    %949 = vmatpush1.msra.mxu0 %v525
    %950 = vmatprep.subr.mxu0 %v530
    %951 = vmatpush1.msra.mxu0 %v529
    %952 = vmatprep.subr.mxu0 %v534
    %953 = vmatpush1.msra.mxu0 %v533
    %954 = vmatprep.subr.mxu0 %v538
    %955 = vmatpush1.msra.mxu0 %v537
    %956 = vmatprep.subr.mxu0 %v542
    %957 = vmatpush1.msra.mxu0 %v541
    %958 = vmatprep.subr.mxu0 0.0
    %959 = vmatpush1.msra.mxu0 0.0
    %960 = vmatprep.subr.mxu0 0.0
    %961 = vmatpush1.msra.mxu0 0.0
    %962 = vmatprep.subr.mxu0 0.0
    %963 = vmatpush1.msra.mxu0 0.0
    %964 = vmatprep.subr.mxu0 0.0
    %965 = vmatpush1.msra.mxu0 0.0
    %966 = vmatprep.subr.mxu0 0.0
    %967 = vmatpush1.msra.mxu0 0.0
    %968 = vmatprep.subr.mxu0 0.0
    %969 = vmatpush1.msra.mxu0 0.0
    %970 = vmatprep.subr.mxu0 0.0
    %971 = vmatpush1.msra.mxu0 0.0
    %972 = vmatprep.subr.mxu0 0.0
    %973 = vmatpush1.msra.mxu0 0.0
    %974 = vmatprep.subr.mxu0 0.0
    %975 = vmatpush1.msra.mxu0 0.0
    %976 = vmatprep.subr.mxu0 0.0
    %977 = vmatpush1.msra.mxu0 0.0
    %978 = vmatprep.subr.mxu0 0.0
    %979 = vmatpush1.msra.mxu0 0.0
    %980 = vmatprep.subr.mxu0 0.0
    %981 = vmatpush1.msra.mxu0 0.0
    %982 = vmatprep.subr.mxu0 0.0
    %983 = vmatpush1.msra.mxu0 0.0
    %984 = vmatprep.subr.mxu0 0.0
    %985 = vmatpush1.msra.mxu0 0.0
    %986 = vmatprep.subr.mxu0 0.0
    %987 = vmatpush1.msra.mxu0 0.0
    %988 = vmatprep.subr.mxu0 0.0
    %989 = vmatpush1.msra.mxu0 0.0
    %990 = vmatprep.mubr.f32.mxu0 0.0
    %991 = vmatmul.mubr.f32.gmra.mrb[0].mxu0 %v919
    %v992 = vpop.f32.mrb[0].mxu0
    %v993 = vadd.f32 0.0, %v992
    %v994 = vpop.f32.mrb[0].mxu0
    %v995 = vadd.f32 0.0, %v994
    %996 = vdwg.mxu0
    %997 = vmatprep.subr.mxu0 %v484
    %998 = vmatpush1.msra.mxu0 %v483
    %999 = vmatprep.subr.mxu0 %v488
    %1000 = vmatpush1.msra.mxu0 %v487
    %1001 = vmatprep.subr.mxu0 %v492
    %1002 = vmatpush1.msra.mxu0 %v491
    %1003 = vmatprep.subr.mxu0 %v496
    %1004 = vmatpush1.msra.mxu0 %v495
    %1005 = vmatprep.subr.mxu0 %v500
    %1006 = vmatpush1.msra.mxu0 %v499
    %1007 = vmatprep.subr.mxu0 %v504
    %1008 = vmatpush1.msra.mxu0 %v503
    %1009 = vmatprep.subr.mxu0 %v508
    %1010 = vmatpush1.msra.mxu0 %v507
    %1011 = vmatprep.subr.mxu0 %v512
    %1012 = vmatpush1.msra.mxu0 %v511
    %1013 = vmatprep.subr.mxu0 %v516
    %1014 = vmatpush1.msra.mxu0 %v515
    %1015 = vmatprep.subr.mxu0 %v520
    %1016 = vmatpush1.msra.mxu0 %v519
    %1017 = vmatprep.subr.mxu0 %v524
    %1018 = vmatpush1.msra.mxu0 %v523
    %1019 = vmatprep.subr.mxu0 %v528
    %1020 = vmatpush1.msra.mxu0 %v527
    %1021 = vmatprep.subr.mxu0 %v532
    %1022 = vmatpush1.msra.mxu0 %v531
    %1023 = vmatprep.subr.mxu0 %v536
    %1024 = vmatpush1.msra.mxu0 %v535
    %1025 = vmatprep.subr.mxu0 %v540
    %1026 = vmatpush1.msra.mxu0 %v539
    %1027 = vmatprep.subr.mxu0 %v544
    %1028 = vmatpush1.msra.mxu0 %v543
    %1029 = vmatprep.subr.mxu0 0.0
    %1030 = vmatpush1.msra.mxu0 0.0
    %1031 = vmatprep.subr.mxu0 0.0
    %1032 = vmatpush1.msra.mxu0 0.0
    %1033 = vmatprep.subr.mxu0 0.0
    %1034 = vmatpush1.msra.mxu0 0.0
    %1035 = vmatprep.subr.mxu0 0.0
    %1036 = vmatpush1.msra.mxu0 0.0
    %1037 = vmatprep.subr.mxu0 0.0
    %1038 = vmatpush1.msra.mxu0 0.0
    %1039 = vmatprep.subr.mxu0 0.0
    %1040 = vmatpush1.msra.mxu0 0.0
    %1041 = vmatprep.subr.mxu0 0.0
    %1042 = vmatpush1.msra.mxu0 0.0
    %1043 = vmatprep.subr.mxu0 0.0
    %1044 = vmatpush1.msra.mxu0 0.0
    %1045 = vmatprep.subr.mxu0 0.0
    %1046 = vmatpush1.msra.mxu0 0.0
    %1047 = vmatprep.subr.mxu0 0.0
    %1048 = vmatpush1.msra.mxu0 0.0
    %1049 = vmatprep.subr.mxu0 0.0
    %1050 = vmatpush1.msra.mxu0 0.0
    %1051 = vmatprep.subr.mxu0 0.0
    %1052 = vmatpush1.msra.mxu0 0.0
    %1053 = vmatprep.subr.mxu0 0.0
    %1054 = vmatpush1.msra.mxu0 0.0
    %1055 = vmatprep.subr.mxu0 0.0
    %1056 = vmatpush1.msra.mxu0 0.0
    %1057 = vmatprep.subr.mxu0 0.0
    %1058 = vmatpush1.msra.mxu0 0.0
    %1059 = vmatprep.subr.mxu0 0.0
    %1060 = vmatpush1.msra.mxu0 0.0
    %1061 = vmatprep.mubr.f32.mxu0 0.0
    %1062 = vmatmul.mubr.f32.gmra.mrb[0].mxu0 %v919
    %v1063 = vpop.f32.mrb[0].mxu0
    %v1064 = vadd.f32 0.0, %v1063
    %v1065 = vpop.f32.mrb[0].mxu0
    %v1066 = vadd.f32 0.0, %v1065
    %1067 = vdwg.mxu0
    %v1068 = vadd.f32 %v922, %v993
    %v1069 = vadd.f32 %v923, %v995
    %v1070 = vadd.f32 %v924, %v1064
    %v1071 = vadd.f32 %v925, %v1066
    %v1072 = vxor.u32 %v1068, 2147483648
    %v1073 = vxor.u32 %v1069, 2147483648
    %v1074 = vxor.u32 %v1070, 2147483648
    %v1075 = vmul.f32 %v1072, 1.442695
    %v1076 = vpow.pop %v1075
    %v1077 = vmul.f32 %v1073, 1.442695
    %v1078 = vpow.pop %v1077
    %v1079 = vmul.f32 %v1074, 1.442695
    %v1080 = vpow.pop %v1079
    %v1081 = vadd.f32 %v1076, 1.0
    %v1082 = vadd.f32 %v1078, 1.0
    %v1083 = vadd.f32 %v1080, 1.0
    %v1084 = vrcp.pop %v1081
    %v1085 = vmul.f32 1.0, %v1084
    %v1086 = vrcp.pop %v1082
    %v1087 = vmul.f32 1.0, %v1086
    %v1088 = vrcp.pop %v1083
    %v1089 = vmul.f32 1.0, %v1088
    %v1090 = vtanh.pop %v1071
    %v1091 = vmul.f32 %v1087, %v920
    %v1092 = vmul.f32 %v1085, %v1090
    %v1093 = vadd.f32 %v1091, %v1092
    %v1094 = vtanh.pop %v1093
    %v1095 = vmul.f32 %v1089, %v1094
    %vm1096 = vcmp.gt.s32.totalorder %v548, 2
    %v1097 = vsel %vm1096, 1, 0
    %1098 = vset.pattern.permute.xlu0 0
    %1099 = vperm.xlu0 %1098, %v1097
    %v1100 = vpop.permute.xlu0 %1099
    %vm1101 = vcmp.eq.s32.totalorder %v1100, 1
    %v1102 = vsel %vm1101, %v1095, 0.0
    %s1103 = scalar_lea.vmem [#allocation5], 16
    %1104 = vst [vmem:[%s1103] sm:$0xff] %v1102
    %v1105 = vsel %vm1101, %v1095, %v919
    %v1106 = vsel %vm1101, %v1093, %v920
    %s1107 = scalar_lea.vmem [#allocation4], 96
    %v1108 = vld [vmem:[%s1107] sm:$0xff]
    %v1109 = vld [vmem:[%s1107 + $0x8] sm:$0xff]
    %v1110 = vld [vmem:[%s1107 + $0x10] sm:$0xff]
    %v1111 = vld [vmem:[%s1107 + $0x18] sm:$0xff]
    %1112 = vmatprep.subr.mxu0 %v482
    %1113 = vmatpush1.msra.mxu0 %v481
    %1114 = vmatprep.subr.mxu0 %v486
    %1115 = vmatpush1.msra.mxu0 %v485
    %1116 = vmatprep.subr.mxu0 %v490
    %1117 = vmatpush1.msra.mxu0 %v489
    %1118 = vmatprep.subr.mxu0 %v494
    %1119 = vmatpush1.msra.mxu0 %v493
    %1120 = vmatprep.subr.mxu0 %v498
    %1121 = vmatpush1.msra.mxu0 %v497
    %1122 = vmatprep.subr.mxu0 %v502
    %1123 = vmatpush1.msra.mxu0 %v501
    %1124 = vmatprep.subr.mxu0 %v506
    %1125 = vmatpush1.msra.mxu0 %v505
    %1126 = vmatprep.subr.mxu0 %v510
    %1127 = vmatpush1.msra.mxu0 %v509
    %1128 = vmatprep.subr.mxu0 %v514
    %1129 = vmatpush1.msra.mxu0 %v513
    %1130 = vmatprep.subr.mxu0 %v518
    %1131 = vmatpush1.msra.mxu0 %v517
    %1132 = vmatprep.subr.mxu0 %v522
    %1133 = vmatpush1.msra.mxu0 %v521
    %1134 = vmatprep.subr.mxu0 %v526
    %1135 = vmatpush1.msra.mxu0 %v525
    %1136 = vmatprep.subr.mxu0 %v530
    %1137 = vmatpush1.msra.mxu0 %v529
    %1138 = vmatprep.subr.mxu0 %v534
    %1139 = vmatpush1.msra.mxu0 %v533
    %1140 = vmatprep.subr.mxu0 %v538
    %1141 = vmatpush1.msra.mxu0 %v537
    %1142 = vmatprep.subr.mxu0 %v542
    %1143 = vmatpush1.msra.mxu0 %v541
    %1144 = vmatprep.subr.mxu0 0.0
    %1145 = vmatpush1.msra.mxu0 0.0
    %1146 = vmatprep.subr.mxu0 0.0
    %1147 = vmatpush1.msra.mxu0 0.0
    %1148 = vmatprep.subr.mxu0 0.0
    %1149 = vmatpush1.msra.mxu0 0.0
    %1150 = vmatprep.subr.mxu0 0.0
    %1151 = vmatpush1.msra.mxu0 0.0
    %1152 = vmatprep.subr.mxu0 0.0
    %1153 = vmatpush1.msra.mxu0 0.0
    %1154 = vmatprep.subr.mxu0 0.0
    %1155 = vmatpush1.msra.mxu0 0.0
    %1156 = vmatprep.subr.mxu0 0.0
    %1157 = vmatpush1.msra.mxu0 0.0
    %1158 = vmatprep.subr.mxu0 0.0
    %1159 = vmatpush1.msra.mxu0 0.0
    %1160 = vmatprep.subr.mxu0 0.0
    %1161 = vmatpush1.msra.mxu0 0.0
    %1162 = vmatprep.subr.mxu0 0.0
    %1163 = vmatpush1.msra.mxu0 0.0
    %1164 = vmatprep.subr.mxu0 0.0
    %1165 = vmatpush1.msra.mxu0 0.0
    %1166 = vmatprep.subr.mxu0 0.0
    %1167 = vmatpush1.msra.mxu0 0.0
    %1168 = vmatprep.subr.mxu0 0.0
    %1169 = vmatpush1.msra.mxu0 0.0
    %1170 = vmatprep.subr.mxu0 0.0
    %1171 = vmatpush1.msra.mxu0 0.0
    %1172 = vmatprep.subr.mxu0 0.0
    %1173 = vmatpush1.msra.mxu0 0.0
    %1174 = vmatprep.subr.mxu0 0.0
    %1175 = vmatpush1.msra.mxu0 0.0
    %1176 = vmatprep.mubr.f32.mxu0 0.0
    %1177 = vmatmul.mubr.f32.gmra.mrb[0].mxu0 %v1105
    %v1178 = vpop.f32.mrb[0].mxu0
    %v1179 = vadd.f32 0.0, %v1178
    %v1180 = vpop.f32.mrb[0].mxu0
    %v1181 = vadd.f32 0.0, %v1180
    %1182 = vdwg.mxu0
    %1183 = vmatprep.subr.mxu0 %v484
    %1184 = vmatpush1.msra.mxu0 %v483
    %1185 = vmatprep.subr.mxu0 %v488
    %1186 = vmatpush1.msra.mxu0 %v487
    %1187 = vmatprep.subr.mxu0 %v492
    %1188 = vmatpush1.msra.mxu0 %v491
    %1189 = vmatprep.subr.mxu0 %v496
    %1190 = vmatpush1.msra.mxu0 %v495
    %1191 = vmatprep.subr.mxu0 %v500
    %1192 = vmatpush1.msra.mxu0 %v499
    %1193 = vmatprep.subr.mxu0 %v504
    %1194 = vmatpush1.msra.mxu0 %v503
    %1195 = vmatprep.subr.mxu0 %v508
    %1196 = vmatpush1.msra.mxu0 %v507
    %1197 = vmatprep.subr.mxu0 %v512
    %1198 = vmatpush1.msra.mxu0 %v511
    %1199 = vmatprep.subr.mxu0 %v516
    %1200 = vmatpush1.msra.mxu0 %v515
    %1201 = vmatprep.subr.mxu0 %v520
    %1202 = vmatpush1.msra.mxu0 %v519
    %1203 = vmatprep.subr.mxu0 %v524
    %1204 = vmatpush1.msra.mxu0 %v523
    %1205 = vmatprep.subr.mxu0 %v528
    %1206 = vmatpush1.msra.mxu0 %v527
    %1207 = vmatprep.subr.mxu0 %v532
    %1208 = vmatpush1.msra.mxu0 %v531
    %1209 = vmatprep.subr.mxu0 %v536
    %1210 = vmatpush1.msra.mxu0 %v535
    %1211 = vmatprep.subr.mxu0 %v540
    %1212 = vmatpush1.msra.mxu0 %v539
    %1213 = vmatprep.subr.mxu0 %v544
    %1214 = vmatpush1.msra.mxu0 %v543
    %1215 = vmatprep.subr.mxu0 0.0
    %1216 = vmatpush1.msra.mxu0 0.0
    %1217 = vmatprep.subr.mxu0 0.0
    %1218 = vmatpush1.msra.mxu0 0.0
    %1219 = vmatprep.subr.mxu0 0.0
    %1220 = vmatpush1.msra.mxu0 0.0
    %1221 = vmatprep.subr.mxu0 0.0
    %1222 = vmatpush1.msra.mxu0 0.0
    %1223 = vmatprep.subr.mxu0 0.0
    %1224 = vmatpush1.msra.mxu0 0.0
    %1225 = vmatprep.subr.mxu0 0.0
    %1226 = vmatpush1.msra.mxu0 0.0
    %1227 = vmatprep.subr.mxu0 0.0
    %1228 = vmatpush1.msra.mxu0 0.0
    %1229 = vmatprep.subr.mxu0 0.0
    %1230 = vmatpush1.msra.mxu0 0.0
    %1231 = vmatprep.subr.mxu0 0.0
    %1232 = vmatpush1.msra.mxu0 0.0
    %1233 = vmatprep.subr.mxu0 0.0
    %1234 = vmatpush1.msra.mxu0 0.0
    %1235 = vmatprep.subr.mxu0 0.0
    %1236 = vmatpush1.msra.mxu0 0.0
    %1237 = vmatprep.subr.mxu0 0.0
    %1238 = vmatpush1.msra.mxu0 0.0
    %1239 = vmatprep.subr.mxu0 0.0
    %1240 = vmatpush1.msra.mxu0 0.0
    %1241 = vmatprep.subr.mxu0 0.0
    %1242 = vmatpush1.msra.mxu0 0.0
    %1243 = vmatprep.subr.mxu0 0.0
    %1244 = vmatpush1.msra.mxu0 0.0
    %1245 = vmatprep.subr.mxu0 0.0
    %1246 = vmatpush1.msra.mxu0 0.0
    %1247 = vmatprep.mubr.f32.mxu0 0.0
    %1248 = vmatmul.mubr.f32.gmra.mrb[0].mxu0 %v1105
    %v1249 = vpop.f32.mrb[0].mxu0
    %v1250 = vadd.f32 0.0, %v1249
    %v1251 = vpop.f32.mrb[0].mxu0
    %v1252 = vadd.f32 0.0, %v1251
    %1253 = vdwg.mxu0
    %v1254 = vadd.f32 %v1108, %v1179
    %v1255 = vadd.f32 %v1109, %v1181
    %v1256 = vadd.f32 %v1110, %v1250
    %v1257 = vadd.f32 %v1111, %v1252
    %v1258 = vxor.u32 %v1254, 2147483648
    %v1259 = vxor.u32 %v1255, 2147483648
    %v1260 = vxor.u32 %v1256, 2147483648
    %v1261 = vmul.f32 %v1258, 1.442695
    %v1262 = vpow.pop %v1261
    %v1263 = vmul.f32 %v1259, 1.442695
    %v1264 = vpow.pop %v1263
    %v1265 = vmul.f32 %v1260, 1.442695
    %v1266 = vpow.pop %v1265
    %v1267 = vadd.f32 %v1262, 1.0
    %v1268 = vadd.f32 %v1264, 1.0
    %v1269 = vadd.f32 %v1266, 1.0
    %v1270 = vrcp.pop %v1267
    %v1271 = vmul.f32 1.0, %v1270
    %v1272 = vrcp.pop %v1268
    %v1273 = vmul.f32 1.0, %v1272
    %v1274 = vrcp.pop %v1269
    %v1275 = vmul.f32 1.0, %v1274
    %v1276 = vtanh.pop %v1257
    %v1277 = vmul.f32 %v1273, %v1106
    %v1278 = vmul.f32 %v1271, %v1276
    %v1279 = vadd.f32 %v1277, %v1278
    %v1280 = vtanh.pop %v1279
    %v1281 = vmul.f32 %v1275, %v1280
    %vm1282 = vcmp.gt.s32.totalorder %v548, 3
    %v1283 = vsel %vm1282, 1, 0
    %1284 = vset.pattern.permute.xlu0 0
    %1285 = vperm.xlu0 %1284, %v1283
    %v1286 = vpop.permute.xlu0 %1285
    %vm1287 = vcmp.eq.s32.totalorder %v1286, 1
    %v1288 = vsel %vm1287, %v1281, 0.0
    %s1289 = scalar_lea.vmem [#allocation5], 24
    %1290 = vst [vmem:[%s1289] sm:$0xff] %v1288
    %v1291 = vsel %vm1287, %v1281, %v1105
    %v1292 = vsel %vm1287, %v1279, %v1106
    %s1293 = scalar_lea.vmem [#allocation4], 128
    %v1294 = vld [vmem:[%s1293] sm:$0xff]
    %v1295 = vld [vmem:[%s1293 + $0x8] sm:$0xff]
    %v1296 = vld [vmem:[%s1293 + $0x10] sm:$0xff]
    %v1297 = vld [vmem:[%s1293 + $0x18] sm:$0xff]
    %1298 = vmatprep.subr.mxu0 %v482
    %1299 = vmatpush1.msra.mxu0 %v481
    %1300 = vmatprep.subr.mxu0 %v486
    %1301 = vmatpush1.msra.mxu0 %v485
    %1302 = vmatprep.subr.mxu0 %v490
    %1303 = vmatpush1.msra.mxu0 %v489
    %1304 = vmatprep.subr.mxu0 %v494
    %1305 = vmatpush1.msra.mxu0 %v493
    %1306 = vmatprep.subr.mxu0 %v498
    %1307 = vmatpush1.msra.mxu0 %v497
    %1308 = vmatprep.subr.mxu0 %v502
    %1309 = vmatpush1.msra.mxu0 %v501
    %1310 = vmatprep.subr.mxu0 %v506
    %1311 = vmatpush1.msra.mxu0 %v505
    %1312 = vmatprep.subr.mxu0 %v510
    %1313 = vmatpush1.msra.mxu0 %v509
    %1314 = vmatprep.subr.mxu0 %v514
    %1315 = vmatpush1.msra.mxu0 %v513
    %1316 = vmatprep.subr.mxu0 %v518
    %1317 = vmatpush1.msra.mxu0 %v517
    %1318 = vmatprep.subr.mxu0 %v522
    %1319 = vmatpush1.msra.mxu0 %v521
    %1320 = vmatprep.subr.mxu0 %v526
    %1321 = vmatpush1.msra.mxu0 %v525
    %1322 = vmatprep.subr.mxu0 %v530
    %1323 = vmatpush1.msra.mxu0 %v529
    %1324 = vmatprep.subr.mxu0 %v534
    %1325 = vmatpush1.msra.mxu0 %v533
    %1326 = vmatprep.subr.mxu0 %v538
    %1327 = vmatpush1.msra.mxu0 %v537
    %1328 = vmatprep.subr.mxu0 %v542
    %1329 = vmatpush1.msra.mxu0 %v541
    %1330 = vmatprep.subr.mxu0 0.0
    %1331 = vmatpush1.msra.mxu0 0.0
    %1332 = vmatprep.subr.mxu0 0.0
    %1333 = vmatpush1.msra.mxu0 0.0
    %1334 = vmatprep.subr.mxu0 0.0
    %1335 = vmatpush1.msra.mxu0 0.0
    %1336 = vmatprep.subr.mxu0 0.0
    %1337 = vmatpush1.msra.mxu0 0.0
    %1338 = vmatprep.subr.mxu0 0.0
    %1339 = vmatpush1.msra.mxu0 0.0
    %1340 = vmatprep.subr.mxu0 0.0
    %1341 = vmatpush1.msra.mxu0 0.0
    %1342 = vmatprep.subr.mxu0 0.0
    %1343 = vmatpush1.msra.mxu0 0.0
    %1344 = vmatprep.subr.mxu0 0.0
    %1345 = vmatpush1.msra.mxu0 0.0
    %1346 = vmatprep.subr.mxu0 0.0
    %1347 = vmatpush1.msra.mxu0 0.0
    %1348 = vmatprep.subr.mxu0 0.0
    %1349 = vmatpush1.msra.mxu0 0.0
    %1350 = vmatprep.subr.mxu0 0.0
    %1351 = vmatpush1.msra.mxu0 0.0
    %1352 = vmatprep.subr.mxu0 0.0
    %1353 = vmatpush1.msra.mxu0 0.0
    %1354 = vmatprep.subr.mxu0 0.0
    %1355 = vmatpush1.msra.mxu0 0.0
    %1356 = vmatprep.subr.mxu0 0.0
    %1357 = vmatpush1.msra.mxu0 0.0
    %1358 = vmatprep.subr.mxu0 0.0
    %1359 = vmatpush1.msra.mxu0 0.0
    %1360 = vmatprep.subr.mxu0 0.0
    %1361 = vmatpush1.msra.mxu0 0.0
    %1362 = vmatprep.mubr.f32.mxu0 0.0
    %1363 = vmatmul.mubr.f32.gmra.mrb[0].mxu0 %v1291
    %v1364 = vpop.f32.mrb[0].mxu0
    %v1365 = vadd.f32 0.0, %v1364
    %v1366 = vpop.f32.mrb[0].mxu0
    %v1367 = vadd.f32 0.0, %v1366
    %1368 = vdwg.mxu0
    %1369 = vmatprep.subr.mxu0 %v484
    %1370 = vmatpush1.msra.mxu0 %v483
    %1371 = vmatprep.subr.mxu0 %v488
    %1372 = vmatpush1.msra.mxu0 %v487
    %1373 = vmatprep.subr.mxu0 %v492
    %1374 = vmatpush1.msra.mxu0 %v491
    %1375 = vmatprep.subr.mxu0 %v496
    %1376 = vmatpush1.msra.mxu0 %v495
    %1377 = vmatprep.subr.mxu0 %v500
    %1378 = vmatpush1.msra.mxu0 %v499
    %1379 = vmatprep.subr.mxu0 %v504
    %1380 = vmatpush1.msra.mxu0 %v503
    %1381 = vmatprep.subr.mxu0 %v508
    %1382 = vmatpush1.msra.mxu0 %v507
    %1383 = vmatprep.subr.mxu0 %v512
    %1384 = vmatpush1.msra.mxu0 %v511
    %1385 = vmatprep.subr.mxu0 %v516
    %1386 = vmatpush1.msra.mxu0 %v515
    %1387 = vmatprep.subr.mxu0 %v520
    %1388 = vmatpush1.msra.mxu0 %v519
    %1389 = vmatprep.subr.mxu0 %v524
    %1390 = vmatpush1.msra.mxu0 %v523
    %1391 = vmatprep.subr.mxu0 %v528
    %1392 = vmatpush1.msra.mxu0 %v527
    %1393 = vmatprep.subr.mxu0 %v532
    %1394 = vmatpush1.msra.mxu0 %v531
    %1395 = vmatprep.subr.mxu0 %v536
    %1396 = vmatpush1.msra.mxu0 %v535
    %1397 = vmatprep.subr.mxu0 %v540
    %1398 = vmatpush1.msra.mxu0 %v539
    %1399 = vmatprep.subr.mxu0 %v544
    %1400 = vmatpush1.msra.mxu0 %v543
    %1401 = vmatprep.subr.mxu0 0.0
    %1402 = vmatpush1.msra.mxu0 0.0
    %1403 = vmatprep.subr.mxu0 0.0
    %1404 = vmatpush1.msra.mxu0 0.0
    %1405 = vmatprep.subr.mxu0 0.0
    %1406 = vmatpush1.msra.mxu0 0.0
    %1407 = vmatprep.subr.mxu0 0.0
    %1408 = vmatpush1.msra.mxu0 0.0
    %1409 = vmatprep.subr.mxu0 0.0
    %1410 = vmatpush1.msra.mxu0 0.0
    %1411 = vmatprep.subr.mxu0 0.0
    %1412 = vmatpush1.msra.mxu0 0.0
    %1413 = vmatprep.subr.mxu0 0.0
    %1414 = vmatpush1.msra.mxu0 0.0
    %1415 = vmatprep.subr.mxu0 0.0
    %1416 = vmatpush1.msra.mxu0 0.0
    %1417 = vmatprep.subr.mxu0 0.0
    %1418 = vmatpush1.msra.mxu0 0.0
    %1419 = vmatprep.subr.mxu0 0.0
    %1420 = vmatpush1.msra.mxu0 0.0
    %1421 = vmatprep.subr.mxu0 0.0
    %1422 = vmatpush1.msra.mxu0 0.0
    %1423 = vmatprep.subr.mxu0 0.0
    %1424 = vmatpush1.msra.mxu0 0.0
    %1425 = vmatprep.subr.mxu0 0.0
    %1426 = vmatpush1.msra.mxu0 0.0
    %1427 = vmatprep.subr.mxu0 0.0
    %1428 = vmatpush1.msra.mxu0 0.0
    %1429 = vmatprep.subr.mxu0 0.0
    %1430 = vmatpush1.msra.mxu0 0.0
    %1431 = vmatprep.subr.mxu0 0.0
    %1432 = vmatpush1.msra.mxu0 0.0
    %1433 = vmatprep.mubr.f32.mxu0 0.0
    %1434 = vmatmul.mubr.f32.gmra.mrb[0].mxu0 %v1291
    %v1435 = vpop.f32.mrb[0].mxu0
    %v1436 = vadd.f32 0.0, %v1435
    %v1437 = vpop.f32.mrb[0].mxu0
    %v1438 = vadd.f32 0.0, %v1437
    %1439 = vdwg.mxu0
    %v1440 = vadd.f32 %v1294, %v1365
    %v1441 = vadd.f32 %v1295, %v1367
    %v1442 = vadd.f32 %v1296, %v1436
    %v1443 = vadd.f32 %v1297, %v1438
    %v1444 = vxor.u32 %v1440, 2147483648
    %v1445 = vxor.u32 %v1441, 2147483648
    %v1446 = vxor.u32 %v1442, 2147483648
    %v1447 = vmul.f32 %v1444, 1.442695
    %v1448 = vpow.pop %v1447
    %v1449 = vmul.f32 %v1445, 1.442695
    %v1450 = vpow.pop %v1449
    %v1451 = vmul.f32 %v1446, 1.442695
    %v1452 = vpow.pop %v1451
    %v1453 = vadd.f32 %v1448, 1.0
    %v1454 = vadd.f32 %v1450, 1.0
    %v1455 = vadd.f32 %v1452, 1.0
    %v1456 = vrcp.pop %v1453
    %v1457 = vmul.f32 1.0, %v1456
    %v1458 = vrcp.pop %v1454
    %v1459 = vmul.f32 1.0, %v1458
    %v1460 = vrcp.pop %v1455
    %v1461 = vmul.f32 1.0, %v1460
    %v1462 = vtanh.pop %v1443
    %v1463 = vmul.f32 %v1459, %v1292
    %v1464 = vmul.f32 %v1457, %v1462
    %v1465 = vadd.f32 %v1463, %v1464
    %v1466 = vtanh.pop %v1465
    %v1467 = vmul.f32 %v1461, %v1466
    %vm1468 = vcmp.gt.s32.totalorder %v548, 4
    %v1469 = vsel %vm1468, 1, 0
    %1470 = vset.pattern.permute.xlu0 0
    %1471 = vperm.xlu0 %1470, %v1469
    %v1472 = vpop.permute.xlu0 %1471
    %vm1473 = vcmp.eq.s32.totalorder %v1472, 1
    %v1474 = vsel %vm1473, %v1467, 0.0
    %s1475 = scalar_lea.vmem [#allocation5], 32
    %1476 = vst [vmem:[%s1475] sm:$0xff] %v1474
    %v1477 = vsel %vm1473, %v1467, %v1291
    %v1478 = vsel %vm1473, %v1465, %v1292
    %s1479 = scalar_lea.vmem [#allocation4], 160
    %v1480 = vld [vmem:[%s1479] sm:$0xff]
    %v1481 = vld [vmem:[%s1479 + $0x8] sm:$0xff]
    %v1482 = vld [vmem:[%s1479 + $0x10] sm:$0xff]
    %v1483 = vld [vmem:[%s1479 + $0x18] sm:$0xff]
    %1484 = vmatprep.subr.mxu0 %v482
    %1485 = vmatpush1.msra.mxu0 %v481
    %1486 = vmatprep.subr.mxu0 %v486
    %1487 = vmatpush1.msra.mxu0 %v485
    %1488 = vmatprep.subr.mxu0 %v490
    %1489 = vmatpush1.msra.mxu0 %v489
    %1490 = vmatprep.subr.mxu0 %v494
    %1491 = vmatpush1.msra.mxu0 %v493
    %1492 = vmatprep.subr.mxu0 %v498
    %1493 = vmatpush1.msra.mxu0 %v497
    %1494 = vmatprep.subr.mxu0 %v502
    %1495 = vmatpush1.msra.mxu0 %v501
    %1496 = vmatprep.subr.mxu0 %v506
    %1497 = vmatpush1.msra.mxu0 %v505
    %1498 = vmatprep.subr.mxu0 %v510
    %1499 = vmatpush1.msra.mxu0 %v509
    %1500 = vmatprep.subr.mxu0 %v514
    %1501 = vmatpush1.msra.mxu0 %v513
    %1502 = vmatprep.subr.mxu0 %v518
    %1503 = vmatpush1.msra.mxu0 %v517
    %1504 = vmatprep.subr.mxu0 %v522
    %1505 = vmatpush1.msra.mxu0 %v521
    %1506 = vmatprep.subr.mxu0 %v526
    %1507 = vmatpush1.msra.mxu0 %v525
    %1508 = vmatprep.subr.mxu0 %v530
    %1509 = vmatpush1.msra.mxu0 %v529
    %1510 = vmatprep.subr.mxu0 %v534
    %1511 = vmatpush1.msra.mxu0 %v533
    %1512 = vmatprep.subr.mxu0 %v538
    %1513 = vmatpush1.msra.mxu0 %v537
    %1514 = vmatprep.subr.mxu0 %v542
    %1515 = vmatpush1.msra.mxu0 %v541
    %1516 = vmatprep.subr.mxu0 0.0
    %1517 = vmatpush1.msra.mxu0 0.0
    %1518 = vmatprep.subr.mxu0 0.0
    %1519 = vmatpush1.msra.mxu0 0.0
    %1520 = vmatprep.subr.mxu0 0.0
    %1521 = vmatpush1.msra.mxu0 0.0
    %1522 = vmatprep.subr.mxu0 0.0
    %1523 = vmatpush1.msra.mxu0 0.0
    %1524 = vmatprep.subr.mxu0 0.0
    %1525 = vmatpush1.msra.mxu0 0.0
    %1526 = vmatprep.subr.mxu0 0.0
    %1527 = vmatpush1.msra.mxu0 0.0
    %1528 = vmatprep.subr.mxu0 0.0
    %1529 = vmatpush1.msra.mxu0 0.0
    %1530 = vmatprep.subr.mxu0 0.0
    %1531 = vmatpush1.msra.mxu0 0.0
    %1532 = vmatprep.subr.mxu0 0.0
    %1533 = vmatpush1.msra.mxu0 0.0
    %1534 = vmatprep.subr.mxu0 0.0
    %1535 = vmatpush1.msra.mxu0 0.0
    %1536 = vmatprep.subr.mxu0 0.0
    %1537 = vmatpush1.msra.mxu0 0.0
    %1538 = vmatprep.subr.mxu0 0.0
    %1539 = vmatpush1.msra.mxu0 0.0
    %1540 = vmatprep.subr.mxu0 0.0
    %1541 = vmatpush1.msra.mxu0 0.0
    %1542 = vmatprep.subr.mxu0 0.0
    %1543 = vmatpush1.msra.mxu0 0.0
    %1544 = vmatprep.subr.mxu0 0.0
    %1545 = vmatpush1.msra.mxu0 0.0
    %1546 = vmatprep.subr.mxu0 0.0
    %1547 = vmatpush1.msra.mxu0 0.0
    %1548 = vmatprep.mubr.f32.mxu0 0.0
    %1549 = vmatmul.mubr.f32.gmra.mrb[0].mxu0 %v1477
    %v1550 = vpop.f32.mrb[0].mxu0
    %v1551 = vadd.f32 0.0, %v1550
    %v1552 = vpop.f32.mrb[0].mxu0
    %v1553 = vadd.f32 0.0, %v1552
    %1554 = vdwg.mxu0
    %1555 = vmatprep.subr.mxu0 %v484
    %1556 = vmatpush1.msra.mxu0 %v483
    %1557 = vmatprep.subr.mxu0 %v488
    %1558 = vmatpush1.msra.mxu0 %v487
    %1559 = vmatprep.subr.mxu0 %v492
    %1560 = vmatpush1.msra.mxu0 %v491
    %1561 = vmatprep.subr.mxu0 %v496
    %1562 = vmatpush1.msra.mxu0 %v495
    %1563 = vmatprep.subr.mxu0 %v500
    %1564 = vmatpush1.msra.mxu0 %v499
    %1565 = vmatprep.subr.mxu0 %v504
    %1566 = vmatpush1.msra.mxu0 %v503
    %1567 = vmatprep.subr.mxu0 %v508
    %1568 = vmatpush1.msra.mxu0 %v507
    %1569 = vmatprep.subr.mxu0 %v512
    %1570 = vmatpush1.msra.mxu0 %v511
    %1571 = vmatprep.subr.mxu0 %v516
    %1572 = vmatpush1.msra.mxu0 %v515
    %1573 = vmatprep.subr.mxu0 %v520
    %1574 = vmatpush1.msra.mxu0 %v519
    %1575 = vmatprep.subr.mxu0 %v524
    %1576 = vmatpush1.msra.mxu0 %v523
    %1577 = vmatprep.subr.mxu0 %v528
    %1578 = vmatpush1.msra.mxu0 %v527
    %1579 = vmatprep.subr.mxu0 %v532
    %1580 = vmatpush1.msra.mxu0 %v531
    %1581 = vmatprep.subr.mxu0 %v536
    %1582 = vmatpush1.msra.mxu0 %v535
    %1583 = vmatprep.subr.mxu0 %v540
    %1584 = vmatpush1.msra.mxu0 %v539
    %1585 = vmatprep.subr.mxu0 %v544
    %1586 = vmatpush1.msra.mxu0 %v543
    %1587 = vmatprep.subr.mxu0 0.0
    %1588 = vmatpush1.msra.mxu0 0.0
    %1589 = vmatprep.subr.mxu0 0.0
    %1590 = vmatpush1.msra.mxu0 0.0
    %1591 = vmatprep.subr.mxu0 0.0
    %1592 = vmatpush1.msra.mxu0 0.0
    %1593 = vmatprep.subr.mxu0 0.0
    %1594 = vmatpush1.msra.mxu0 0.0
    %1595 = vmatprep.subr.mxu0 0.0
    %1596 = vmatpush1.msra.mxu0 0.0
    %1597 = vmatprep.subr.mxu0 0.0
    %1598 = vmatpush1.msra.mxu0 0.0
    %1599 = vmatprep.subr.mxu0 0.0
    %1600 = vmatpush1.msra.mxu0 0.0
    %1601 = vmatprep.subr.mxu0 0.0
    %1602 = vmatpush1.msra.mxu0 0.0
    %1603 = vmatprep.subr.mxu0 0.0
    %1604 = vmatpush1.msra.mxu0 0.0
    %1605 = vmatprep.subr.mxu0 0.0
    %1606 = vmatpush1.msra.mxu0 0.0
    %1607 = vmatprep.subr.mxu0 0.0
    %1608 = vmatpush1.msra.mxu0 0.0
    %1609 = vmatprep.subr.mxu0 0.0
    %1610 = vmatpush1.msra.mxu0 0.0
    %1611 = vmatprep.subr.mxu0 0.0
    %1612 = vmatpush1.msra.mxu0 0.0
    %1613 = vmatprep.subr.mxu0 0.0
    %1614 = vmatpush1.msra.mxu0 0.0
    %1615 = vmatprep.subr.mxu0 0.0
    %1616 = vmatpush1.msra.mxu0 0.0
    %1617 = vmatprep.subr.mxu0 0.0
    %1618 = vmatpush1.msra.mxu0 0.0
    %1619 = vmatprep.mubr.f32.mxu0 0.0
    %1620 = vmatmul.mubr.f32.gmra.mrb[0].mxu0 %v1477
    %v1621 = vpop.f32.mrb[0].mxu0
    %v1622 = vadd.f32 0.0, %v1621
    %v1623 = vpop.f32.mrb[0].mxu0
    %v1624 = vadd.f32 0.0, %v1623
    %1625 = vdwg.mxu0
    %v1626 = vadd.f32 %v1480, %v1551
    %v1627 = vadd.f32 %v1481, %v1553
    %v1628 = vadd.f32 %v1482, %v1622
    %v1629 = vadd.f32 %v1483, %v1624
    %v1630 = vxor.u32 %v1626, 2147483648
    %v1631 = vxor.u32 %v1627, 2147483648
    %v1632 = vxor.u32 %v1628, 2147483648
    %v1633 = vmul.f32 %v1630, 1.442695
    %v1634 = vpow.pop %v1633
    %v1635 = vmul.f32 %v1631, 1.442695
    %v1636 = vpow.pop %v1635
    %v1637 = vmul.f32 %v1632, 1.442695
    %v1638 = vpow.pop %v1637
    %v1639 = vadd.f32 %v1634, 1.0
    %v1640 = vadd.f32 %v1636, 1.0
    %v1641 = vadd.f32 %v1638, 1.0
    %v1642 = vrcp.pop %v1639
    %v1643 = vmul.f32 1.0, %v1642
    %v1644 = vrcp.pop %v1640
    %v1645 = vmul.f32 1.0, %v1644
    %v1646 = vrcp.pop %v1641
    %v1647 = vmul.f32 1.0, %v1646
    %v1648 = vtanh.pop %v1629
    %v1649 = vmul.f32 %v1645, %v1478
    %v1650 = vmul.f32 %v1643, %v1648
    %v1651 = vadd.f32 %v1649, %v1650
    %v1652 = vtanh.pop %v1651
    %v1653 = vmul.f32 %v1647, %v1652
    %vm1654 = vcmp.gt.s32.totalorder %v548, 5
    %v1655 = vsel %vm1654, 1, 0
    %1656 = vset.pattern.permute.xlu0 0
    %1657 = vperm.xlu0 %1656, %v1655
    %v1658 = vpop.permute.xlu0 %1657
    %vm1659 = vcmp.eq.s32.totalorder %v1658, 1
    %v1660 = vsel %vm1659, %v1653, 0.0
    %s1661 = scalar_lea.vmem [#allocation5], 40
    %1662 = vst [vmem:[%s1661] sm:$0xff] %v1660
    %v1663 = vsel %vm1659, %v1653, %v1477
    %v1664 = vsel %vm1659, %v1651, %v1478
    %s1665 = scalar_lea.vmem [#allocation4], 192
    %v1666 = vld [vmem:[%s1665] sm:$0xff]
    %v1667 = vld [vmem:[%s1665 + $0x8] sm:$0xff]
    %v1668 = vld [vmem:[%s1665 + $0x10] sm:$0xff]
    %v1669 = vld [vmem:[%s1665 + $0x18] sm:$0xff]
    %1670 = vmatprep.subr.mxu0 %v482
    %1671 = vmatpush1.msra.mxu0 %v481
    %1672 = vmatprep.subr.mxu0 %v486
    %1673 = vmatpush1.msra.mxu0 %v485
    %1674 = vmatprep.subr.mxu0 %v490
    %1675 = vmatpush1.msra.mxu0 %v489
    %1676 = vmatprep.subr.mxu0 %v494
    %1677 = vmatpush1.msra.mxu0 %v493
    %1678 = vmatprep.subr.mxu0 %v498
    %1679 = vmatpush1.msra.mxu0 %v497
    %1680 = vmatprep.subr.mxu0 %v502
    %1681 = vmatpush1.msra.mxu0 %v501
    %1682 = vmatprep.subr.mxu0 %v506
    %1683 = vmatpush1.msra.mxu0 %v505
    %1684 = vmatprep.subr.mxu0 %v510
    %1685 = vmatpush1.msra.mxu0 %v509
    %1686 = vmatprep.subr.mxu0 %v514
    %1687 = vmatpush1.msra.mxu0 %v513
    %1688 = vmatprep.subr.mxu0 %v518
    %1689 = vmatpush1.msra.mxu0 %v517
    %1690 = vmatprep.subr.mxu0 %v522
    %1691 = vmatpush1.msra.mxu0 %v521
    %1692 = vmatprep.subr.mxu0 %v526
    %1693 = vmatpush1.msra.mxu0 %v525
    %1694 = vmatprep.subr.mxu0 %v530
    %1695 = vmatpush1.msra.mxu0 %v529
    %1696 = vmatprep.subr.mxu0 %v534
    %1697 = vmatpush1.msra.mxu0 %v533
    %1698 = vmatprep.subr.mxu0 %v538
    %1699 = vmatpush1.msra.mxu0 %v537
    %1700 = vmatprep.subr.mxu0 %v542
    %1701 = vmatpush1.msra.mxu0 %v541
    %1702 = vmatprep.subr.mxu0 0.0
    %1703 = vmatpush1.msra.mxu0 0.0
    %1704 = vmatprep.subr.mxu0 0.0
    %1705 = vmatpush1.msra.mxu0 0.0
    %1706 = vmatprep.subr.mxu0 0.0
    %1707 = vmatpush1.msra.mxu0 0.0
    %1708 = vmatprep.subr.mxu0 0.0
    %1709 = vmatpush1.msra.mxu0 0.0
    %1710 = vmatprep.subr.mxu0 0.0
    %1711 = vmatpush1.msra.mxu0 0.0
    %1712 = vmatprep.subr.mxu0 0.0
    %1713 = vmatpush1.msra.mxu0 0.0
    %1714 = vmatprep.subr.mxu0 0.0
    %1715 = vmatpush1.msra.mxu0 0.0
    %1716 = vmatprep.subr.mxu0 0.0
    %1717 = vmatpush1.msra.mxu0 0.0
    %1718 = vmatprep.subr.mxu0 0.0
    %1719 = vmatpush1.msra.mxu0 0.0
    %1720 = vmatprep.subr.mxu0 0.0
    %1721 = vmatpush1.msra.mxu0 0.0
    %1722 = vmatprep.subr.mxu0 0.0
    %1723 = vmatpush1.msra.mxu0 0.0
    %1724 = vmatprep.subr.mxu0 0.0
    %1725 = vmatpush1.msra.mxu0 0.0
    %1726 = vmatprep.subr.mxu0 0.0
    %1727 = vmatpush1.msra.mxu0 0.0
    %1728 = vmatprep.subr.mxu0 0.0
    %1729 = vmatpush1.msra.mxu0 0.0
    %1730 = vmatprep.subr.mxu0 0.0
    %1731 = vmatpush1.msra.mxu0 0.0
    %1732 = vmatprep.subr.mxu0 0.0
    %1733 = vmatpush1.msra.mxu0 0.0
    %1734 = vmatprep.mubr.f32.mxu0 0.0
    %1735 = vmatmul.mubr.f32.gmra.mrb[0].mxu0 %v1663
    %v1736 = vpop.f32.mrb[0].mxu0
    %v1737 = vadd.f32 0.0, %v1736
    %v1738 = vpop.f32.mrb[0].mxu0
    %v1739 = vadd.f32 0.0, %v1738
    %1740 = vdwg.mxu0
    %1741 = vmatprep.subr.mxu0 %v484
    %1742 = vmatpush1.msra.mxu0 %v483
    %1743 = vmatprep.subr.mxu0 %v488
    %1744 = vmatpush1.msra.mxu0 %v487
    %1745 = vmatprep.subr.mxu0 %v492
    %1746 = vmatpush1.msra.mxu0 %v491
    %1747 = vmatprep.subr.mxu0 %v496
    %1748 = vmatpush1.msra.mxu0 %v495
    %1749 = vmatprep.subr.mxu0 %v500
    %1750 = vmatpush1.msra.mxu0 %v499
    %1751 = vmatprep.subr.mxu0 %v504
    %1752 = vmatpush1.msra.mxu0 %v503
    %1753 = vmatprep.subr.mxu0 %v508
    %1754 = vmatpush1.msra.mxu0 %v507
    %1755 = vmatprep.subr.mxu0 %v512
    %1756 = vmatpush1.msra.mxu0 %v511
    %1757 = vmatprep.subr.mxu0 %v516
    %1758 = vmatpush1.msra.mxu0 %v515
    %1759 = vmatprep.subr.mxu0 %v520
    %1760 = vmatpush1.msra.mxu0 %v519
    %1761 = vmatprep.subr.mxu0 %v524
    %1762 = vmatpush1.msra.mxu0 %v523
    %1763 = vmatprep.subr.mxu0 %v528
    %1764 = vmatpush1.msra.mxu0 %v527
    %1765 = vmatprep.subr.mxu0 %v532
    %1766 = vmatpush1.msra.mxu0 %v531
    %1767 = vmatprep.subr.mxu0 %v536
    %1768 = vmatpush1.msra.mxu0 %v535
    %1769 = vmatprep.subr.mxu0 %v540
    %1770 = vmatpush1.msra.mxu0 %v539
    %1771 = vmatprep.subr.mxu0 %v544
    %1772 = vmatpush1.msra.mxu0 %v543
    %1773 = vmatprep.subr.mxu0 0.0
    %1774 = vmatpush1.msra.mxu0 0.0
    %1775 = vmatprep.subr.mxu0 0.0
    %1776 = vmatpush1.msra.mxu0 0.0
    %1777 = vmatprep.subr.mxu0 0.0
    %1778 = vmatpush1.msra.mxu0 0.0
    %1779 = vmatprep.subr.mxu0 0.0
    %1780 = vmatpush1.msra.mxu0 0.0
    %1781 = vmatprep.subr.mxu0 0.0
    %1782 = vmatpush1.msra.mxu0 0.0
    %1783 = vmatprep.subr.mxu0 0.0
    %1784 = vmatpush1.msra.mxu0 0.0
    %1785 = vmatprep.subr.mxu0 0.0
    %1786 = vmatpush1.msra.mxu0 0.0
    %1787 = vmatprep.subr.mxu0 0.0
    %1788 = vmatpush1.msra.mxu0 0.0
    %1789 = vmatprep.subr.mxu0 0.0
    %1790 = vmatpush1.msra.mxu0 0.0
    %1791 = vmatprep.subr.mxu0 0.0
    %1792 = vmatpush1.msra.mxu0 0.0
    %1793 = vmatprep.subr.mxu0 0.0
    %1794 = vmatpush1.msra.mxu0 0.0
    %1795 = vmatprep.subr.mxu0 0.0
    %1796 = vmatpush1.msra.mxu0 0.0
    %1797 = vmatprep.subr.mxu0 0.0
    %1798 = vmatpush1.msra.mxu0 0.0
    %1799 = vmatprep.subr.mxu0 0.0
    %1800 = vmatpush1.msra.mxu0 0.0
    %1801 = vmatprep.subr.mxu0 0.0
    %1802 = vmatpush1.msra.mxu0 0.0
    %1803 = vmatprep.subr.mxu0 0.0
    %1804 = vmatpush1.msra.mxu0 0.0
    %1805 = vmatprep.mubr.f32.mxu0 0.0
    %1806 = vmatmul.mubr.f32.gmra.mrb[0].mxu0 %v1663
    %v1807 = vpop.f32.mrb[0].mxu0
    %v1808 = vadd.f32 0.0, %v1807
    %v1809 = vpop.f32.mrb[0].mxu0
    %v1810 = vadd.f32 0.0, %v1809
    %1811 = vdwg.mxu0
    %v1812 = vadd.f32 %v1666, %v1737
    %v1813 = vadd.f32 %v1667, %v1739
    %v1814 = vadd.f32 %v1668, %v1808
    %v1815 = vadd.f32 %v1669, %v1810
    %v1816 = vxor.u32 %v1812, 2147483648
    %v1817 = vxor.u32 %v1813, 2147483648
    %v1818 = vxor.u32 %v1814, 2147483648
    %v1819 = vmul.f32 %v1816, 1.442695
    %v1820 = vpow.pop %v1819
    %v1821 = vmul.f32 %v1817, 1.442695
    %v1822 = vpow.pop %v1821
    %v1823 = vmul.f32 %v1818, 1.442695
    %v1824 = vpow.pop %v1823
    %v1825 = vadd.f32 %v1820, 1.0
    %v1826 = vadd.f32 %v1822, 1.0
    %v1827 = vadd.f32 %v1824, 1.0
    %v1828 = vrcp.pop %v1825
    %v1829 = vmul.f32 1.0, %v1828
    %v1830 = vrcp.pop %v1826
    %v1831 = vmul.f32 1.0, %v1830
    %v1832 = vrcp.pop %v1827
    %v1833 = vmul.f32 1.0, %v1832
    %v1834 = vtanh.pop %v1815
    %v1835 = vmul.f32 %v1831, %v1664
    %v1836 = vmul.f32 %v1829, %v1834
    %v1837 = vadd.f32 %v1835, %v1836
    %v1838 = vtanh.pop %v1837
    %v1839 = vmul.f32 %v1833, %v1838
    %vm1840 = vcmp.gt.s32.totalorder %v548, 6
    %v1841 = vsel %vm1840, 1, 0
    %1842 = vset.pattern.permute.xlu0 0
    %1843 = vperm.xlu0 %1842, %v1841
    %v1844 = vpop.permute.xlu0 %1843
    %vm1845 = vcmp.eq.s32.totalorder %v1844, 1
    %v1846 = vsel %vm1845, %v1839, 0.0
    %s1847 = scalar_lea.vmem [#allocation5], 48
    %1848 = vst [vmem:[%s1847] sm:$0xff] %v1846
    %v1849 = vsel %vm1845, %v1839, %v1663
    %v1850 = vsel %vm1845, %v1837, %v1664
    %s1851 = scalar_lea.vmem [#allocation4], 224
    %v1852 = vld [vmem:[%s1851] sm:$0xff]
    %v1853 = vld [vmem:[%s1851 + $0x8] sm:$0xff]
    %v1854 = vld [vmem:[%s1851 + $0x10] sm:$0xff]
    %v1855 = vld [vmem:[%s1851 + $0x18] sm:$0xff]
    %1856 = vmatprep.subr.mxu0 %v482
    %1857 = vmatpush1.msra.mxu0 %v481
    %1858 = vmatprep.subr.mxu0 %v486
    %1859 = vmatpush1.msra.mxu0 %v485
    %1860 = vmatprep.subr.mxu0 %v490
    %1861 = vmatpush1.msra.mxu0 %v489
    %1862 = vmatprep.subr.mxu0 %v494
    %1863 = vmatpush1.msra.mxu0 %v493
    %1864 = vmatprep.subr.mxu0 %v498
    %1865 = vmatpush1.msra.mxu0 %v497
    %1866 = vmatprep.subr.mxu0 %v502
    %1867 = vmatpush1.msra.mxu0 %v501
    %1868 = vmatprep.subr.mxu0 %v506
    %1869 = vmatpush1.msra.mxu0 %v505
    %1870 = vmatprep.subr.mxu0 %v510
    %1871 = vmatpush1.msra.mxu0 %v509
    %1872 = vmatprep.subr.mxu0 %v514
    %1873 = vmatpush1.msra.mxu0 %v513
    %1874 = vmatprep.subr.mxu0 %v518
    %1875 = vmatpush1.msra.mxu0 %v517
    %1876 = vmatprep.subr.mxu0 %v522
    %1877 = vmatpush1.msra.mxu0 %v521
    %1878 = vmatprep.subr.mxu0 %v526
    %1879 = vmatpush1.msra.mxu0 %v525
    %1880 = vmatprep.subr.mxu0 %v530
    %1881 = vmatpush1.msra.mxu0 %v529
    %1882 = vmatprep.subr.mxu0 %v534
    %1883 = vmatpush1.msra.mxu0 %v533
    %1884 = vmatprep.subr.mxu0 %v538
    %1885 = vmatpush1.msra.mxu0 %v537
    %1886 = vmatprep.subr.mxu0 %v542
    %1887 = vmatpush1.msra.mxu0 %v541
    %1888 = vmatprep.subr.mxu0 0.0
    %1889 = vmatpush1.msra.mxu0 0.0
    %1890 = vmatprep.subr.mxu0 0.0
    %1891 = vmatpush1.msra.mxu0 0.0
    %1892 = vmatprep.subr.mxu0 0.0
    %1893 = vmatpush1.msra.mxu0 0.0
    %1894 = vmatprep.subr.mxu0 0.0
    %1895 = vmatpush1.msra.mxu0 0.0
    %1896 = vmatprep.subr.mxu0 0.0
    %1897 = vmatpush1.msra.mxu0 0.0
    %1898 = vmatprep.subr.mxu0 0.0
    %1899 = vmatpush1.msra.mxu0 0.0
    %1900 = vmatprep.subr.mxu0 0.0
    %1901 = vmatpush1.msra.mxu0 0.0
    %1902 = vmatprep.subr.mxu0 0.0
    %1903 = vmatpush1.msra.mxu0 0.0
    %1904 = vmatprep.subr.mxu0 0.0
    %1905 = vmatpush1.msra.mxu0 0.0
    %1906 = vmatprep.subr.mxu0 0.0
    %1907 = vmatpush1.msra.mxu0 0.0
    %1908 = vmatprep.subr.mxu0 0.0
    %1909 = vmatpush1.msra.mxu0 0.0
    %1910 = vmatprep.subr.mxu0 0.0
    %1911 = vmatpush1.msra.mxu0 0.0
    %1912 = vmatprep.subr.mxu0 0.0
    %1913 = vmatpush1.msra.mxu0 0.0
    %1914 = vmatprep.subr.mxu0 0.0
    %1915 = vmatpush1.msra.mxu0 0.0
    %1916 = vmatprep.subr.mxu0 0.0
    %1917 = vmatpush1.msra.mxu0 0.0
    %1918 = vmatprep.subr.mxu0 0.0
    %1919 = vmatpush1.msra.mxu0 0.0
    %1920 = vmatprep.mubr.f32.mxu0 0.0
    %1921 = vmatmul.mubr.f32.gmra.mrb[0].mxu0 %v1849
    %v1922 = vpop.f32.mrb[0].mxu0
    %v1923 = vadd.f32 0.0, %v1922
    %v1924 = vpop.f32.mrb[0].mxu0
    %v1925 = vadd.f32 0.0, %v1924
    %1926 = vdwg.mxu0
    %1927 = vmatprep.subr.mxu0 %v484
    %1928 = vmatpush1.msra.mxu0 %v483
    %1929 = vmatprep.subr.mxu0 %v488
    %1930 = vmatpush1.msra.mxu0 %v487
    %1931 = vmatprep.subr.mxu0 %v492
    %1932 = vmatpush1.msra.mxu0 %v491
    %1933 = vmatprep.subr.mxu0 %v496
    %1934 = vmatpush1.msra.mxu0 %v495
    %1935 = vmatprep.subr.mxu0 %v500
    %1936 = vmatpush1.msra.mxu0 %v499
    %1937 = vmatprep.subr.mxu0 %v504
    %1938 = vmatpush1.msra.mxu0 %v503
    %1939 = vmatprep.subr.mxu0 %v508
    %1940 = vmatpush1.msra.mxu0 %v507
    %1941 = vmatprep.subr.mxu0 %v512
    %1942 = vmatpush1.msra.mxu0 %v511
    %1943 = vmatprep.subr.mxu0 %v516
    %1944 = vmatpush1.msra.mxu0 %v515
    %1945 = vmatprep.subr.mxu0 %v520
    %1946 = vmatpush1.msra.mxu0 %v519
    %1947 = vmatprep.subr.mxu0 %v524
    %1948 = vmatpush1.msra.mxu0 %v523
    %1949 = vmatprep.subr.mxu0 %v528
    %1950 = vmatpush1.msra.mxu0 %v527
    %1951 = vmatprep.subr.mxu0 %v532
    %1952 = vmatpush1.msra.mxu0 %v531
    %1953 = vmatprep.subr.mxu0 %v536
    %1954 = vmatpush1.msra.mxu0 %v535
    %1955 = vmatprep.subr.mxu0 %v540
    %1956 = vmatpush1.msra.mxu0 %v539
    %1957 = vmatprep.subr.mxu0 %v544
    %1958 = vmatpush1.msra.mxu0 %v543
    %1959 = vmatprep.subr.mxu0 0.0
    %1960 = vmatpush1.msra.mxu0 0.0
    %1961 = vmatprep.subr.mxu0 0.0
    %1962 = vmatpush1.msra.mxu0 0.0
    %1963 = vmatprep.subr.mxu0 0.0
    %1964 = vmatpush1.msra.mxu0 0.0
    %1965 = vmatprep.subr.mxu0 0.0
    %1966 = vmatpush1.msra.mxu0 0.0
    %1967 = vmatprep.subr.mxu0 0.0
    %1968 = vmatpush1.msra.mxu0 0.0
    %1969 = vmatprep.subr.mxu0 0.0
    %1970 = vmatpush1.msra.mxu0 0.0
    %1971 = vmatprep.subr.mxu0 0.0
    %1972 = vmatpush1.msra.mxu0 0.0
    %1973 = vmatprep.subr.mxu0 0.0
    %1974 = vmatpush1.msra.mxu0 0.0
    %1975 = vmatprep.subr.mxu0 0.0
    %1976 = vmatpush1.msra.mxu0 0.0
    %1977 = vmatprep.subr.mxu0 0.0
    %1978 = vmatpush1.msra.mxu0 0.0
    %1979 = vmatprep.subr.mxu0 0.0
    %1980 = vmatpush1.msra.mxu0 0.0
    %1981 = vmatprep.subr.mxu0 0.0
    %1982 = vmatpush1.msra.mxu0 0.0
    %1983 = vmatprep.subr.mxu0 0.0
    %1984 = vmatpush1.msra.mxu0 0.0
    %1985 = vmatprep.subr.mxu0 0.0
    %1986 = vmatpush1.msra.mxu0 0.0
    %1987 = vmatprep.subr.mxu0 0.0
    %1988 = vmatpush1.msra.mxu0 0.0
    %1989 = vmatprep.subr.mxu0 0.0
    %1990 = vmatpush1.msra.mxu0 0.0
    %1991 = vmatprep.mubr.f32.mxu0 0.0
    %1992 = vmatmul.mubr.f32.gmra.mrb[0].mxu0 %v1849
    %v1993 = vpop.f32.mrb[0].mxu0
    %v1994 = vadd.f32 0.0, %v1993
    %v1995 = vpop.f32.mrb[0].mxu0
    %v1996 = vadd.f32 0.0, %v1995
    %1997 = vdwg.mxu0
    %v1998 = vadd.f32 %v1852, %v1923
    %v1999 = vadd.f32 %v1853, %v1925
    %v2000 = vadd.f32 %v1854, %v1994
    %v2001 = vadd.f32 %v1855, %v1996
    %v2002 = vxor.u32 %v1998, 2147483648
    %v2003 = vxor.u32 %v1999, 2147483648
    %v2004 = vxor.u32 %v2000, 2147483648
    %v2005 = vmul.f32 %v2002, 1.442695
    %v2006 = vpow.pop %v2005
    %v2007 = vmul.f32 %v2003, 1.442695
    %v2008 = vpow.pop %v2007
    %v2009 = vmul.f32 %v2004, 1.442695
    %v2010 = vpow.pop %v2009
    %v2011 = vadd.f32 %v2006, 1.0
    %v2012 = vadd.f32 %v2008, 1.0
    %v2013 = vadd.f32 %v2010, 1.0
    %v2014 = vrcp.pop %v2011
    %v2015 = vmul.f32 1.0, %v2014
    %v2016 = vrcp.pop %v2012
    %v2017 = vmul.f32 1.0, %v2016
    %v2018 = vrcp.pop %v2013
    %v2019 = vmul.f32 1.0, %v2018
    %v2020 = vtanh.pop %v2001
    %v2021 = vmul.f32 %v2017, %v1850
    %v2022 = vmul.f32 %v2015, %v2020
    %v2023 = vadd.f32 %v2021, %v2022
    %v2024 = vtanh.pop %v2023
    %v2025 = vmul.f32 %v2019, %v2024
    %vm2026 = vcmp.gt.s32.totalorder %v548, 7
    %v2027 = vsel %vm2026, 1, 0
    %2028 = vset.pattern.permute.xlu0 0
    %2029 = vperm.xlu0 %2028, %v2027
    %v2030 = vpop.permute.xlu0 %2029
    %vm2031 = vcmp.eq.s32.totalorder %v2030, 1
    %v2032 = vsel %vm2031, %v2025, 0.0
    %s2033 = scalar_lea.vmem [#allocation5], 56
    %2034 = vst [vmem:[%s2033] sm:$0xff] %v2032
    %v2035 = vsel %vm2031, %v2025, %v1849
    %v2036 = vsel %vm2031, %v2023, %v1850
    %s2037 = scalar_lea.vmem [#allocation4], 256
    %v2038 = vld [vmem:[%s2037] sm:$0xff]
    %v2039 = vld [vmem:[%s2037 + $0x8] sm:$0xff]
    %v2040 = vld [vmem:[%s2037 + $0x10] sm:$0xff]
    %v2041 = vld [vmem:[%s2037 + $0x18] sm:$0xff]
    %2042 = vmatprep.subr.mxu0 %v482
    %2043 = vmatpush1.msra.mxu0 %v481
    %2044 = vmatprep.subr.mxu0 %v486
    %2045 = vmatpush1.msra.mxu0 %v485
    %2046 = vmatprep.subr.mxu0 %v490
    %2047 = vmatpush1.msra.mxu0 %v489
    %2048 = vmatprep.subr.mxu0 %v494
    %2049 = vmatpush1.msra.mxu0 %v493
    %2050 = vmatprep.subr.mxu0 %v498
    %2051 = vmatpush1.msra.mxu0 %v497
    %2052 = vmatprep.subr.mxu0 %v502
    %2053 = vmatpush1.msra.mxu0 %v501
    %2054 = vmatprep.subr.mxu0 %v506
    %2055 = vmatpush1.msra.mxu0 %v505
    %2056 = vmatprep.subr.mxu0 %v510
    %2057 = vmatpush1.msra.mxu0 %v509
    %2058 = vmatprep.subr.mxu0 %v514
    %2059 = vmatpush1.msra.mxu0 %v513
    %2060 = vmatprep.subr.mxu0 %v518
    %2061 = vmatpush1.msra.mxu0 %v517
    %2062 = vmatprep.subr.mxu0 %v522
    %2063 = vmatpush1.msra.mxu0 %v521
    %2064 = vmatprep.subr.mxu0 %v526
    %2065 = vmatpush1.msra.mxu0 %v525
    %2066 = vmatprep.subr.mxu0 %v530
    %2067 = vmatpush1.msra.mxu0 %v529
    %2068 = vmatprep.subr.mxu0 %v534
    %2069 = vmatpush1.msra.mxu0 %v533
    %2070 = vmatprep.subr.mxu0 %v538
    %2071 = vmatpush1.msra.mxu0 %v537
    %2072 = vmatprep.subr.mxu0 %v542
    %2073 = vmatpush1.msra.mxu0 %v541
    %2074 = vmatprep.subr.mxu0 0.0
    %2075 = vmatpush1.msra.mxu0 0.0
    %2076 = vmatprep.subr.mxu0 0.0
    %2077 = vmatpush1.msra.mxu0 0.0
    %2078 = vmatprep.subr.mxu0 0.0
    %2079 = vmatpush1.msra.mxu0 0.0
    %2080 = vmatprep.subr.mxu0 0.0
    %2081 = vmatpush1.msra.mxu0 0.0
    %2082 = vmatprep.subr.mxu0 0.0
    %2083 = vmatpush1.msra.mxu0 0.0
    %2084 = vmatprep.subr.mxu0 0.0
    %2085 = vmatpush1.msra.mxu0 0.0
    %2086 = vmatprep.subr.mxu0 0.0
    %2087 = vmatpush1.msra.mxu0 0.0
    %2088 = vmatprep.subr.mxu0 0.0
    %2089 = vmatpush1.msra.mxu0 0.0
    %2090 = vmatprep.subr.mxu0 0.0
    %2091 = vmatpush1.msra.mxu0 0.0
    %2092 = vmatprep.subr.mxu0 0.0
    %2093 = vmatpush1.msra.mxu0 0.0
    %2094 = vmatprep.subr.mxu0 0.0
    %2095 = vmatpush1.msra.mxu0 0.0
    %2096 = vmatprep.subr.mxu0 0.0
    %2097 = vmatpush1.msra.mxu0 0.0
    %2098 = vmatprep.subr.mxu0 0.0
    %2099 = vmatpush1.msra.mxu0 0.0
    %2100 = vmatprep.subr.mxu0 0.0
    %2101 = vmatpush1.msra.mxu0 0.0
    %2102 = vmatprep.subr.mxu0 0.0
    %2103 = vmatpush1.msra.mxu0 0.0
    %2104 = vmatprep.subr.mxu0 0.0
    %2105 = vmatpush1.msra.mxu0 0.0
    %2106 = vmatprep.mubr.f32.mxu0 0.0
    %2107 = vmatmul.mubr.f32.gmra.mrb[0].mxu0 %v2035
    %v2108 = vpop.f32.mrb[0].mxu0
    %v2109 = vadd.f32 0.0, %v2108
    %v2110 = vpop.f32.mrb[0].mxu0
    %v2111 = vadd.f32 0.0, %v2110
    %2112 = vdwg.mxu0
    %2113 = vmatprep.subr.mxu0 %v484
    %2114 = vmatpush1.msra.mxu0 %v483
    %2115 = vmatprep.subr.mxu0 %v488
    %2116 = vmatpush1.msra.mxu0 %v487
    %2117 = vmatprep.subr.mxu0 %v492
    %2118 = vmatpush1.msra.mxu0 %v491
    %2119 = vmatprep.subr.mxu0 %v496
    %2120 = vmatpush1.msra.mxu0 %v495
    %2121 = vmatprep.subr.mxu0 %v500
    %2122 = vmatpush1.msra.mxu0 %v499
    %2123 = vmatprep.subr.mxu0 %v504
    %2124 = vmatpush1.msra.mxu0 %v503
    %2125 = vmatprep.subr.mxu0 %v508
    %2126 = vmatpush1.msra.mxu0 %v507
    %2127 = vmatprep.subr.mxu0 %v512
    %2128 = vmatpush1.msra.mxu0 %v511
    %2129 = vmatprep.subr.mxu0 %v516
    %2130 = vmatpush1.msra.mxu0 %v515
    %2131 = vmatprep.subr.mxu0 %v520
    %2132 = vmatpush1.msra.mxu0 %v519
    %2133 = vmatprep.subr.mxu0 %v524
    %2134 = vmatpush1.msra.mxu0 %v523
    %2135 = vmatprep.subr.mxu0 %v528
    %2136 = vmatpush1.msra.mxu0 %v527
    %2137 = vmatprep.subr.mxu0 %v532
    %2138 = vmatpush1.msra.mxu0 %v531
    %2139 = vmatprep.subr.mxu0 %v536
    %2140 = vmatpush1.msra.mxu0 %v535
    %2141 = vmatprep.subr.mxu0 %v540
    %2142 = vmatpush1.msra.mxu0 %v539
    %2143 = vmatprep.subr.mxu0 %v544
    %2144 = vmatpush1.msra.mxu0 %v543
    %2145 = vmatprep.subr.mxu0 0.0
    %2146 = vmatpush1.msra.mxu0 0.0
    %2147 = vmatprep.subr.mxu0 0.0
    %2148 = vmatpush1.msra.mxu0 0.0
    %2149 = vmatprep.subr.mxu0 0.0
    %2150 = vmatpush1.msra.mxu0 0.0
    %2151 = vmatprep.subr.mxu0 0.0
    %2152 = vmatpush1.msra.mxu0 0.0
    %2153 = vmatprep.subr.mxu0 0.0
    %2154 = vmatpush1.msra.mxu0 0.0
    %2155 = vmatprep.subr.mxu0 0.0
    %2156 = vmatpush1.msra.mxu0 0.0
    %2157 = vmatprep.subr.mxu0 0.0
    %2158 = vmatpush1.msra.mxu0 0.0
    %2159 = vmatprep.subr.mxu0 0.0
    %2160 = vmatpush1.msra.mxu0 0.0
    %2161 = vmatprep.subr.mxu0 0.0
    %2162 = vmatpush1.msra.mxu0 0.0
    %2163 = vmatprep.subr.mxu0 0.0
    %2164 = vmatpush1.msra.mxu0 0.0
    %2165 = vmatprep.subr.mxu0 0.0
    %2166 = vmatpush1.msra.mxu0 0.0
    %2167 = vmatprep.subr.mxu0 0.0
    %2168 = vmatpush1.msra.mxu0 0.0
    %2169 = vmatprep.subr.mxu0 0.0
    %2170 = vmatpush1.msra.mxu0 0.0
    %2171 = vmatprep.subr.mxu0 0.0
    %2172 = vmatpush1.msra.mxu0 0.0
    %2173 = vmatprep.subr.mxu0 0.0
    %2174 = vmatpush1.msra.mxu0 0.0
    %2175 = vmatprep.subr.mxu0 0.0
    %2176 = vmatpush1.msra.mxu0 0.0
    %2177 = vmatprep.mubr.f32.mxu0 0.0
    %2178 = vmatmul.mubr.f32.gmra.mrb[0].mxu0 %v2035
    %v2179 = vpop.f32.mrb[0].mxu0
    %v2180 = vadd.f32 0.0, %v2179
    %v2181 = vpop.f32.mrb[0].mxu0
    %v2182 = vadd.f32 0.0, %v2181
    %2183 = vdwg.mxu0
    %v2184 = vadd.f32 %v2038, %v2109
    %v2185 = vadd.f32 %v2039, %v2111
    %v2186 = vadd.f32 %v2040, %v2180
    %v2187 = vadd.f32 %v2041, %v2182
    %v2188 = vxor.u32 %v2184, 2147483648
    %v2189 = vxor.u32 %v2185, 2147483648
    %v2190 = vxor.u32 %v2186, 2147483648
    %v2191 = vmul.f32 %v2188, 1.442695
    %v2192 = vpow.pop %v2191
    %v2193 = vmul.f32 %v2189, 1.442695
    %v2194 = vpow.pop %v2193
    %v2195 = vmul.f32 %v2190, 1.442695
    %v2196 = vpow.pop %v2195
    %v2197 = vadd.f32 %v2192, 1.0
    %v2198 = vadd.f32 %v2194, 1.0
    %v2199 = vadd.f32 %v2196, 1.0
    %v2200 = vrcp.pop %v2197
    %v2201 = vmul.f32 1.0, %v2200
    %v2202 = vrcp.pop %v2198
    %v2203 = vmul.f32 1.0, %v2202
    %v2204 = vrcp.pop %v2199
    %v2205 = vmul.f32 1.0, %v2204
    %v2206 = vtanh.pop %v2187
    %v2207 = vmul.f32 %v2203, %v2036
    %v2208 = vmul.f32 %v2201, %v2206
    %v2209 = vadd.f32 %v2207, %v2208
    %v2210 = vtanh.pop %v2209
    %v2211 = vmul.f32 %v2205, %v2210
    %vm2212 = vcmp.gt.s32.totalorder %v548, 8
    %v2213 = vsel %vm2212, 1, 0
    %2214 = vset.pattern.permute.xlu0 0
    %2215 = vperm.xlu0 %2214, %v2213
    %v2216 = vpop.permute.xlu0 %2215
    %vm2217 = vcmp.eq.s32.totalorder %v2216, 1
    %v2218 = vsel %vm2217, %v2211, 0.0
    %s2219 = scalar_lea.vmem [#allocation5], 64
    %2220 = vst [vmem:[%s2219] sm:$0xff] %v2218
    %v2221 = vsel %vm2217, %v2211, %v2035
    %v2222 = vsel %vm2217, %v2209, %v2036
    %s2223 = scalar_lea.vmem [#allocation4], 288
    %v2224 = vld [vmem:[%s2223] sm:$0xff]
    %v2225 = vld [vmem:[%s2223 + $0x8] sm:$0xff]
    %v2226 = vld [vmem:[%s2223 + $0x10] sm:$0xff]
    %v2227 = vld [vmem:[%s2223 + $0x18] sm:$0xff]
    %2228 = vmatprep.subr.mxu0 %v482
    %2229 = vmatpush1.msra.mxu0 %v481
    %2230 = vmatprep.subr.mxu0 %v486
    %2231 = vmatpush1.msra.mxu0 %v485
    %2232 = vmatprep.subr.mxu0 %v490
    %2233 = vmatpush1.msra.mxu0 %v489
    %2234 = vmatprep.subr.mxu0 %v494
    %2235 = vmatpush1.msra.mxu0 %v493
    %2236 = vmatprep.subr.mxu0 %v498
    %2237 = vmatpush1.msra.mxu0 %v497
    %2238 = vmatprep.subr.mxu0 %v502
    %2239 = vmatpush1.msra.mxu0 %v501
    %2240 = vmatprep.subr.mxu0 %v506
    %2241 = vmatpush1.msra.mxu0 %v505
    %2242 = vmatprep.subr.mxu0 %v510
    %2243 = vmatpush1.msra.mxu0 %v509
    %2244 = vmatprep.subr.mxu0 %v514
    %2245 = vmatpush1.msra.mxu0 %v513
    %2246 = vmatprep.subr.mxu0 %v518
    %2247 = vmatpush1.msra.mxu0 %v517
    %2248 = vmatprep.subr.mxu0 %v522
    %2249 = vmatpush1.msra.mxu0 %v521
    %2250 = vmatprep.subr.mxu0 %v526
    %2251 = vmatpush1.msra.mxu0 %v525
    %2252 = vmatprep.subr.mxu0 %v530
    %2253 = vmatpush1.msra.mxu0 %v529
    %2254 = vmatprep.subr.mxu0 %v534
    %2255 = vmatpush1.msra.mxu0 %v533
    %2256 = vmatprep.subr.mxu0 %v538
    %2257 = vmatpush1.msra.mxu0 %v537
    %2258 = vmatprep.subr.mxu0 %v542
    %2259 = vmatpush1.msra.mxu0 %v541
    %2260 = vmatprep.subr.mxu0 0.0
    %2261 = vmatpush1.msra.mxu0 0.0
    %2262 = vmatprep.subr.mxu0 0.0
    %2263 = vmatpush1.msra.mxu0 0.0
    %2264 = vmatprep.subr.mxu0 0.0
    %2265 = vmatpush1.msra.mxu0 0.0
    %2266 = vmatprep.subr.mxu0 0.0
    %2267 = vmatpush1.msra.mxu0 0.0
    %2268 = vmatprep.subr.mxu0 0.0
    %2269 = vmatpush1.msra.mxu0 0.0
    %2270 = vmatprep.subr.mxu0 0.0
    %2271 = vmatpush1.msra.mxu0 0.0
    %2272 = vmatprep.subr.mxu0 0.0
    %2273 = vmatpush1.msra.mxu0 0.0
    %2274 = vmatprep.subr.mxu0 0.0
    %2275 = vmatpush1.msra.mxu0 0.0
    %2276 = vmatprep.subr.mxu0 0.0
    %2277 = vmatpush1.msra.mxu0 0.0
    %2278 = vmatprep.subr.mxu0 0.0
    %2279 = vmatpush1.msra.mxu0 0.0
    %2280 = vmatprep.subr.mxu0 0.0
    %2281 = vmatpush1.msra.mxu0 0.0
    %2282 = vmatprep.subr.mxu0 0.0
    %2283 = vmatpush1.msra.mxu0 0.0
    %2284 = vmatprep.subr.mxu0 0.0
    %2285 = vmatpush1.msra.mxu0 0.0
    %2286 = vmatprep.subr.mxu0 0.0
    %2287 = vmatpush1.msra.mxu0 0.0
    %2288 = vmatprep.subr.mxu0 0.0
    %2289 = vmatpush1.msra.mxu0 0.0
    %2290 = vmatprep.subr.mxu0 0.0
    %2291 = vmatpush1.msra.mxu0 0.0
    %2292 = vmatprep.mubr.f32.mxu0 0.0
    %2293 = vmatmul.mubr.f32.gmra.mrb[0].mxu0 %v2221
    %v2294 = vpop.f32.mrb[0].mxu0
    %v2295 = vadd.f32 0.0, %v2294
    %v2296 = vpop.f32.mrb[0].mxu0
    %v2297 = vadd.f32 0.0, %v2296
    %2298 = vdwg.mxu0
    %2299 = vmatprep.subr.mxu0 %v484
    %2300 = vmatpush1.msra.mxu0 %v483
    %2301 = vmatprep.subr.mxu0 %v488
    %2302 = vmatpush1.msra.mxu0 %v487
    %2303 = vmatprep.subr.mxu0 %v492
    %2304 = vmatpush1.msra.mxu0 %v491
    %2305 = vmatprep.subr.mxu0 %v496
    %2306 = vmatpush1.msra.mxu0 %v495
    %2307 = vmatprep.subr.mxu0 %v500
    %2308 = vmatpush1.msra.mxu0 %v499
    %2309 = vmatprep.subr.mxu0 %v504
    %2310 = vmatpush1.msra.mxu0 %v503
    %2311 = vmatprep.subr.mxu0 %v508
    %2312 = vmatpush1.msra.mxu0 %v507
    %2313 = vmatprep.subr.mxu0 %v512
    %2314 = vmatpush1.msra.mxu0 %v511
    %2315 = vmatprep.subr.mxu0 %v516
    %2316 = vmatpush1.msra.mxu0 %v515
    %2317 = vmatprep.subr.mxu0 %v520
    %2318 = vmatpush1.msra.mxu0 %v519
    %2319 = vmatprep.subr.mxu0 %v524
    %2320 = vmatpush1.msra.mxu0 %v523
    %2321 = vmatprep.subr.mxu0 %v528
    %2322 = vmatpush1.msra.mxu0 %v527
    %2323 = vmatprep.subr.mxu0 %v532
    %2324 = vmatpush1.msra.mxu0 %v531
    %2325 = vmatprep.subr.mxu0 %v536
    %2326 = vmatpush1.msra.mxu0 %v535
    %2327 = vmatprep.subr.mxu0 %v540
    %2328 = vmatpush1.msra.mxu0 %v539
    %2329 = vmatprep.subr.mxu0 %v544
    %2330 = vmatpush1.msra.mxu0 %v543
    %2331 = vmatprep.subr.mxu0 0.0
    %2332 = vmatpush1.msra.mxu0 0.0
    %2333 = vmatprep.subr.mxu0 0.0
    %2334 = vmatpush1.msra.mxu0 0.0
    %2335 = vmatprep.subr.mxu0 0.0
    %2336 = vmatpush1.msra.mxu0 0.0
    %2337 = vmatprep.subr.mxu0 0.0
    %2338 = vmatpush1.msra.mxu0 0.0
    %2339 = vmatprep.subr.mxu0 0.0
    %2340 = vmatpush1.msra.mxu0 0.0
    %2341 = vmatprep.subr.mxu0 0.0
    %2342 = vmatpush1.msra.mxu0 0.0
    %2343 = vmatprep.subr.mxu0 0.0
    %2344 = vmatpush1.msra.mxu0 0.0
    %2345 = vmatprep.subr.mxu0 0.0
    %2346 = vmatpush1.msra.mxu0 0.0
    %2347 = vmatprep.subr.mxu0 0.0
    %2348 = vmatpush1.msra.mxu0 0.0
    %2349 = vmatprep.subr.mxu0 0.0
    %2350 = vmatpush1.msra.mxu0 0.0
    %2351 = vmatprep.subr.mxu0 0.0
    %2352 = vmatpush1.msra.mxu0 0.0
    %2353 = vmatprep.subr.mxu0 0.0
    %2354 = vmatpush1.msra.mxu0 0.0
    %2355 = vmatprep.subr.mxu0 0.0
    %2356 = vmatpush1.msra.mxu0 0.0
    %2357 = vmatprep.subr.mxu0 0.0
    %2358 = vmatpush1.msra.mxu0 0.0
    %2359 = vmatprep.subr.mxu0 0.0
    %2360 = vmatpush1.msra.mxu0 0.0
    %2361 = vmatprep.subr.mxu0 0.0
    %2362 = vmatpush1.msra.mxu0 0.0
    %2363 = vmatprep.mubr.f32.mxu0 0.0
    %2364 = vmatmul.mubr.f32.gmra.mrb[0].mxu0 %v2221
    %v2365 = vpop.f32.mrb[0].mxu0
    %v2366 = vadd.f32 0.0, %v2365
    %v2367 = vpop.f32.mrb[0].mxu0
    %v2368 = vadd.f32 0.0, %v2367
    %2369 = vdwg.mxu0
    %v2370 = vadd.f32 %v2224, %v2295
    %v2371 = vadd.f32 %v2225, %v2297
    %v2372 = vadd.f32 %v2226, %v2366
    %v2373 = vadd.f32 %v2227, %v2368
    %v2374 = vxor.u32 %v2370, 2147483648
    %v2375 = vxor.u32 %v2371, 2147483648
    %v2376 = vxor.u32 %v2372, 2147483648
    %v2377 = vmul.f32 %v2374, 1.442695
    %v2378 = vpow.pop %v2377
    %v2379 = vmul.f32 %v2375, 1.442695
    %v2380 = vpow.pop %v2379
    %v2381 = vmul.f32 %v2376, 1.442695
    %v2382 = vpow.pop %v2381
    %v2383 = vadd.f32 %v2378, 1.0
    %v2384 = vadd.f32 %v2380, 1.0
    %v2385 = vadd.f32 %v2382, 1.0
    %v2386 = vrcp.pop %v2383
    %v2387 = vmul.f32 1.0, %v2386
    %v2388 = vrcp.pop %v2384
    %v2389 = vmul.f32 1.0, %v2388
    %v2390 = vrcp.pop %v2385
    %v2391 = vmul.f32 1.0, %v2390
    %v2392 = vtanh.pop %v2373
    %v2393 = vmul.f32 %v2389, %v2222
    %v2394 = vmul.f32 %v2387, %v2392
    %v2395 = vadd.f32 %v2393, %v2394
    %v2396 = vtanh.pop %v2395
    %v2397 = vmul.f32 %v2391, %v2396
    %vm2398 = vcmp.gt.s32.totalorder %v548, 9
    %v2399 = vsel %vm2398, 1, 0
    %2400 = vset.pattern.permute.xlu0 0
    %2401 = vperm.xlu0 %2400, %v2399
    %v2402 = vpop.permute.xlu0 %2401
    %vm2403 = vcmp.eq.s32.totalorder %v2402, 1
    %v2404 = vsel %vm2403, %v2397, 0.0
    %s2405 = scalar_lea.vmem [#allocation5], 72
    %2406 = vst [vmem:[%s2405] sm:$0xff] %v2404
    %v2407 = vsel %vm2403, %v2397, %v2221
    %v2408 = vsel %vm2403, %v2395, %v2222
    %s2409 = scalar_lea.vmem [#allocation4], 320
    %v2410 = vld [vmem:[%s2409] sm:$0xff]
    %v2411 = vld [vmem:[%s2409 + $0x8] sm:$0xff]
    %v2412 = vld [vmem:[%s2409 + $0x10] sm:$0xff]
    %v2413 = vld [vmem:[%s2409 + $0x18] sm:$0xff]
    %2414 = vmatprep.subr.mxu0 %v482
    %2415 = vmatpush1.msra.mxu0 %v481
    %2416 = vmatprep.subr.mxu0 %v486
    %2417 = vmatpush1.msra.mxu0 %v485
    %2418 = vmatprep.subr.mxu0 %v490
    %2419 = vmatpush1.msra.mxu0 %v489
    %2420 = vmatprep.subr.mxu0 %v494
    %2421 = vmatpush1.msra.mxu0 %v493
    %2422 = vmatprep.subr.mxu0 %v498
    %2423 = vmatpush1.msra.mxu0 %v497
    %2424 = vmatprep.subr.mxu0 %v502
    %2425 = vmatpush1.msra.mxu0 %v501
    %2426 = vmatprep.subr.mxu0 %v506
    %2427 = vmatpush1.msra.mxu0 %v505
    %2428 = vmatprep.subr.mxu0 %v510
    %2429 = vmatpush1.msra.mxu0 %v509
    %2430 = vmatprep.subr.mxu0 %v514
    %2431 = vmatpush1.msra.mxu0 %v513
    %2432 = vmatprep.subr.mxu0 %v518
    %2433 = vmatpush1.msra.mxu0 %v517
    %2434 = vmatprep.subr.mxu0 %v522
    %2435 = vmatpush1.msra.mxu0 %v521
    %2436 = vmatprep.subr.mxu0 %v526
    %2437 = vmatpush1.msra.mxu0 %v525
    %2438 = vmatprep.subr.mxu0 %v530
    %2439 = vmatpush1.msra.mxu0 %v529
    %2440 = vmatprep.subr.mxu0 %v534
    %2441 = vmatpush1.msra.mxu0 %v533
    %2442 = vmatprep.subr.mxu0 %v538
    %2443 = vmatpush1.msra.mxu0 %v537
    %2444 = vmatprep.subr.mxu0 %v542
    %2445 = vmatpush1.msra.mxu0 %v541
    %2446 = vmatprep.subr.mxu0 0.0
    %2447 = vmatpush1.msra.mxu0 0.0
    %2448 = vmatprep.subr.mxu0 0.0
    %2449 = vmatpush1.msra.mxu0 0.0
    %2450 = vmatprep.subr.mxu0 0.0
    %2451 = vmatpush1.msra.mxu0 0.0
    %2452 = vmatprep.subr.mxu0 0.0
    %2453 = vmatpush1.msra.mxu0 0.0
    %2454 = vmatprep.subr.mxu0 0.0
    %2455 = vmatpush1.msra.mxu0 0.0
    %2456 = vmatprep.subr.mxu0 0.0
    %2457 = vmatpush1.msra.mxu0 0.0
    %2458 = vmatprep.subr.mxu0 0.0
    %2459 = vmatpush1.msra.mxu0 0.0
    %2460 = vmatprep.subr.mxu0 0.0
    %2461 = vmatpush1.msra.mxu0 0.0
    %2462 = vmatprep.subr.mxu0 0.0
    %2463 = vmatpush1.msra.mxu0 0.0
    %2464 = vmatprep.subr.mxu0 0.0
    %2465 = vmatpush1.msra.mxu0 0.0
    %2466 = vmatprep.subr.mxu0 0.0
    %2467 = vmatpush1.msra.mxu0 0.0
    %2468 = vmatprep.subr.mxu0 0.0
    %2469 = vmatpush1.msra.mxu0 0.0
    %2470 = vmatprep.subr.mxu0 0.0
    %2471 = vmatpush1.msra.mxu0 0.0
    %2472 = vmatprep.subr.mxu0 0.0
    %2473 = vmatpush1.msra.mxu0 0.0
    %2474 = vmatprep.subr.mxu0 0.0
    %2475 = vmatpush1.msra.mxu0 0.0
    %2476 = vmatprep.subr.mxu0 0.0
    %2477 = vmatpush1.msra.mxu0 0.0
    %2478 = vmatprep.mubr.f32.mxu0 0.0
    %2479 = vmatmul.mubr.f32.gmra.mrb[0].mxu0 %v2407
    %v2480 = vpop.f32.mrb[0].mxu0
    %v2481 = vadd.f32 0.0, %v2480
    %v2482 = vpop.f32.mrb[0].mxu0
    %v2483 = vadd.f32 0.0, %v2482
    %2484 = vdwg.mxu0
    %2485 = vmatprep.subr.mxu0 %v484
    %2486 = vmatpush1.msra.mxu0 %v483
    %2487 = vmatprep.subr.mxu0 %v488
    %2488 = vmatpush1.msra.mxu0 %v487
    %2489 = vmatprep.subr.mxu0 %v492
    %2490 = vmatpush1.msra.mxu0 %v491
    %2491 = vmatprep.subr.mxu0 %v496
    %2492 = vmatpush1.msra.mxu0 %v495
    %2493 = vmatprep.subr.mxu0 %v500
    %2494 = vmatpush1.msra.mxu0 %v499
    %2495 = vmatprep.subr.mxu0 %v504
    %2496 = vmatpush1.msra.mxu0 %v503
    %2497 = vmatprep.subr.mxu0 %v508
    %2498 = vmatpush1.msra.mxu0 %v507
    %2499 = vmatprep.subr.mxu0 %v512
    %2500 = vmatpush1.msra.mxu0 %v511
    %2501 = vmatprep.subr.mxu0 %v516
    %2502 = vmatpush1.msra.mxu0 %v515
    %2503 = vmatprep.subr.mxu0 %v520
    %2504 = vmatpush1.msra.mxu0 %v519
    %2505 = vmatprep.subr.mxu0 %v524
    %2506 = vmatpush1.msra.mxu0 %v523
    %2507 = vmatprep.subr.mxu0 %v528
    %2508 = vmatpush1.msra.mxu0 %v527
    %2509 = vmatprep.subr.mxu0 %v532
    %2510 = vmatpush1.msra.mxu0 %v531
    %2511 = vmatprep.subr.mxu0 %v536
    %2512 = vmatpush1.msra.mxu0 %v535
    %2513 = vmatprep.subr.mxu0 %v540
    %2514 = vmatpush1.msra.mxu0 %v539
    %2515 = vmatprep.subr.mxu0 %v544
    %2516 = vmatpush1.msra.mxu0 %v543
    %2517 = vmatprep.subr.mxu0 0.0
    %2518 = vmatpush1.msra.mxu0 0.0
    %2519 = vmatprep.subr.mxu0 0.0
    %2520 = vmatpush1.msra.mxu0 0.0
    %2521 = vmatprep.subr.mxu0 0.0
    %2522 = vmatpush1.msra.mxu0 0.0
    %2523 = vmatprep.subr.mxu0 0.0
    %2524 = vmatpush1.msra.mxu0 0.0
    %2525 = vmatprep.subr.mxu0 0.0
    %2526 = vmatpush1.msra.mxu0 0.0
    %2527 = vmatprep.subr.mxu0 0.0
    %2528 = vmatpush1.msra.mxu0 0.0
    %2529 = vmatprep.subr.mxu0 0.0
    %2530 = vmatpush1.msra.mxu0 0.0
    %2531 = vmatprep.subr.mxu0 0.0
    %2532 = vmatpush1.msra.mxu0 0.0
    %2533 = vmatprep.subr.mxu0 0.0
    %2534 = vmatpush1.msra.mxu0 0.0
    %2535 = vmatprep.subr.mxu0 0.0
    %2536 = vmatpush1.msra.mxu0 0.0
    %2537 = vmatprep.subr.mxu0 0.0
    %2538 = vmatpush1.msra.mxu0 0.0
    %2539 = vmatprep.subr.mxu0 0.0
    %2540 = vmatpush1.msra.mxu0 0.0
    %2541 = vmatprep.subr.mxu0 0.0
    %2542 = vmatpush1.msra.mxu0 0.0
    %2543 = vmatprep.subr.mxu0 0.0
    %2544 = vmatpush1.msra.mxu0 0.0
    %2545 = vmatprep.subr.mxu0 0.0
    %2546 = vmatpush1.msra.mxu0 0.0
    %2547 = vmatprep.subr.mxu0 0.0
    %2548 = vmatpush1.msra.mxu0 0.0
    %2549 = vmatprep.mubr.f32.mxu0 0.0
    %2550 = vmatmul.mubr.f32.gmra.mrb[0].mxu0 %v2407
    %v2551 = vpop.f32.mrb[0].mxu0
    %v2552 = vadd.f32 0.0, %v2551
    %v2553 = vpop.f32.mrb[0].mxu0
    %v2554 = vadd.f32 0.0, %v2553
    %2555 = vdwg.mxu0
    %v2556 = vadd.f32 %v2410, %v2481
    %v2557 = vadd.f32 %v2411, %v2483
    %v2558 = vadd.f32 %v2412, %v2552
    %v2559 = vadd.f32 %v2413, %v2554
    %v2560 = vxor.u32 %v2556, 2147483648
    %v2561 = vxor.u32 %v2557, 2147483648
    %v2562 = vxor.u32 %v2558, 2147483648
    %v2563 = vmul.f32 %v2560, 1.442695
    %v2564 = vpow.pop %v2563
    %v2565 = vmul.f32 %v2561, 1.442695
    %v2566 = vpow.pop %v2565
    %v2567 = vmul.f32 %v2562, 1.442695
    %v2568 = vpow.pop %v2567
    %v2569 = vadd.f32 %v2564, 1.0
    %v2570 = vadd.f32 %v2566, 1.0
    %v2571 = vadd.f32 %v2568, 1.0
    %v2572 = vrcp.pop %v2569
    %v2573 = vmul.f32 1.0, %v2572
    %v2574 = vrcp.pop %v2570
    %v2575 = vmul.f32 1.0, %v2574
    %v2576 = vrcp.pop %v2571
    %v2577 = vmul.f32 1.0, %v2576
    %v2578 = vtanh.pop %v2559
    %v2579 = vmul.f32 %v2575, %v2408
    %v2580 = vmul.f32 %v2573, %v2578
    %v2581 = vadd.f32 %v2579, %v2580
    %v2582 = vtanh.pop %v2581
    %v2583 = vmul.f32 %v2577, %v2582
    %vm2584 = vcmp.gt.s32.totalorder %v548, 10
    %v2585 = vsel %vm2584, 1, 0
    %2586 = vset.pattern.permute.xlu0 0
    %2587 = vperm.xlu0 %2586, %v2585
    %v2588 = vpop.permute.xlu0 %2587
    %vm2589 = vcmp.eq.s32.totalorder %v2588, 1
    %v2590 = vsel %vm2589, %v2583, 0.0
    %s2591 = scalar_lea.vmem [#allocation5], 80
    %2592 = vst [vmem:[%s2591] sm:$0xff] %v2590
    %v2593 = vsel %vm2589, %v2583, %v2407
    %v2594 = vsel %vm2589, %v2581, %v2408
    %s2595 = scalar_lea.vmem [#allocation4], 352
    %v2596 = vld [vmem:[%s2595] sm:$0xff]
    %v2597 = vld [vmem:[%s2595 + $0x8] sm:$0xff]
    %v2598 = vld [vmem:[%s2595 + $0x10] sm:$0xff]
    %v2599 = vld [vmem:[%s2595 + $0x18] sm:$0xff]
    %2600 = vmatprep.subr.mxu0 %v482
    %2601 = vmatpush1.msra.mxu0 %v481
    %2602 = vmatprep.subr.mxu0 %v486
    %2603 = vmatpush1.msra.mxu0 %v485
    %2604 = vmatprep.subr.mxu0 %v490
    %2605 = vmatpush1.msra.mxu0 %v489
    %2606 = vmatprep.subr.mxu0 %v494
    %2607 = vmatpush1.msra.mxu0 %v493
    %2608 = vmatprep.subr.mxu0 %v498
    %2609 = vmatpush1.msra.mxu0 %v497
    %2610 = vmatprep.subr.mxu0 %v502
    %2611 = vmatpush1.msra.mxu0 %v501
    %2612 = vmatprep.subr.mxu0 %v506
    %2613 = vmatpush1.msra.mxu0 %v505
    %2614 = vmatprep.subr.mxu0 %v510
    %2615 = vmatpush1.msra.mxu0 %v509
    %2616 = vmatprep.subr.mxu0 %v514
    %2617 = vmatpush1.msra.mxu0 %v513
    %2618 = vmatprep.subr.mxu0 %v518
    %2619 = vmatpush1.msra.mxu0 %v517
    %2620 = vmatprep.subr.mxu0 %v522
    %2621 = vmatpush1.msra.mxu0 %v521
    %2622 = vmatprep.subr.mxu0 %v526
    %2623 = vmatpush1.msra.mxu0 %v525
    %2624 = vmatprep.subr.mxu0 %v530
    %2625 = vmatpush1.msra.mxu0 %v529
    %2626 = vmatprep.subr.mxu0 %v534
    %2627 = vmatpush1.msra.mxu0 %v533
    %2628 = vmatprep.subr.mxu0 %v538
    %2629 = vmatpush1.msra.mxu0 %v537
    %2630 = vmatprep.subr.mxu0 %v542
    %2631 = vmatpush1.msra.mxu0 %v541
    %2632 = vmatprep.subr.mxu0 0.0
    %2633 = vmatpush1.msra.mxu0 0.0
    %2634 = vmatprep.subr.mxu0 0.0
    %2635 = vmatpush1.msra.mxu0 0.0
    %2636 = vmatprep.subr.mxu0 0.0
    %2637 = vmatpush1.msra.mxu0 0.0
    %2638 = vmatprep.subr.mxu0 0.0
    %2639 = vmatpush1.msra.mxu0 0.0
    %2640 = vmatprep.subr.mxu0 0.0
    %2641 = vmatpush1.msra.mxu0 0.0
    %2642 = vmatprep.subr.mxu0 0.0
    %2643 = vmatpush1.msra.mxu0 0.0
    %2644 = vmatprep.subr.mxu0 0.0
    %2645 = vmatpush1.msra.mxu0 0.0
    %2646 = vmatprep.subr.mxu0 0.0
    %2647 = vmatpush1.msra.mxu0 0.0
    %2648 = vmatprep.subr.mxu0 0.0
    %2649 = vmatpush1.msra.mxu0 0.0
    %2650 = vmatprep.subr.mxu0 0.0
    %2651 = vmatpush1.msra.mxu0 0.0
    %2652 = vmatprep.subr.mxu0 0.0
    %2653 = vmatpush1.msra.mxu0 0.0
    %2654 = vmatprep.subr.mxu0 0.0
    %2655 = vmatpush1.msra.mxu0 0.0
    %2656 = vmatprep.subr.mxu0 0.0
    %2657 = vmatpush1.msra.mxu0 0.0
    %2658 = vmatprep.subr.mxu0 0.0
    %2659 = vmatpush1.msra.mxu0 0.0
    %2660 = vmatprep.subr.mxu0 0.0
    %2661 = vmatpush1.msra.mxu0 0.0
    %2662 = vmatprep.subr.mxu0 0.0
    %2663 = vmatpush1.msra.mxu0 0.0
    %2664 = vmatprep.mubr.f32.mxu0 0.0
    %2665 = vmatmul.mubr.f32.gmra.mrb[0].mxu0 %v2593
    %v2666 = vpop.f32.mrb[0].mxu0
    %v2667 = vadd.f32 0.0, %v2666
    %v2668 = vpop.f32.mrb[0].mxu0
    %v2669 = vadd.f32 0.0, %v2668
    %2670 = vdwg.mxu0
    %2671 = vmatprep.subr.mxu0 %v484
    %2672 = vmatpush1.msra.mxu0 %v483
    %2673 = vmatprep.subr.mxu0 %v488
    %2674 = vmatpush1.msra.mxu0 %v487
    %2675 = vmatprep.subr.mxu0 %v492
    %2676 = vmatpush1.msra.mxu0 %v491
    %2677 = vmatprep.subr.mxu0 %v496
    %2678 = vmatpush1.msra.mxu0 %v495
    %2679 = vmatprep.subr.mxu0 %v500
    %2680 = vmatpush1.msra.mxu0 %v499
    %2681 = vmatprep.subr.mxu0 %v504
    %2682 = vmatpush1.msra.mxu0 %v503
    %2683 = vmatprep.subr.mxu0 %v508
    %2684 = vmatpush1.msra.mxu0 %v507
    %2685 = vmatprep.subr.mxu0 %v512
    %2686 = vmatpush1.msra.mxu0 %v511
    %2687 = vmatprep.subr.mxu0 %v516
    %2688 = vmatpush1.msra.mxu0 %v515
    %2689 = vmatprep.subr.mxu0 %v520
    %2690 = vmatpush1.msra.mxu0 %v519
    %2691 = vmatprep.subr.mxu0 %v524
    %2692 = vmatpush1.msra.mxu0 %v523
    %2693 = vmatprep.subr.mxu0 %v528
    %2694 = vmatpush1.msra.mxu0 %v527
    %2695 = vmatprep.subr.mxu0 %v532
    %2696 = vmatpush1.msra.mxu0 %v531
    %2697 = vmatprep.subr.mxu0 %v536
    %2698 = vmatpush1.msra.mxu0 %v535
    %2699 = vmatprep.subr.mxu0 %v540
    %2700 = vmatpush1.msra.mxu0 %v539
    %2701 = vmatprep.subr.mxu0 %v544
    %2702 = vmatpush1.msra.mxu0 %v543
    %2703 = vmatprep.subr.mxu0 0.0
    %2704 = vmatpush1.msra.mxu0 0.0
    %2705 = vmatprep.subr.mxu0 0.0
    %2706 = vmatpush1.msra.mxu0 0.0
    %2707 = vmatprep.subr.mxu0 0.0
    %2708 = vmatpush1.msra.mxu0 0.0
    %2709 = vmatprep.subr.mxu0 0.0
    %2710 = vmatpush1.msra.mxu0 0.0
    %2711 = vmatprep.subr.mxu0 0.0
    %2712 = vmatpush1.msra.mxu0 0.0
    %2713 = vmatprep.subr.mxu0 0.0
    %2714 = vmatpush1.msra.mxu0 0.0
    %2715 = vmatprep.subr.mxu0 0.0
    %2716 = vmatpush1.msra.mxu0 0.0
    %2717 = vmatprep.subr.mxu0 0.0
    %2718 = vmatpush1.msra.mxu0 0.0
    %2719 = vmatprep.subr.mxu0 0.0
    %2720 = vmatpush1.msra.mxu0 0.0
    %2721 = vmatprep.subr.mxu0 0.0
    %2722 = vmatpush1.msra.mxu0 0.0
    %2723 = vmatprep.subr.mxu0 0.0
    %2724 = vmatpush1.msra.mxu0 0.0
    %2725 = vmatprep.subr.mxu0 0.0
    %2726 = vmatpush1.msra.mxu0 0.0
    %2727 = vmatprep.subr.mxu0 0.0
    %2728 = vmatpush1.msra.mxu0 0.0
    %2729 = vmatprep.subr.mxu0 0.0
    %2730 = vmatpush1.msra.mxu0 0.0
    %2731 = vmatprep.subr.mxu0 0.0
    %2732 = vmatpush1.msra.mxu0 0.0
    %2733 = vmatprep.subr.mxu0 0.0
    %2734 = vmatpush1.msra.mxu0 0.0
    %2735 = vmatprep.mubr.f32.mxu0 0.0
    %2736 = vmatmul.mubr.f32.gmra.mrb[0].mxu0 %v2593
    %v2737 = vpop.f32.mrb[0].mxu0
    %v2738 = vadd.f32 0.0, %v2737
    %v2739 = vpop.f32.mrb[0].mxu0
    %v2740 = vadd.f32 0.0, %v2739
    %2741 = vdwg.mxu0
    %v2742 = vadd.f32 %v2596, %v2667
    %v2743 = vadd.f32 %v2597, %v2669
    %v2744 = vadd.f32 %v2598, %v2738
    %v2745 = vadd.f32 %v2599, %v2740
    %v2746 = vxor.u32 %v2742, 2147483648
    %v2747 = vxor.u32 %v2743, 2147483648
    %v2748 = vxor.u32 %v2744, 2147483648
    %v2749 = vmul.f32 %v2746, 1.442695
    %v2750 = vpow.pop %v2749
    %v2751 = vmul.f32 %v2747, 1.442695
    %v2752 = vpow.pop %v2751
    %v2753 = vmul.f32 %v2748, 1.442695
    %v2754 = vpow.pop %v2753
    %v2755 = vadd.f32 %v2750, 1.0
    %v2756 = vadd.f32 %v2752, 1.0
    %v2757 = vadd.f32 %v2754, 1.0
    %v2758 = vrcp.pop %v2755
    %v2759 = vmul.f32 1.0, %v2758
    %v2760 = vrcp.pop %v2756
    %v2761 = vmul.f32 1.0, %v2760
    %v2762 = vrcp.pop %v2757
    %v2763 = vmul.f32 1.0, %v2762
    %v2764 = vtanh.pop %v2745
    %v2765 = vmul.f32 %v2761, %v2594
    %v2766 = vmul.f32 %v2759, %v2764
    %v2767 = vadd.f32 %v2765, %v2766
    %v2768 = vtanh.pop %v2767
    %v2769 = vmul.f32 %v2763, %v2768
    %vm2770 = vcmp.gt.s32.totalorder %v548, 11
    %v2771 = vsel %vm2770, 1, 0
    %2772 = vset.pattern.permute.xlu0 0
    %2773 = vperm.xlu0 %2772, %v2771
    %v2774 = vpop.permute.xlu0 %2773
    %vm2775 = vcmp.eq.s32.totalorder %v2774, 1
    %v2776 = vsel %vm2775, %v2769, 0.0
    %s2777 = scalar_lea.vmem [#allocation5], 88
    %2778 = vst [vmem:[%s2777] sm:$0xff] %v2776
    %v2779 = vsel %vm2775, %v2769, %v2593
    %v2780 = vsel %vm2775, %v2767, %v2594
    %2781 = vst [vmem:[#allocation2] sm:$0xff] %v2779
    %2782 = vst [vmem:[#allocation3] sm:$0xff] %v2780
    %v2783 = vld [vmem:[#allocation5] sm:$0xff]
    %v2785 = vcombine.high %v2783, %v2783
    %v2787 = vunpack.c.l.s4 1966171168
    %v2788 = vunpack.c.0.s8 %v2787
    %v2789 = vlaneseq
    %v2790 = vshrl.u32 %v2789, 7
    %v2791 = vsub.s32 %v2788, %v2790
    %v2792 = vrot.slane %v2783, %v2791
    %v2794 = vunpack.c.l.s4 1966171168
    %v2795 = vunpack.c.0.s8 %v2794
    %v2796 = vlaneseq
    %v2797 = vshrl.u32 %v2796, 7
    %v2798 = vsub.s32 %v2795, %v2797
    %v2799 = vrot.slane %v2785, %v2798
    %v2800 = vcombine.high %v2792, %v2792
    %v2801 = vcombine.high %v2799, %v2799
    %v2803 = vunpack.c.l.s4 1966171168
    %v2804 = vunpack.c.0.s8 %v2803
    %v2805 = vlaneseq
    %v2806 = vshrl.u32 %v2805, 7
    %v2807 = vsub.s32 %v2804, %v2806
    %v2808 = vrot.slane %v2792, %v2807
    %v2810 = vunpack.c.l.s4 1966171168
    %v2811 = vunpack.c.0.s8 %v2810
    %v2812 = vlaneseq
    %v2813 = vshrl.u32 %v2812, 7
    %v2814 = vsub.s32 %v2811, %v2813
    %v2815 = vrot.slane %v2799, %v2814
    %v2817 = vunpack.c.l.s4 1966171168
    %v2818 = vunpack.c.0.s8 %v2817
    %v2819 = vlaneseq
    %v2820 = vshrl.u32 %v2819, 7
    %v2821 = vsub.s32 %v2818, %v2820
    %v2822 = vrot.slane %v2800, %v2821
    %v2824 = vunpack.c.l.s4 1966171168
    %v2825 = vunpack.c.0.s8 %v2824
    %v2826 = vlaneseq
    %v2827 = vshrl.u32 %v2826, 7
    %v2828 = vsub.s32 %v2825, %v2827
    %v2829 = vrot.slane %v2801, %v2828
    %v2830 = vcombine.high %v2808, %v2808
    %v2831 = vcombine.high %v2815, %v2815
    %v2832 = vcombine.high %v2822, %v2822
    %v2833 = vcombine.high %v2829, %v2829
    %2842 = vst [vmem:[%s5] sm:$0x1] %v2808
    %2843 = vst [vmem:[%s5 + $0x10] sm:$0x1] %v2822
    %2844 = vst [vmem:[%s5 + $0x20] sm:$0x1] %v2830
    %2845 = vst [vmem:[%s5 + $0x30] sm:$0x1] %v2832
    %2846 = vst [vmem:[%s5 + $0x40] sm:$0x1] %v2815
    %2847 = vst [vmem:[%s5 + $0x50] sm:$0x1] %v2829
    %2848 = vst [vmem:[%s5 + $0x60] sm:$0x1] %v2831
    %2849 = vst [vmem:[%s5 + $0x70] sm:$0x1] %v2833
    %v2850 = vld [vmem:[%s917] sm:$0xff]
    %v2852 = vcombine.high %v2850, %v2850
    %v2854 = vunpack.c.l.s4 1966171168
    %v2855 = vunpack.c.0.s8 %v2854
    %v2856 = vlaneseq
    %v2857 = vshrl.u32 %v2856, 7
    %v2858 = vsub.s32 %v2855, %v2857
    %v2859 = vrot.slane %v2850, %v2858
    %v2861 = vunpack.c.l.s4 1966171168
    %v2862 = vunpack.c.0.s8 %v2861
    %v2863 = vlaneseq
    %v2864 = vshrl.u32 %v2863, 7
    %v2865 = vsub.s32 %v2862, %v2864
    %v2866 = vrot.slane %v2852, %v2865
    %v2867 = vcombine.high %v2859, %v2859
    %v2868 = vcombine.high %v2866, %v2866
    %v2870 = vunpack.c.l.s4 1966171168
    %v2871 = vunpack.c.0.s8 %v2870
    %v2872 = vlaneseq
    %v2873 = vshrl.u32 %v2872, 7
    %v2874 = vsub.s32 %v2871, %v2873
    %v2875 = vrot.slane %v2859, %v2874
    %v2877 = vunpack.c.l.s4 1966171168
    %v2878 = vunpack.c.0.s8 %v2877
    %v2879 = vlaneseq
    %v2880 = vshrl.u32 %v2879, 7
    %v2881 = vsub.s32 %v2878, %v2880
    %v2882 = vrot.slane %v2866, %v2881
    %v2884 = vunpack.c.l.s4 1966171168
    %v2885 = vunpack.c.0.s8 %v2884
    %v2886 = vlaneseq
    %v2887 = vshrl.u32 %v2886, 7
    %v2888 = vsub.s32 %v2885, %v2887
    %v2889 = vrot.slane %v2867, %v2888
    %v2891 = vunpack.c.l.s4 1966171168
    %v2892 = vunpack.c.0.s8 %v2891
    %v2893 = vlaneseq
    %v2894 = vshrl.u32 %v2893, 7
    %v2895 = vsub.s32 %v2892, %v2894
    %v2896 = vrot.slane %v2868, %v2895
    %v2897 = vcombine.high %v2875, %v2875
    %v2898 = vcombine.high %v2882, %v2882
    %v2899 = vcombine.high %v2889, %v2889
    %v2900 = vcombine.high %v2896, %v2896
    %2909 = vst [vmem:[%s5 + $0x1] sm:$0x1] %v2875
    %2910 = vst [vmem:[%s5 + $0x11] sm:$0x1] %v2889
    %2911 = vst [vmem:[%s5 + $0x21] sm:$0x1] %v2897
    %2912 = vst [vmem:[%s5 + $0x31] sm:$0x1] %v2899
    %2913 = vst [vmem:[%s5 + $0x41] sm:$0x1] %v2882
    %2914 = vst [vmem:[%s5 + $0x51] sm:$0x1] %v2896
    %2915 = vst [vmem:[%s5 + $0x61] sm:$0x1] %v2898
    %2916 = vst [vmem:[%s5 + $0x71] sm:$0x1] %v2900
    %v2917 = vld [vmem:[%s1103] sm:$0xff]
    %v2919 = vcombine.high %v2917, %v2917
    %v2921 = vunpack.c.l.s4 1966171168
    %v2922 = vunpack.c.0.s8 %v2921
    %v2923 = vlaneseq
    %v2924 = vshrl.u32 %v2923, 7
    %v2925 = vsub.s32 %v2922, %v2924
    %v2926 = vrot.slane %v2917, %v2925
    %v2928 = vunpack.c.l.s4 1966171168
    %v2929 = vunpack.c.0.s8 %v2928
    %v2930 = vlaneseq
    %v2931 = vshrl.u32 %v2930, 7
    %v2932 = vsub.s32 %v2929, %v2931
    %v2933 = vrot.slane %v2919, %v2932
    %v2934 = vcombine.high %v2926, %v2926
    %v2935 = vcombine.high %v2933, %v2933
    %v2937 = vunpack.c.l.s4 1966171168
    %v2938 = vunpack.c.0.s8 %v2937
    %v2939 = vlaneseq
    %v2940 = vshrl.u32 %v2939, 7
    %v2941 = vsub.s32 %v2938, %v2940
    %v2942 = vrot.slane %v2926, %v2941
    %v2944 = vunpack.c.l.s4 1966171168
    %v2945 = vunpack.c.0.s8 %v2944
    %v2946 = vlaneseq
    %v2947 = vshrl.u32 %v2946, 7
    %v2948 = vsub.s32 %v2945, %v2947
    %v2949 = vrot.slane %v2933, %v2948
    %v2951 = vunpack.c.l.s4 1966171168
    %v2952 = vunpack.c.0.s8 %v2951
    %v2953 = vlaneseq
    %v2954 = vshrl.u32 %v2953, 7
    %v2955 = vsub.s32 %v2952, %v2954
    %v2956 = vrot.slane %v2934, %v2955
    %v2958 = vunpack.c.l.s4 1966171168
    %v2959 = vunpack.c.0.s8 %v2958
    %v2960 = vlaneseq
    %v2961 = vshrl.u32 %v2960, 7
    %v2962 = vsub.s32 %v2959, %v2961
    %v2963 = vrot.slane %v2935, %v2962
    %v2964 = vcombine.high %v2942, %v2942
    %v2965 = vcombine.high %v2949, %v2949
    %v2966 = vcombine.high %v2956, %v2956
    %v2967 = vcombine.high %v2963, %v2963
    %2976 = vst [vmem:[%s5 + $0x2] sm:$0x1] %v2942
    %2977 = vst [vmem:[%s5 + $0x12] sm:$0x1] %v2956
    %2978 = vst [vmem:[%s5 + $0x22] sm:$0x1] %v2964
    %2979 = vst [vmem:[%s5 + $0x32] sm:$0x1] %v2966
    %2980 = vst [vmem:[%s5 + $0x42] sm:$0x1] %v2949
    %2981 = vst [vmem:[%s5 + $0x52] sm:$0x1] %v2963
    %2982 = vst [vmem:[%s5 + $0x62] sm:$0x1] %v2965
    %2983 = vst [vmem:[%s5 + $0x72] sm:$0x1] %v2967
    %v2984 = vld [vmem:[%s1289] sm:$0xff]
    %v2986 = vcombine.high %v2984, %v2984
    %v2988 = vunpack.c.l.s4 1966171168
    %v2989 = vunpack.c.0.s8 %v2988
    %v2990 = vlaneseq
    %v2991 = vshrl.u32 %v2990, 7
    %v2992 = vsub.s32 %v2989, %v2991
    %v2993 = vrot.slane %v2984, %v2992
    %v2995 = vunpack.c.l.s4 1966171168
    %v2996 = vunpack.c.0.s8 %v2995
    %v2997 = vlaneseq
    %v2998 = vshrl.u32 %v2997, 7
    %v2999 = vsub.s32 %v2996, %v2998
    %v3000 = vrot.slane %v2986, %v2999
    %v3001 = vcombine.high %v2993, %v2993
    %v3002 = vcombine.high %v3000, %v3000
    %v3004 = vunpack.c.l.s4 1966171168
    %v3005 = vunpack.c.0.s8 %v3004
    %v3006 = vlaneseq
    %v3007 = vshrl.u32 %v3006, 7
    %v3008 = vsub.s32 %v3005, %v3007
    %v3009 = vrot.slane %v2993, %v3008
    %v3011 = vunpack.c.l.s4 1966171168
    %v3012 = vunpack.c.0.s8 %v3011
    %v3013 = vlaneseq
    %v3014 = vshrl.u32 %v3013, 7
    %v3015 = vsub.s32 %v3012, %v3014
    %v3016 = vrot.slane %v3000, %v3015
    %v3018 = vunpack.c.l.s4 1966171168
    %v3019 = vunpack.c.0.s8 %v3018
    %v3020 = vlaneseq
    %v3021 = vshrl.u32 %v3020, 7
    %v3022 = vsub.s32 %v3019, %v3021
    %v3023 = vrot.slane %v3001, %v3022
    %v3025 = vunpack.c.l.s4 1966171168
    %v3026 = vunpack.c.0.s8 %v3025
    %v3027 = vlaneseq
    %v3028 = vshrl.u32 %v3027, 7
    %v3029 = vsub.s32 %v3026, %v3028
    %v3030 = vrot.slane %v3002, %v3029
    %v3031 = vcombine.high %v3009, %v3009
    %v3032 = vcombine.high %v3016, %v3016
    %v3033 = vcombine.high %v3023, %v3023
    %v3034 = vcombine.high %v3030, %v3030
    %3043 = vst [vmem:[%s5 + $0x3] sm:$0x1] %v3009
    %3044 = vst [vmem:[%s5 + $0x13] sm:$0x1] %v3023
    %3045 = vst [vmem:[%s5 + $0x23] sm:$0x1] %v3031
    %3046 = vst [vmem:[%s5 + $0x33] sm:$0x1] %v3033
    %3047 = vst [vmem:[%s5 + $0x43] sm:$0x1] %v3016
    %3048 = vst [vmem:[%s5 + $0x53] sm:$0x1] %v3030
    %3049 = vst [vmem:[%s5 + $0x63] sm:$0x1] %v3032
    %3050 = vst [vmem:[%s5 + $0x73] sm:$0x1] %v3034
    %v3051 = vld [vmem:[%s1475] sm:$0xff]
    %v3053 = vcombine.high %v3051, %v3051
    %v3055 = vunpack.c.l.s4 1966171168
    %v3056 = vunpack.c.0.s8 %v3055
    %v3057 = vlaneseq
    %v3058 = vshrl.u32 %v3057, 7
    %v3059 = vsub.s32 %v3056, %v3058
    %v3060 = vrot.slane %v3051, %v3059
    %v3062 = vunpack.c.l.s4 1966171168
    %v3063 = vunpack.c.0.s8 %v3062
    %v3064 = vlaneseq
    %v3065 = vshrl.u32 %v3064, 7
    %v3066 = vsub.s32 %v3063, %v3065
    %v3067 = vrot.slane %v3053, %v3066
    %v3068 = vcombine.high %v3060, %v3060
    %v3069 = vcombine.high %v3067, %v3067
    %v3071 = vunpack.c.l.s4 1966171168
    %v3072 = vunpack.c.0.s8 %v3071
    %v3073 = vlaneseq
    %v3074 = vshrl.u32 %v3073, 7
    %v3075 = vsub.s32 %v3072, %v3074
    %v3076 = vrot.slane %v3060, %v3075
    %v3078 = vunpack.c.l.s4 1966171168
    %v3079 = vunpack.c.0.s8 %v3078
    %v3080 = vlaneseq
    %v3081 = vshrl.u32 %v3080, 7
    %v3082 = vsub.s32 %v3079, %v3081
    %v3083 = vrot.slane %v3067, %v3082
    %v3085 = vunpack.c.l.s4 1966171168
    %v3086 = vunpack.c.0.s8 %v3085
    %v3087 = vlaneseq
    %v3088 = vshrl.u32 %v3087, 7
    %v3089 = vsub.s32 %v3086, %v3088
    %v3090 = vrot.slane %v3068, %v3089
    %v3092 = vunpack.c.l.s4 1966171168
    %v3093 = vunpack.c.0.s8 %v3092
    %v3094 = vlaneseq
    %v3095 = vshrl.u32 %v3094, 7
    %v3096 = vsub.s32 %v3093, %v3095
    %v3097 = vrot.slane %v3069, %v3096
    %v3098 = vcombine.high %v3076, %v3076
    %v3099 = vcombine.high %v3083, %v3083
    %v3100 = vcombine.high %v3090, %v3090
    %v3101 = vcombine.high %v3097, %v3097
    %3110 = vst [vmem:[%s5 + $0x4] sm:$0x1] %v3076
    %3111 = vst [vmem:[%s5 + $0x14] sm:$0x1] %v3090
    %3112 = vst [vmem:[%s5 + $0x24] sm:$0x1] %v3098
    %3113 = vst [vmem:[%s5 + $0x34] sm:$0x1] %v3100
    %3114 = vst [vmem:[%s5 + $0x44] sm:$0x1] %v3083
    %3115 = vst [vmem:[%s5 + $0x54] sm:$0x1] %v3097
    %3116 = vst [vmem:[%s5 + $0x64] sm:$0x1] %v3099
    %3117 = vst [vmem:[%s5 + $0x74] sm:$0x1] %v3101
    %v3118 = vld [vmem:[%s1661] sm:$0xff]
    %v3120 = vcombine.high %v3118, %v3118
    %v3122 = vunpack.c.l.s4 1966171168
    %v3123 = vunpack.c.0.s8 %v3122
    %v3124 = vlaneseq
    %v3125 = vshrl.u32 %v3124, 7
    %v3126 = vsub.s32 %v3123, %v3125
    %v3127 = vrot.slane %v3118, %v3126
    %v3129 = vunpack.c.l.s4 1966171168
    %v3130 = vunpack.c.0.s8 %v3129
    %v3131 = vlaneseq
    %v3132 = vshrl.u32 %v3131, 7
    %v3133 = vsub.s32 %v3130, %v3132
    %v3134 = vrot.slane %v3120, %v3133
    %v3135 = vcombine.high %v3127, %v3127
    %v3136 = vcombine.high %v3134, %v3134
    %v3138 = vunpack.c.l.s4 1966171168
    %v3139 = vunpack.c.0.s8 %v3138
    %v3140 = vlaneseq
    %v3141 = vshrl.u32 %v3140, 7
    %v3142 = vsub.s32 %v3139, %v3141
    %v3143 = vrot.slane %v3127, %v3142
    %v3145 = vunpack.c.l.s4 1966171168
    %v3146 = vunpack.c.0.s8 %v3145
    %v3147 = vlaneseq
    %v3148 = vshrl.u32 %v3147, 7
    %v3149 = vsub.s32 %v3146, %v3148
    %v3150 = vrot.slane %v3134, %v3149
    %v3152 = vunpack.c.l.s4 1966171168
    %v3153 = vunpack.c.0.s8 %v3152
    %v3154 = vlaneseq
    %v3155 = vshrl.u32 %v3154, 7
    %v3156 = vsub.s32 %v3153, %v3155
    %v3157 = vrot.slane %v3135, %v3156
    %v3159 = vunpack.c.l.s4 1966171168
    %v3160 = vunpack.c.0.s8 %v3159
    %v3161 = vlaneseq
    %v3162 = vshrl.u32 %v3161, 7
    %v3163 = vsub.s32 %v3160, %v3162
    %v3164 = vrot.slane %v3136, %v3163
    %v3165 = vcombine.high %v3143, %v3143
    %v3166 = vcombine.high %v3150, %v3150
    %v3167 = vcombine.high %v3157, %v3157
    %v3168 = vcombine.high %v3164, %v3164
    %3177 = vst [vmem:[%s5 + $0x5] sm:$0x1] %v3143
    %3178 = vst [vmem:[%s5 + $0x15] sm:$0x1] %v3157
    %3179 = vst [vmem:[%s5 + $0x25] sm:$0x1] %v3165
    %3180 = vst [vmem:[%s5 + $0x35] sm:$0x1] %v3167
    %3181 = vst [vmem:[%s5 + $0x45] sm:$0x1] %v3150
    %3182 = vst [vmem:[%s5 + $0x55] sm:$0x1] %v3164
    %3183 = vst [vmem:[%s5 + $0x65] sm:$0x1] %v3166
    %3184 = vst [vmem:[%s5 + $0x75] sm:$0x1] %v3168
    %v3185 = vld [vmem:[%s1847] sm:$0xff]
    %v3187 = vcombine.high %v3185, %v3185
    %v3189 = vunpack.c.l.s4 1966171168
    %v3190 = vunpack.c.0.s8 %v3189
    %v3191 = vlaneseq
    %v3192 = vshrl.u32 %v3191, 7
    %v3193 = vsub.s32 %v3190, %v3192
    %v3194 = vrot.slane %v3185, %v3193
    %v3196 = vunpack.c.l.s4 1966171168
    %v3197 = vunpack.c.0.s8 %v3196
    %v3198 = vlaneseq
    %v3199 = vshrl.u32 %v3198, 7
    %v3200 = vsub.s32 %v3197, %v3199
    %v3201 = vrot.slane %v3187, %v3200
    %v3202 = vcombine.high %v3194, %v3194
    %v3203 = vcombine.high %v3201, %v3201
    %v3205 = vunpack.c.l.s4 1966171168
    %v3206 = vunpack.c.0.s8 %v3205
    %v3207 = vlaneseq
    %v3208 = vshrl.u32 %v3207, 7
    %v3209 = vsub.s32 %v3206, %v3208
    %v3210 = vrot.slane %v3194, %v3209
    %v3212 = vunpack.c.l.s4 1966171168
    %v3213 = vunpack.c.0.s8 %v3212
    %v3214 = vlaneseq
    %v3215 = vshrl.u32 %v3214, 7
    %v3216 = vsub.s32 %v3213, %v3215
    %v3217 = vrot.slane %v3201, %v3216
    %v3219 = vunpack.c.l.s4 1966171168
    %v3220 = vunpack.c.0.s8 %v3219
    %v3221 = vlaneseq
    %v3222 = vshrl.u32 %v3221, 7
    %v3223 = vsub.s32 %v3220, %v3222
    %v3224 = vrot.slane %v3202, %v3223
    %v3226 = vunpack.c.l.s4 1966171168
    %v3227 = vunpack.c.0.s8 %v3226
    %v3228 = vlaneseq
    %v3229 = vshrl.u32 %v3228, 7
    %v3230 = vsub.s32 %v3227, %v3229
    %v3231 = vrot.slane %v3203, %v3230
    %v3232 = vcombine.high %v3210, %v3210
    %v3233 = vcombine.high %v3217, %v3217
    %v3234 = vcombine.high %v3224, %v3224
    %v3235 = vcombine.high %v3231, %v3231
    %3244 = vst [vmem:[%s5 + $0x6] sm:$0x1] %v3210
    %3245 = vst [vmem:[%s5 + $0x16] sm:$0x1] %v3224
    %3246 = vst [vmem:[%s5 + $0x26] sm:$0x1] %v3232
    %3247 = vst [vmem:[%s5 + $0x36] sm:$0x1] %v3234
    %3248 = vst [vmem:[%s5 + $0x46] sm:$0x1] %v3217
    %3249 = vst [vmem:[%s5 + $0x56] sm:$0x1] %v3231
    %3250 = vst [vmem:[%s5 + $0x66] sm:$0x1] %v3233
    %3251 = vst [vmem:[%s5 + $0x76] sm:$0x1] %v3235
    %v3252 = vld [vmem:[%s2033] sm:$0xff]
    %v3254 = vcombine.high %v3252, %v3252
    %v3256 = vunpack.c.l.s4 1966171168
    %v3257 = vunpack.c.0.s8 %v3256
    %v3258 = vlaneseq
    %v3259 = vshrl.u32 %v3258, 7
    %v3260 = vsub.s32 %v3257, %v3259
    %v3261 = vrot.slane %v3252, %v3260
    %v3263 = vunpack.c.l.s4 1966171168
    %v3264 = vunpack.c.0.s8 %v3263
    %v3265 = vlaneseq
    %v3266 = vshrl.u32 %v3265, 7
    %v3267 = vsub.s32 %v3264, %v3266
    %v3268 = vrot.slane %v3254, %v3267
    %v3269 = vcombine.high %v3261, %v3261
    %v3270 = vcombine.high %v3268, %v3268
    %v3272 = vunpack.c.l.s4 1966171168
    %v3273 = vunpack.c.0.s8 %v3272
    %v3274 = vlaneseq
    %v3275 = vshrl.u32 %v3274, 7
    %v3276 = vsub.s32 %v3273, %v3275
    %v3277 = vrot.slane %v3261, %v3276
    %v3279 = vunpack.c.l.s4 1966171168
    %v3280 = vunpack.c.0.s8 %v3279
    %v3281 = vlaneseq
    %v3282 = vshrl.u32 %v3281, 7
    %v3283 = vsub.s32 %v3280, %v3282
    %v3284 = vrot.slane %v3268, %v3283
    %v3286 = vunpack.c.l.s4 1966171168
    %v3287 = vunpack.c.0.s8 %v3286
    %v3288 = vlaneseq
    %v3289 = vshrl.u32 %v3288, 7
    %v3290 = vsub.s32 %v3287, %v3289
    %v3291 = vrot.slane %v3269, %v3290
    %v3293 = vunpack.c.l.s4 1966171168
    %v3294 = vunpack.c.0.s8 %v3293
    %v3295 = vlaneseq
    %v3296 = vshrl.u32 %v3295, 7
    %v3297 = vsub.s32 %v3294, %v3296
    %v3298 = vrot.slane %v3270, %v3297
    %v3299 = vcombine.high %v3277, %v3277
    %v3300 = vcombine.high %v3284, %v3284
    %v3301 = vcombine.high %v3291, %v3291
    %v3302 = vcombine.high %v3298, %v3298
    %3311 = vst [vmem:[%s5 + $0x7] sm:$0x1] %v3277
    %3312 = vst [vmem:[%s5 + $0x17] sm:$0x1] %v3291
    %3313 = vst [vmem:[%s5 + $0x27] sm:$0x1] %v3299
    %3314 = vst [vmem:[%s5 + $0x37] sm:$0x1] %v3301
    %3315 = vst [vmem:[%s5 + $0x47] sm:$0x1] %v3284
    %3316 = vst [vmem:[%s5 + $0x57] sm:$0x1] %v3298
    %3317 = vst [vmem:[%s5 + $0x67] sm:$0x1] %v3300
    %3318 = vst [vmem:[%s5 + $0x77] sm:$0x1] %v3302
    %v3319 = vld [vmem:[%s2219] sm:$0xff]
    %v3321 = vcombine.high %v3319, %v3319
    %v3323 = vunpack.c.l.s4 1966171168
    %v3324 = vunpack.c.0.s8 %v3323
    %v3325 = vlaneseq
    %v3326 = vshrl.u32 %v3325, 7
    %v3327 = vsub.s32 %v3324, %v3326
    %v3328 = vrot.slane %v3319, %v3327
    %v3330 = vunpack.c.l.s4 1966171168
    %v3331 = vunpack.c.0.s8 %v3330
    %v3332 = vlaneseq
    %v3333 = vshrl.u32 %v3332, 7
    %v3334 = vsub.s32 %v3331, %v3333
    %v3335 = vrot.slane %v3321, %v3334
    %v3336 = vcombine.high %v3328, %v3328
    %v3337 = vcombine.high %v3335, %v3335
    %v3339 = vunpack.c.l.s4 1966171168
    %v3340 = vunpack.c.0.s8 %v3339
    %v3341 = vlaneseq
    %v3342 = vshrl.u32 %v3341, 7
    %v3343 = vsub.s32 %v3340, %v3342
    %v3344 = vrot.slane %v3328, %v3343
    %v3346 = vunpack.c.l.s4 1966171168
    %v3347 = vunpack.c.0.s8 %v3346
    %v3348 = vlaneseq
    %v3349 = vshrl.u32 %v3348, 7
    %v3350 = vsub.s32 %v3347, %v3349
    %v3351 = vrot.slane %v3335, %v3350
    %v3353 = vunpack.c.l.s4 1966171168
    %v3354 = vunpack.c.0.s8 %v3353
    %v3355 = vlaneseq
    %v3356 = vshrl.u32 %v3355, 7
    %v3357 = vsub.s32 %v3354, %v3356
    %v3358 = vrot.slane %v3336, %v3357
    %v3360 = vunpack.c.l.s4 1966171168
    %v3361 = vunpack.c.0.s8 %v3360
    %v3362 = vlaneseq
    %v3363 = vshrl.u32 %v3362, 7
    %v3364 = vsub.s32 %v3361, %v3363
    %v3365 = vrot.slane %v3337, %v3364
    %v3366 = vcombine.high %v3344, %v3344
    %v3367 = vcombine.high %v3351, %v3351
    %v3368 = vcombine.high %v3358, %v3358
    %v3369 = vcombine.high %v3365, %v3365
    %3378 = vst [vmem:[%s5 + $0x8] sm:$0x1] %v3344
    %3379 = vst [vmem:[%s5 + $0x18] sm:$0x1] %v3358
    %3380 = vst [vmem:[%s5 + $0x28] sm:$0x1] %v3366
    %3381 = vst [vmem:[%s5 + $0x38] sm:$0x1] %v3368
    %3382 = vst [vmem:[%s5 + $0x48] sm:$0x1] %v3351
    %3383 = vst [vmem:[%s5 + $0x58] sm:$0x1] %v3365
    %3384 = vst [vmem:[%s5 + $0x68] sm:$0x1] %v3367
    %3385 = vst [vmem:[%s5 + $0x78] sm:$0x1] %v3369
    %v3386 = vld [vmem:[%s2405] sm:$0xff]
    %v3388 = vcombine.high %v3386, %v3386
    %v3390 = vunpack.c.l.s4 1966171168
    %v3391 = vunpack.c.0.s8 %v3390
    %v3392 = vlaneseq
    %v3393 = vshrl.u32 %v3392, 7
    %v3394 = vsub.s32 %v3391, %v3393
    %v3395 = vrot.slane %v3386, %v3394
    %v3397 = vunpack.c.l.s4 1966171168
    %v3398 = vunpack.c.0.s8 %v3397
    %v3399 = vlaneseq
    %v3400 = vshrl.u32 %v3399, 7
    %v3401 = vsub.s32 %v3398, %v3400
    %v3402 = vrot.slane %v3388, %v3401
    %v3403 = vcombine.high %v3395, %v3395
    %v3404 = vcombine.high %v3402, %v3402
    %v3406 = vunpack.c.l.s4 1966171168
    %v3407 = vunpack.c.0.s8 %v3406
    %v3408 = vlaneseq
    %v3409 = vshrl.u32 %v3408, 7
    %v3410 = vsub.s32 %v3407, %v3409
    %v3411 = vrot.slane %v3395, %v3410
    %v3413 = vunpack.c.l.s4 1966171168
    %v3414 = vunpack.c.0.s8 %v3413
    %v3415 = vlaneseq
    %v3416 = vshrl.u32 %v3415, 7
    %v3417 = vsub.s32 %v3414, %v3416
    %v3418 = vrot.slane %v3402, %v3417
    %v3420 = vunpack.c.l.s4 1966171168
    %v3421 = vunpack.c.0.s8 %v3420
    %v3422 = vlaneseq
    %v3423 = vshrl.u32 %v3422, 7
    %v3424 = vsub.s32 %v3421, %v3423
    %v3425 = vrot.slane %v3403, %v3424
    %v3427 = vunpack.c.l.s4 1966171168
    %v3428 = vunpack.c.0.s8 %v3427
    %v3429 = vlaneseq
    %v3430 = vshrl.u32 %v3429, 7
    %v3431 = vsub.s32 %v3428, %v3430
    %v3432 = vrot.slane %v3404, %v3431
    %v3433 = vcombine.high %v3411, %v3411
    %v3434 = vcombine.high %v3418, %v3418
    %v3435 = vcombine.high %v3425, %v3425
    %v3436 = vcombine.high %v3432, %v3432
    %3445 = vst [vmem:[%s5 + $0x9] sm:$0x1] %v3411
    %3446 = vst [vmem:[%s5 + $0x19] sm:$0x1] %v3425
    %3447 = vst [vmem:[%s5 + $0x29] sm:$0x1] %v3433
    %3448 = vst [vmem:[%s5 + $0x39] sm:$0x1] %v3435
    %3449 = vst [vmem:[%s5 + $0x49] sm:$0x1] %v3418
    %3450 = vst [vmem:[%s5 + $0x59] sm:$0x1] %v3432
    %3451 = vst [vmem:[%s5 + $0x69] sm:$0x1] %v3434
    %3452 = vst [vmem:[%s5 + $0x79] sm:$0x1] %v3436
    %v3453 = vld [vmem:[%s2591] sm:$0xff]
    %v3455 = vcombine.high %v3453, %v3453
    %v3457 = vunpack.c.l.s4 1966171168
    %v3458 = vunpack.c.0.s8 %v3457
    %v3459 = vlaneseq
    %v3460 = vshrl.u32 %v3459, 7
    %v3461 = vsub.s32 %v3458, %v3460
    %v3462 = vrot.slane %v3453, %v3461
    %v3464 = vunpack.c.l.s4 1966171168
    %v3465 = vunpack.c.0.s8 %v3464
    %v3466 = vlaneseq
    %v3467 = vshrl.u32 %v3466, 7
    %v3468 = vsub.s32 %v3465, %v3467
    %v3469 = vrot.slane %v3455, %v3468
    %v3470 = vcombine.high %v3462, %v3462
    %v3471 = vcombine.high %v3469, %v3469
    %v3473 = vunpack.c.l.s4 1966171168
    %v3474 = vunpack.c.0.s8 %v3473
    %v3475 = vlaneseq
    %v3476 = vshrl.u32 %v3475, 7
    %v3477 = vsub.s32 %v3474, %v3476
    %v3478 = vrot.slane %v3462, %v3477
    %v3480 = vunpack.c.l.s4 1966171168
    %v3481 = vunpack.c.0.s8 %v3480
    %v3482 = vlaneseq
    %v3483 = vshrl.u32 %v3482, 7
    %v3484 = vsub.s32 %v3481, %v3483
    %v3485 = vrot.slane %v3469, %v3484
    %v3487 = vunpack.c.l.s4 1966171168
    %v3488 = vunpack.c.0.s8 %v3487
    %v3489 = vlaneseq
    %v3490 = vshrl.u32 %v3489, 7
    %v3491 = vsub.s32 %v3488, %v3490
    %v3492 = vrot.slane %v3470, %v3491
    %v3494 = vunpack.c.l.s4 1966171168
    %v3495 = vunpack.c.0.s8 %v3494
    %v3496 = vlaneseq
    %v3497 = vshrl.u32 %v3496, 7
    %v3498 = vsub.s32 %v3495, %v3497
    %v3499 = vrot.slane %v3471, %v3498
    %v3500 = vcombine.high %v3478, %v3478
    %v3501 = vcombine.high %v3485, %v3485
    %v3502 = vcombine.high %v3492, %v3492
    %v3503 = vcombine.high %v3499, %v3499
    %3512 = vst [vmem:[%s5 + $0xa] sm:$0x1] %v3478
    %3513 = vst [vmem:[%s5 + $0x1a] sm:$0x1] %v3492
    %3514 = vst [vmem:[%s5 + $0x2a] sm:$0x1] %v3500
    %3515 = vst [vmem:[%s5 + $0x3a] sm:$0x1] %v3502
    %3516 = vst [vmem:[%s5 + $0x4a] sm:$0x1] %v3485
    %3517 = vst [vmem:[%s5 + $0x5a] sm:$0x1] %v3499
    %3518 = vst [vmem:[%s5 + $0x6a] sm:$0x1] %v3501
    %3519 = vst [vmem:[%s5 + $0x7a] sm:$0x1] %v3503
    %v3520 = vld [vmem:[%s2777] sm:$0xff]
    %v3522 = vcombine.high %v3520, %v3520
    %v3524 = vunpack.c.l.s4 1966171168
    %v3525 = vunpack.c.0.s8 %v3524
    %v3526 = vlaneseq
    %v3527 = vshrl.u32 %v3526, 7
    %v3528 = vsub.s32 %v3525, %v3527
    %v3529 = vrot.slane %v3520, %v3528
    %v3531 = vunpack.c.l.s4 1966171168
    %v3532 = vunpack.c.0.s8 %v3531
    %v3533 = vlaneseq
    %v3534 = vshrl.u32 %v3533, 7
    %v3535 = vsub.s32 %v3532, %v3534
    %v3536 = vrot.slane %v3522, %v3535
    %v3537 = vcombine.high %v3529, %v3529
    %v3538 = vcombine.high %v3536, %v3536
    %v3540 = vunpack.c.l.s4 1966171168
    %v3541 = vunpack.c.0.s8 %v3540
    %v3542 = vlaneseq
    %v3543 = vshrl.u32 %v3542, 7
    %v3544 = vsub.s32 %v3541, %v3543
    %v3545 = vrot.slane %v3529, %v3544
    %v3547 = vunpack.c.l.s4 1966171168
    %v3548 = vunpack.c.0.s8 %v3547
    %v3549 = vlaneseq
    %v3550 = vshrl.u32 %v3549, 7
    %v3551 = vsub.s32 %v3548, %v3550
    %v3552 = vrot.slane %v3536, %v3551
    %v3554 = vunpack.c.l.s4 1966171168
    %v3555 = vunpack.c.0.s8 %v3554
    %v3556 = vlaneseq
    %v3557 = vshrl.u32 %v3556, 7
    %v3558 = vsub.s32 %v3555, %v3557
    %v3559 = vrot.slane %v3537, %v3558
    %v3561 = vunpack.c.l.s4 1966171168
    %v3562 = vunpack.c.0.s8 %v3561
    %v3563 = vlaneseq
    %v3564 = vshrl.u32 %v3563, 7
    %v3565 = vsub.s32 %v3562, %v3564
    %v3566 = vrot.slane %v3538, %v3565
    %v3567 = vcombine.high %v3545, %v3545
    %v3568 = vcombine.high %v3552, %v3552
    %v3569 = vcombine.high %v3559, %v3559
    %v3570 = vcombine.high %v3566, %v3566
    %3579 = vst [vmem:[%s5 + $0xb] sm:$0x1] %v3545
    %3580 = vst [vmem:[%s5 + $0x1b] sm:$0x1] %v3559
    %3581 = vst [vmem:[%s5 + $0x2b] sm:$0x1] %v3567
    %3582 = vst [vmem:[%s5 + $0x3b] sm:$0x1] %v3569
    %3583 = vst [vmem:[%s5 + $0x4b] sm:$0x1] %v3552
    %3584 = vst [vmem:[%s5 + $0x5b] sm:$0x1] %v3566
    %3585 = vst [vmem:[%s5 + $0x6b] sm:$0x1] %v3568
    %3586 = vst [vmem:[%s5 + $0x7b] sm:$0x1] %v3570
    // Predicated region
    $region38: #{tpu_custom_call.1} parent=1 // pred_check
      %p3587 = pneg %p66
    $region39: #{tpu_custom_call.1} parent=1 // pred_check_branch
      %3589 = sbr.rel (%p3587) target = $region41
    $region40: #{tpu_custom_call.1} parent=1 // pred_region
      %3590 = vst [vmem:[#allocation12] sm:$0xff] %v2779
      %3591 = vst [vmem:[#allocation13] sm:$0xff] %v2780
    $region41: #{tpu_custom_call.1} parent=1 // pred_fallthru
      _
    // Predicated region
    $region42: #{tpu_custom_call.1} parent=1 // pred_check
      _
    $region43: #{tpu_custom_call.1} parent=1 // pred_check_branch
      %3593 = sbr.rel (0) target = $region45
    $region44: #{tpu_custom_call.1} parent=1 // pred_region
      _
    $region45: #{tpu_custom_call.1} parent=1 // pred_fallthru
      _
    // Predicated region
    $region46: #{tpu_custom_call.1} parent=1 // pred_check
      _
    $region47: #{tpu_custom_call.1} parent=1 // pred_check_branch
      %3595 = sbr.rel (0) target = $region49
    $region48: #{tpu_custom_call.1} parent=1 // pred_region
      %s3597 = ssub.s32 128, 128
      %3598 = vsyncadd [#allocation8], %s3597
      %s3600 = sshll.u32 [#allocation12], 4
      %s3601 = int_to_ptr.vmem [resolvable:$true] %s3600
      %3603 = dma.vmem_to_hbm [thread:$0]  %s3601, 128, %s6, [#allocation8]
    $region49: #{tpu_custom_call.1} parent=1 // pred_fallthru
      _
    // Predicated region
    $region50: #{tpu_custom_call.1} parent=1 // pred_check
      _
    $region51: #{tpu_custom_call.1} parent=1 // pred_check_branch
      %3605 = sbr.rel (0) target = $region53
    $region52: #{tpu_custom_call.1} parent=1 // pred_region
      %s3607 = ssub.s32 128, 128
      %3608 = vsyncadd [#allocation14], %s3607
      %s3610 = sshll.u32 [#allocation13], 4
      %s3611 = int_to_ptr.vmem [resolvable:$true] %s3610
      %3613 = dma.vmem_to_hbm [thread:$0]  %s3611, 128, %s7, [#allocation14]
    $region53: #{tpu_custom_call.1} parent=1 // pred_fallthru
      _
    // Predicated region
    $region54: #{tpu_custom_call.1} parent=1 // pred_check
      _
    $region55: #{tpu_custom_call.1} parent=1 // pred_check_branch
      %3615 = sbr.rel (0) target = $region57
    $region56: #{tpu_custom_call.1} parent=1 // pred_region
      _
    $region57: #{tpu_custom_call.1} parent=1 // pred_fallthru
      _
    // Predicated region
    $region58: #{tpu_custom_call.1} parent=1 // pred_check
      _
    $region59: #{tpu_custom_call.1} parent=1 // pred_check_branch
      %3617 = sbr.rel (0) target = $region61
    $region60: #{tpu_custom_call.1} parent=1 // pred_region
      %3618 = dma.done [#allocation8], 128
    $region61: #{tpu_custom_call.1} parent=1 // pred_fallthru
      _
    // Predicated region
    $region62: #{tpu_custom_call.1} parent=1 // pred_check
      _
    $region63: #{tpu_custom_call.1} parent=1 // pred_check_branch
      %3620 = sbr.rel (0) target = $region65
    $region64: #{tpu_custom_call.1} parent=1 // pred_region
      %3621 = dma.done [#allocation14], 128
    $region65: #{tpu_custom_call.1} parent=1 // pred_fallthru
      _
    %3622 = vsyncpa [#allocation7], 1
    %3623 = vsyncpa [#allocation10], 1
    %3624 = vsyncpa [#allocation8], 1
    %3625 = vsyncpa [#allocation14], 1

</llo_original>
